<compile_context>
chip_gen: v7x
topology: tpu7x:2x2x1
jax: 0.10.0
libtpu: 0.0.40
codegen_flags: <defaults>
</compile_context>

<pallas_src>
import jax
import jax.numpy as jnp
from jax import lax
from jax.experimental import pallas as pl
from jax.experimental.pallas import tpu as pltpu

K = 7
PAD = K // 2


def _make_kernel(H, W, TB, n_c_steps):
    Hp, Wp = H + 2 * PAD, W + 2 * PAD

    def kernel(w_ref, x_ref, o_ref, sum_ref, max_ref, feat_ref, shift_ref):
        # w_ref    : SMEM (2*K*K,)        conv weights (c, i, j) order; ch-0 pre-scaled by 1/C
        # x_ref    : VMEM (TB, TC, H*W)   lane-dense input block
        # o_ref    : VMEM (TB, H, W)      output block
        # sum_ref  : VMEM (TB, H*W) f32   running channel sum
        # max_ref  : VMEM (TB, H*W) f32   running channel max
        # feat_ref : VMEM (2, Hp, Wp) f32 zero-padded [sum, max] maps (conv layout)
        # shift_ref: VMEM (2, K, Hp, W)   lane-shifted copies of the padded maps
        c_step = pl.program_id(1)

        def reduce_step(is_first):
            def body():
                for b in range(TB):
                    xb = x_ref[b].astype(jnp.float32)            # (TC, HW) lane-dense
                    ps = jnp.sum(xb, axis=0, keepdims=True)      # (1, HW)
                    pm = jnp.max(xb, axis=0, keepdims=True)      # (1, HW)
                    if is_first:
                        sum_ref[pl.ds(b, 1)] = ps
                        max_ref[pl.ds(b, 1)] = pm
                    else:
                        sum_ref[pl.ds(b, 1)] = sum_ref[pl.ds(b, 1)] + ps
                        max_ref[pl.ds(b, 1)] = jnp.maximum(max_ref[pl.ds(b, 1)], pm)
            return body

        def conv_and_store():
            # Border stays zero (== bias-free conv's zero padding); the
            # interior is fully rewritten for every b, so one zeroing per
            # output block suffices (not per grid step).
            feat_ref[...] = jnp.zeros_like(feat_ref)

            # Hoist all 2*K*K SMEM scalar reads out of the hot tap loop.
            wv = [[[w_ref[c * K * K + i * K + j] for j in range(K)]
                   for i in range(K)] for c in range(2)]

            for b in range(TB):
                # Relayout the flat lane-dense accumulators into the padded
                # (H, W) maps, one row strip at a time (tiny: 2*H strips).
                for r in range(H):
                    feat_ref[0, pl.ds(PAD + r, 1), pl.ds(PAD, W)] = (
                        sum_ref[pl.ds(b, 1), pl.ds(r * W, W)])
                    feat_ref[1, pl.ds(PAD + r, 1), pl.ds(PAD, W)] = (
                        max_ref[pl.ds(b, 1), pl.ds(r * W, W)])

                # 2*K lane shifts staged once:
                # shift_ref[c, j, r, w] == padded_feat[c, r, j + w]
                for c in range(2):
                    for j in range(K):
                        shift_ref[c, j] = feat_ref[c, :, pl.ds(j, W)]

                # 7x7 conv taps: sublane-offset loads + multiply-adds,
                # 4 independent accumulators for VALU ILP.
                accs = [None] * 4
                t = 0
                for c in range(2):
                    for i in range(K):
                        for j in range(K):
                            win = shift_ref[c, j, pl.ds(i, H), :]   # (H, W)
                            contrib = wv[c][i][j] * win
                            a = t % 4
                            accs[a] = contrib if accs[a] is None else accs[a] + contrib
                            t += 1
                total = (accs[0] + accs[1]) + (accs[2] + accs[3])

                o_ref[b] = jax.nn.sigmoid(total).astype(o_ref.dtype)

        if n_c_steps == 1:
            reduce_step(True)()
            conv_and_store()
        else:
            pl.when(c_step == 0)(reduce_step(True))
            pl.when(c_step != 0)(reduce_step(False))
            pl.when(c_step == n_c_steps - 1)(conv_and_store)

    return kernel


def _pick_tiles(N, C, H, W, itemsize):
    """Pick (TB, TC) batch / channel tile sizes.

    Constraints:
      * input block (TB, TC, H*W) stays within an 8 MiB budget (x2 for the
        pipeline's double buffering -> well inside the 32 MiB scoped VMEM
        limit on every generation, incl. v7x);
      * TC == C, or TC is a multiple of 8 (layout rule for a non-full
        second-minor block dim) that divides C;
      * keep >= 2 batch-grid steps when N >= 2 (>= 4 when N >= 4) so both
        TensorCores get work and the DMA pipeline has something to overlap;
      * TB <= 8 so the per-b unrolled conv tail stays small.
    """
    HW = H * W
    budget = 8 * 1024 * 1024

    TC = C
    if C * HW * itemsize > budget:
        cands = [d for d in range(8, C, 8)
                 if C % d == 0 and d * HW * itemsize <= budget]
        if cands:
            TC = max(cands)
        # else: fall back to full C; the vmem limit below is raised to match.

    min_steps = 4 if N >= 4 else (2 if N >= 2 else 1)
    TB = 1
    for cand in range(1, min(N, 8) + 1):
        if N % cand:
            continue
        if N // cand < min_steps:
            continue
        if cand * TC * HW * itemsize > budget:
            continue
        TB = cand
    return TB, TC


def spatial_attention(x, weight):
    """x: (N, C, H, W); weight: (1, 2, K, K) -> (N, 1, H, W).

    Matches sigmoid(conv2d(cat([mean_c(x), max_c(x)], 1), weight, padding=3)).
    """
    N, C, H, W = x.shape
    HW = H * W
    Hp, Wp = H + 2 * PAD, W + 2 * PAD
    itemsize = jnp.dtype(x.dtype).itemsize

    TB, TC = _pick_tiles(N, C, H, W, itemsize)
    n_c_steps = C // TC

    # Lane-dense view of the input (contiguous reshape: free in HBM).
    x_flat = x.reshape(N, C, HW)

    # Fold the mean's 1/C into the channel-0 taps (conv is linear, padding is
    # zero), so the kernel only accumulates a raw channel sum.
    w = weight.astype(jnp.float32)
    w = w.at[:, 0, :, :].multiply(1.0 / C)
    w_flat = w.reshape(-1)                       # (2*K*K,), (c, i, j) order

    in_block_bytes = TB * TC * HW * itemsize
    vmem_limit = min(100 * 1024 * 1024,
                     max(32 * 1024 * 1024, 2 * in_block_bytes + (8 << 20)))

    kernel = _make_kernel(H, W, TB, n_c_steps)
    out = pl.pallas_call(
        kernel,
        out_shape=jax.ShapeDtypeStruct((N, H, W), x.dtype),
        grid=(N // TB, n_c_steps),
        in_specs=[
            pl.BlockSpec(memory_space=pltpu.MemorySpace.SMEM),       # weights
            pl.BlockSpec((TB, TC, HW), lambda b, c: (b, c, 0)),      # input block
        ],
        out_specs=pl.BlockSpec((TB, H, W), lambda b, c: (b, 0, 0)),
        scratch_shapes=[
            pltpu.VMEM((TB, HW), jnp.float32),      # running channel sum
            pltpu.VMEM((TB, HW), jnp.float32),      # running channel max
            pltpu.VMEM((2, Hp, Wp), jnp.float32),   # zero-padded feature maps
            pltpu.VMEM((2, K, Hp, W), jnp.float32), # lane-shifted copies
        ],
        compiler_params=pltpu.CompilerParams(
            dimension_semantics=("parallel", "arbitrary"),
            vmem_limit_bytes=vmem_limit,
        ),
        cost_estimate=pl.CostEstimate(
            flops=2 * N * HW * (C + 2 * K * K),
            transcendentals=N * HW,
            bytes_accessed=(N * C * HW + N * HW) * itemsize + 2 * K * K * 4,
        ),
    )(w_flat, x_flat)
    return out.reshape(N, 1, H, W)


def ref_spatial_attention(x, weight):
    # Pure-JAX reference matching the PyTorch forward.
    avg = jnp.mean(x, axis=1, keepdims=True)
    mx = jnp.max(x, axis=1, keepdims=True)
    feat = jnp.concatenate([avg, mx], axis=1)
    y = lax.conv_general_dilated(
        feat, weight, window_strides=(1, 1),
        padding=((PAD, PAD), (PAD, PAD)),
        dimension_numbers=("NCHW", "OIHW", "NCHW"),
    )
    return jax.nn.sigmoid(y)


if __name__ == "__main__":
    key = jax.random.PRNGKey(0)
    kx, kw = jax.random.split(key)

    N, C, H, W = 2, 4, 16, 16
    x = jax.random.normal(kx, (N, C, H, W), dtype=jnp.float32)
    # Deterministic synthetic conv weight (Conv2d(2, 1, 7, bias=False) -> (1, 2, 7, 7)).
    weight = 0.1 * jax.random.normal(kw, (1, 2, K, K), dtype=jnp.float32)

    out = spatial_attention(x, weight)
    out = jax.block_until_ready(out)

    ref = ref_spatial_attention(x, weight)
    assert out.shape == (N, 1, H, W), out.shape
    assert jnp.allclose(out, ref, atol=1e-5, rtol=1e-5), float(jnp.max(jnp.abs(out - ref)))
    print("KERNEL_OK")
</pallas_src>

<mosaic_0001>
module attributes {stable_mosaic.version = 11 : i64} {
  func.func @kernel(%arg0: i32, %arg1: i32, %arg2: memref<98xf32, #tpu.memory_space<smem>>, %arg3: memref<1x4x256xf32, #tpu.memory_space<vmem>>, %arg4: memref<1x16x16xf32, #tpu.memory_space<vmem>>, %arg5: memref<1x256xf32, #tpu.memory_space<vmem>>, %arg6: memref<1x256xf32, #tpu.memory_space<vmem>>, %arg7: memref<2x22x22xf32, #tpu.memory_space<vmem>>, %arg8: memref<2x7x22x16xf32, #tpu.memory_space<vmem>>) attributes {dimension_semantics = [#tpu.dimension_semantics<parallel>, #tpu.dimension_semantics<arbitrary>], iteration_bounds = array<i64: 2, 1>, scalar_prefetch = 0 : i64, scratch_operands = 4 : i64, tpu.core_type = #tpu.core_type<tc>, window_params = [{transform_indices = @transform_0, window_bounds = array<i64: 98>}, {transform_indices = @transform_1, window_bounds = array<i64: 1, 4, 256>}, {transform_indices = @transform_2, window_bounds = array<i64: 1, 16, 16>}]} {
    %c0 = arith.constant 0 : index
    %c0_0 = arith.constant 0 : index
    %c0_1 = arith.constant 0 : index
    %0 = vector.load %arg3[%c0, %c0_0, %c0_1] : memref<1x4x256xf32, #tpu.memory_space<vmem>>, vector<1x4x256xf32>
    %1 = vector.shape_cast %0 : vector<1x4x256xf32> to vector<4x256xf32>
    %cst = arith.constant dense<0.000000e+00> : vector<256xf32>
    %2 = vector.multi_reduction <add>, %1, %cst [0] : vector<4x256xf32> to vector<256xf32>
    %3 = vector.shape_cast %2 : vector<256xf32> to vector<1x256xf32>
    %cst_2 = arith.constant dense<0xFF800000> : vector<256xf32>
    %4 = vector.multi_reduction <maximumf>, %1, %cst_2 [0] : vector<4x256xf32> to vector<256xf32>
    %5 = vector.shape_cast %4 : vector<256xf32> to vector<1x256xf32>
    %c0_3 = arith.constant 0 : index
    %c0_4 = arith.constant 0 : index
    %6 = vector.load %arg5[%c0_3, %c0_4] : memref<1x256xf32, #tpu.memory_space<vmem>>, vector<1x256xf32>
    tpu.vector_store %arg5[%c0_3, %c0_4], %3 {strides = array<i32>} : memref<1x256xf32, #tpu.memory_space<vmem>>, vector<1x256xf32>,
    %c0_5 = arith.constant 0 : index
    %c0_6 = arith.constant 0 : index
    %7 = vector.load %arg6[%c0_5, %c0_6] : memref<1x256xf32, #tpu.memory_space<vmem>>, vector<1x256xf32>
    tpu.vector_store %arg6[%c0_5, %c0_6], %5 {strides = array<i32>} : memref<1x256xf32, #tpu.memory_space<vmem>>, vector<1x256xf32>,
    %cst_7 = arith.constant 0.000000e+00 : f32
    %8 = vector.broadcast %cst_7 : f32 to vector<2x22x22xf32>
    %c0_8 = arith.constant 0 : index
    %c0_9 = arith.constant 0 : index
    %c0_10 = arith.constant 0 : index
    %9 = vector.load %arg7[%c0_8, %c0_9, %c0_10] : memref<2x22x22xf32, #tpu.memory_space<vmem>>, vector<2x22x22xf32>
    tpu.vector_store %arg7[%c0_8, %c0_9, %c0_10], %8 {strides = array<i32>} : memref<2x22x22xf32, #tpu.memory_space<vmem>>, vector<2x22x22xf32>,
    %c0_11 = arith.constant 0 : index
    %10 = memref.load %arg2[%c0_11] : memref<98xf32, #tpu.memory_space<smem>>
    %c1 = arith.constant 1 : index
    %11 = memref.load %arg2[%c1] : memref<98xf32, #tpu.memory_space<smem>>
    %c2 = arith.constant 2 : index
    %12 = memref.load %arg2[%c2] : memref<98xf32, #tpu.memory_space<smem>>
    %c3 = arith.constant 3 : index
    %13 = memref.load %arg2[%c3] : memref<98xf32, #tpu.memory_space<smem>>
    %c4 = arith.constant 4 : index
    %14 = memref.load %arg2[%c4] : memref<98xf32, #tpu.memory_space<smem>>
    %c5 = arith.constant 5 : index
    %15 = memref.load %arg2[%c5] : memref<98xf32, #tpu.memory_space<smem>>
    %c6 = arith.constant 6 : index
    %16 = memref.load %arg2[%c6] : memref<98xf32, #tpu.memory_space<smem>>
    %c7 = arith.constant 7 : index
    %17 = memref.load %arg2[%c7] : memref<98xf32, #tpu.memory_space<smem>>
    %c8 = arith.constant 8 : index
    %18 = memref.load %arg2[%c8] : memref<98xf32, #tpu.memory_space<smem>>
    %c9 = arith.constant 9 : index
    %19 = memref.load %arg2[%c9] : memref<98xf32, #tpu.memory_space<smem>>
    %c10 = arith.constant 10 : index
    %20 = memref.load %arg2[%c10] : memref<98xf32, #tpu.memory_space<smem>>
    %c11 = arith.constant 11 : index
    %21 = memref.load %arg2[%c11] : memref<98xf32, #tpu.memory_space<smem>>
    %c12 = arith.constant 12 : index
    %22 = memref.load %arg2[%c12] : memref<98xf32, #tpu.memory_space<smem>>
    %c13 = arith.constant 13 : index
    %23 = memref.load %arg2[%c13] : memref<98xf32, #tpu.memory_space<smem>>
    %c14 = arith.constant 14 : index
    %24 = memref.load %arg2[%c14] : memref<98xf32, #tpu.memory_space<smem>>
    %c15 = arith.constant 15 : index
    %25 = memref.load %arg2[%c15] : memref<98xf32, #tpu.memory_space<smem>>
    %c16 = arith.constant 16 : index
    %26 = memref.load %arg2[%c16] : memref<98xf32, #tpu.memory_space<smem>>
    %c17 = arith.constant 17 : index
    %27 = memref.load %arg2[%c17] : memref<98xf32, #tpu.memory_space<smem>>
    %c18 = arith.constant 18 : index
    %28 = memref.load %arg2[%c18] : memref<98xf32, #tpu.memory_space<smem>>
    %c19 = arith.constant 19 : index
    %29 = memref.load %arg2[%c19] : memref<98xf32, #tpu.memory_space<smem>>
    %c20 = arith.constant 20 : index
    %30 = memref.load %arg2[%c20] : memref<98xf32, #tpu.memory_space<smem>>
    %c21 = arith.constant 21 : index
    %31 = memref.load %arg2[%c21] : memref<98xf32, #tpu.memory_space<smem>>
    %c22 = arith.constant 22 : index
    %32 = memref.load %arg2[%c22] : memref<98xf32, #tpu.memory_space<smem>>
    %c23 = arith.constant 23 : index
    %33 = memref.load %arg2[%c23] : memref<98xf32, #tpu.memory_space<smem>>
    %c24 = arith.constant 24 : index
    %34 = memref.load %arg2[%c24] : memref<98xf32, #tpu.memory_space<smem>>
    %c25 = arith.constant 25 : index
    %35 = memref.load %arg2[%c25] : memref<98xf32, #tpu.memory_space<smem>>
    %c26 = arith.constant 26 : index
    %36 = memref.load %arg2[%c26] : memref<98xf32, #tpu.memory_space<smem>>
    %c27 = arith.constant 27 : index
    %37 = memref.load %arg2[%c27] : memref<98xf32, #tpu.memory_space<smem>>
    %c28 = arith.constant 28 : index
    %38 = memref.load %arg2[%c28] : memref<98xf32, #tpu.memory_space<smem>>
    %c29 = arith.constant 29 : index
    %39 = memref.load %arg2[%c29] : memref<98xf32, #tpu.memory_space<smem>>
    %c30 = arith.constant 30 : index
    %40 = memref.load %arg2[%c30] : memref<98xf32, #tpu.memory_space<smem>>
    %c31 = arith.constant 31 : index
    %41 = memref.load %arg2[%c31] : memref<98xf32, #tpu.memory_space<smem>>
    %c32 = arith.constant 32 : index
    %42 = memref.load %arg2[%c32] : memref<98xf32, #tpu.memory_space<smem>>
    %c33 = arith.constant 33 : index
    %43 = memref.load %arg2[%c33] : memref<98xf32, #tpu.memory_space<smem>>
    %c34 = arith.constant 34 : index
    %44 = memref.load %arg2[%c34] : memref<98xf32, #tpu.memory_space<smem>>
    %c35 = arith.constant 35 : index
    %45 = memref.load %arg2[%c35] : memref<98xf32, #tpu.memory_space<smem>>
    %c36 = arith.constant 36 : index
    %46 = memref.load %arg2[%c36] : memref<98xf32, #tpu.memory_space<smem>>
    %c37 = arith.constant 37 : index
    %47 = memref.load %arg2[%c37] : memref<98xf32, #tpu.memory_space<smem>>
    %c38 = arith.constant 38 : index
    %48 = memref.load %arg2[%c38] : memref<98xf32, #tpu.memory_space<smem>>
    %c39 = arith.constant 39 : index
    %49 = memref.load %arg2[%c39] : memref<98xf32, #tpu.memory_space<smem>>
    %c40 = arith.constant 40 : index
    %50 = memref.load %arg2[%c40] : memref<98xf32, #tpu.memory_space<smem>>
    %c41 = arith.constant 41 : index
    %51 = memref.load %arg2[%c41] : memref<98xf32, #tpu.memory_space<smem>>
    %c42 = arith.constant 42 : index
    %52 = memref.load %arg2[%c42] : memref<98xf32, #tpu.memory_space<smem>>
    %c43 = arith.constant 43 : index
    %53 = memref.load %arg2[%c43] : memref<98xf32, #tpu.memory_space<smem>>
    %c44 = arith.constant 44 : index
    %54 = memref.load %arg2[%c44] : memref<98xf32, #tpu.memory_space<smem>>
    %c45 = arith.constant 45 : index
    %55 = memref.load %arg2[%c45] : memref<98xf32, #tpu.memory_space<smem>>
    %c46 = arith.constant 46 : index
    %56 = memref.load %arg2[%c46] : memref<98xf32, #tpu.memory_space<smem>>
    %c47 = arith.constant 47 : index
    %57 = memref.load %arg2[%c47] : memref<98xf32, #tpu.memory_space<smem>>
    %c48 = arith.constant 48 : index
    %58 = memref.load %arg2[%c48] : memref<98xf32, #tpu.memory_space<smem>>
    %c49 = arith.constant 49 : index
    %59 = memref.load %arg2[%c49] : memref<98xf32, #tpu.memory_space<smem>>
    %c50 = arith.constant 50 : index
    %60 = memref.load %arg2[%c50] : memref<98xf32, #tpu.memory_space<smem>>
    %c51 = arith.constant 51 : index
    %61 = memref.load %arg2[%c51] : memref<98xf32, #tpu.memory_space<smem>>
    %c52 = arith.constant 52 : index
    %62 = memref.load %arg2[%c52] : memref<98xf32, #tpu.memory_space<smem>>
    %c53 = arith.constant 53 : index
    %63 = memref.load %arg2[%c53] : memref<98xf32, #tpu.memory_space<smem>>
    %c54 = arith.constant 54 : index
    %64 = memref.load %arg2[%c54] : memref<98xf32, #tpu.memory_space<smem>>
    %c55 = arith.constant 55 : index
    %65 = memref.load %arg2[%c55] : memref<98xf32, #tpu.memory_space<smem>>
    %c56 = arith.constant 56 : index
    %66 = memref.load %arg2[%c56] : memref<98xf32, #tpu.memory_space<smem>>
    %c57 = arith.constant 57 : index
    %67 = memref.load %arg2[%c57] : memref<98xf32, #tpu.memory_space<smem>>
    %c58 = arith.constant 58 : index
    %68 = memref.load %arg2[%c58] : memref<98xf32, #tpu.memory_space<smem>>
    %c59 = arith.constant 59 : index
    %69 = memref.load %arg2[%c59] : memref<98xf32, #tpu.memory_space<smem>>
    %c60 = arith.constant 60 : index
    %70 = memref.load %arg2[%c60] : memref<98xf32, #tpu.memory_space<smem>>
    %c61 = arith.constant 61 : index
    %71 = memref.load %arg2[%c61] : memref<98xf32, #tpu.memory_space<smem>>
    %c62 = arith.constant 62 : index
    %72 = memref.load %arg2[%c62] : memref<98xf32, #tpu.memory_space<smem>>
    %c63 = arith.constant 63 : index
    %73 = memref.load %arg2[%c63] : memref<98xf32, #tpu.memory_space<smem>>
    %c64 = arith.constant 64 : index
    %74 = memref.load %arg2[%c64] : memref<98xf32, #tpu.memory_space<smem>>
    %c65 = arith.constant 65 : index
    %75 = memref.load %arg2[%c65] : memref<98xf32, #tpu.memory_space<smem>>
    %c66 = arith.constant 66 : index
    %76 = memref.load %arg2[%c66] : memref<98xf32, #tpu.memory_space<smem>>
    %c67 = arith.constant 67 : index
    %77 = memref.load %arg2[%c67] : memref<98xf32, #tpu.memory_space<smem>>
    %c68 = arith.constant 68 : index
    %78 = memref.load %arg2[%c68] : memref<98xf32, #tpu.memory_space<smem>>
    %c69 = arith.constant 69 : index
    %79 = memref.load %arg2[%c69] : memref<98xf32, #tpu.memory_space<smem>>
    %c70 = arith.constant 70 : index
    %80 = memref.load %arg2[%c70] : memref<98xf32, #tpu.memory_space<smem>>
    %c71 = arith.constant 71 : index
    %81 = memref.load %arg2[%c71] : memref<98xf32, #tpu.memory_space<smem>>
    %c72 = arith.constant 72 : index
    %82 = memref.load %arg2[%c72] : memref<98xf32, #tpu.memory_space<smem>>
    %c73 = arith.constant 73 : index
    %83 = memref.load %arg2[%c73] : memref<98xf32, #tpu.memory_space<smem>>
    %c74 = arith.constant 74 : index
    %84 = memref.load %arg2[%c74] : memref<98xf32, #tpu.memory_space<smem>>
    %c75 = arith.constant 75 : index
    %85 = memref.load %arg2[%c75] : memref<98xf32, #tpu.memory_space<smem>>
    %c76 = arith.constant 76 : index
    %86 = memref.load %arg2[%c76] : memref<98xf32, #tpu.memory_space<smem>>
    %c77 = arith.constant 77 : index
    %87 = memref.load %arg2[%c77] : memref<98xf32, #tpu.memory_space<smem>>
    %c78 = arith.constant 78 : index
    %88 = memref.load %arg2[%c78] : memref<98xf32, #tpu.memory_space<smem>>
    %c79 = arith.constant 79 : index
    %89 = memref.load %arg2[%c79] : memref<98xf32, #tpu.memory_space<smem>>
    %c80 = arith.constant 80 : index
    %90 = memref.load %arg2[%c80] : memref<98xf32, #tpu.memory_space<smem>>
    %c81 = arith.constant 81 : index
    %91 = memref.load %arg2[%c81] : memref<98xf32, #tpu.memory_space<smem>>
    %c82 = arith.constant 82 : index
    %92 = memref.load %arg2[%c82] : memref<98xf32, #tpu.memory_space<smem>>
    %c83 = arith.constant 83 : index
    %93 = memref.load %arg2[%c83] : memref<98xf32, #tpu.memory_space<smem>>
    %c84 = arith.constant 84 : index
    %94 = memref.load %arg2[%c84] : memref<98xf32, #tpu.memory_space<smem>>
    %c85 = arith.constant 85 : index
    %95 = memref.load %arg2[%c85] : memref<98xf32, #tpu.memory_space<smem>>
    %c86 = arith.constant 86 : index
    %96 = memref.load %arg2[%c86] : memref<98xf32, #tpu.memory_space<smem>>
    %c87 = arith.constant 87 : index
    %97 = memref.load %arg2[%c87] : memref<98xf32, #tpu.memory_space<smem>>
    %c88 = arith.constant 88 : index
    %98 = memref.load %arg2[%c88] : memref<98xf32, #tpu.memory_space<smem>>
    %c89 = arith.constant 89 : index
    %99 = memref.load %arg2[%c89] : memref<98xf32, #tpu.memory_space<smem>>
    %c90 = arith.constant 90 : index
    %100 = memref.load %arg2[%c90] : memref<98xf32, #tpu.memory_space<smem>>
    %c91 = arith.constant 91 : index
    %101 = memref.load %arg2[%c91] : memref<98xf32, #tpu.memory_space<smem>>
    %c92 = arith.constant 92 : index
    %102 = memref.load %arg2[%c92] : memref<98xf32, #tpu.memory_space<smem>>
    %c93 = arith.constant 93 : index
    %103 = memref.load %arg2[%c93] : memref<98xf32, #tpu.memory_space<smem>>
    %c94 = arith.constant 94 : index
    %104 = memref.load %arg2[%c94] : memref<98xf32, #tpu.memory_space<smem>>
    %c95 = arith.constant 95 : index
    %105 = memref.load %arg2[%c95] : memref<98xf32, #tpu.memory_space<smem>>
    %c96 = arith.constant 96 : index
    %106 = memref.load %arg2[%c96] : memref<98xf32, #tpu.memory_space<smem>>
    %c97 = arith.constant 97 : index
    %107 = memref.load %arg2[%c97] : memref<98xf32, #tpu.memory_space<smem>>
    %c0_12 = arith.constant 0 : index
    %c0_13 = arith.constant 0 : index
    %108 = vector.load %arg5[%c0_12, %c0_13] : memref<1x256xf32, #tpu.memory_space<vmem>>, vector<1x16xf32>
    %c0_14 = arith.constant 0 : index
    %c3_15 = arith.constant 3 : index
    %c3_16 = arith.constant 3 : index
    %109 = vector.load %arg7[%c0_14, %c3_15, %c3_16] : memref<2x22x22xf32, #tpu.memory_space<vmem>>, vector<1x1x16xf32>
    %110 = vector.shape_cast %109 : vector<1x1x16xf32> to vector<1x16xf32>
    %111 = vector.shape_cast %108 : vector<1x16xf32> to vector<1x1x16xf32>
    tpu.vector_store %arg7[%c0_14, %c3_15, %c3_16], %111 {strides = array<i32>} : memref<2x22x22xf32, #tpu.memory_space<vmem>>, vector<1x1x16xf32>,
    %c0_17 = arith.constant 0 : index
    %c0_18 = arith.constant 0 : index
    %112 = vector.load %arg6[%c0_17, %c0_18] : memref<1x256xf32, #tpu.memory_space<vmem>>, vector<1x16xf32>
    %c1_19 = arith.constant 1 : index
    %c3_20 = arith.constant 3 : index
    %c3_21 = arith.constant 3 : index
    %113 = vector.load %arg7[%c1_19, %c3_20, %c3_21] : memref<2x22x22xf32, #tpu.memory_space<vmem>>, vector<1x1x16xf32>
    %114 = vector.shape_cast %113 : vector<1x1x16xf32> to vector<1x16xf32>
    %115 = vector.shape_cast %112 : vector<1x16xf32> to vector<1x1x16xf32>
    tpu.vector_store %arg7[%c1_19, %c3_20, %c3_21], %115 {strides = array<i32>} : memref<2x22x22xf32, #tpu.memory_space<vmem>>, vector<1x1x16xf32>,
    %c0_22 = arith.constant 0 : index
    %c16_23 = arith.constant 16 : index
    %116 = vector.load %arg5[%c0_22, %c16_23] : memref<1x256xf32, #tpu.memory_space<vmem>>, vector<1x16xf32>
    %c0_24 = arith.constant 0 : index
    %c4_25 = arith.constant 4 : index
    %c3_26 = arith.constant 3 : index
    %117 = vector.load %arg7[%c0_24, %c4_25, %c3_26] : memref<2x22x22xf32, #tpu.memory_space<vmem>>, vector<1x1x16xf32>
    %118 = vector.shape_cast %117 : vector<1x1x16xf32> to vector<1x16xf32>
    %119 = vector.shape_cast %116 : vector<1x16xf32> to vector<1x1x16xf32>
    tpu.vector_store %arg7[%c0_24, %c4_25, %c3_26], %119 {strides = array<i32>} : memref<2x22x22xf32, #tpu.memory_space<vmem>>, vector<1x1x16xf32>,
    %c0_27 = arith.constant 0 : index
    %c16_28 = arith.constant 16 : index
    %120 = vector.load %arg6[%c0_27, %c16_28] : memref<1x256xf32, #tpu.memory_space<vmem>>, vector<1x16xf32>
    %c1_29 = arith.constant 1 : index
    %c4_30 = arith.constant 4 : index
    %c3_31 = arith.constant 3 : index
    %121 = vector.load %arg7[%c1_29, %c4_30, %c3_31] : memref<2x22x22xf32, #tpu.memory_space<vmem>>, vector<1x1x16xf32>
    %122 = vector.shape_cast %121 : vector<1x1x16xf32> to vector<1x16xf32>
    %123 = vector.shape_cast %120 : vector<1x16xf32> to vector<1x1x16xf32>
    tpu.vector_store %arg7[%c1_29, %c4_30, %c3_31], %123 {strides = array<i32>} : memref<2x22x22xf32, #tpu.memory_space<vmem>>, vector<1x1x16xf32>,
    %c0_32 = arith.constant 0 : index
    %c32_33 = arith.constant 32 : index
    %124 = vector.load %arg5[%c0_32, %c32_33] : memref<1x256xf32, #tpu.memory_space<vmem>>, vector<1x16xf32>
    %c0_34 = arith.constant 0 : index
    %c5_35 = arith.constant 5 : index
    %c3_36 = arith.constant 3 : index
    %125 = vector.load %arg7[%c0_34, %c5_35, %c3_36] : memref<2x22x22xf32, #tpu.memory_space<vmem>>, vector<1x1x16xf32>
    %126 = vector.shape_cast %125 : vector<1x1x16xf32> to vector<1x16xf32>
    %127 = vector.shape_cast %124 : vector<1x16xf32> to vector<1x1x16xf32>
    tpu.vector_store %arg7[%c0_34, %c5_35, %c3_36], %127 {strides = array<i32>} : memref<2x22x22xf32, #tpu.memory_space<vmem>>, vector<1x1x16xf32>,
    %c0_37 = arith.constant 0 : index
    %c32_38 = arith.constant 32 : index
    %128 = vector.load %arg6[%c0_37, %c32_38] : memref<1x256xf32, #tpu.memory_space<vmem>>, vector<1x16xf32>
    %c1_39 = arith.constant 1 : index
    %c5_40 = arith.constant 5 : index
    %c3_41 = arith.constant 3 : index
    %129 = vector.load %arg7[%c1_39, %c5_40, %c3_41] : memref<2x22x22xf32, #tpu.memory_space<vmem>>, vector<1x1x16xf32>
    %130 = vector.shape_cast %129 : vector<1x1x16xf32> to vector<1x16xf32>
    %131 = vector.shape_cast %128 : vector<1x16xf32> to vector<1x1x16xf32>
    tpu.vector_store %arg7[%c1_39, %c5_40, %c3_41], %131 {strides = array<i32>} : memref<2x22x22xf32, #tpu.memory_space<vmem>>, vector<1x1x16xf32>,
    %c0_42 = arith.constant 0 : index
    %c48_43 = arith.constant 48 : index
    %132 = vector.load %arg5[%c0_42, %c48_43] : memref<1x256xf32, #tpu.memory_space<vmem>>, vector<1x16xf32>
    %c0_44 = arith.constant 0 : index
    %c6_45 = arith.constant 6 : index
    %c3_46 = arith.constant 3 : index
    %133 = vector.load %arg7[%c0_44, %c6_45, %c3_46] : memref<2x22x22xf32, #tpu.memory_space<vmem>>, vector<1x1x16xf32>
    %134 = vector.shape_cast %133 : vector<1x1x16xf32> to vector<1x16xf32>
    %135 = vector.shape_cast %132 : vector<1x16xf32> to vector<1x1x16xf32>
    tpu.vector_store %arg7[%c0_44, %c6_45, %c3_46], %135 {strides = array<i32>} : memref<2x22x22xf32, #tpu.memory_space<vmem>>, vector<1x1x16xf32>,
    %c0_47 = arith.constant 0 : index
    %c48_48 = arith.constant 48 : index
    %136 = vector.load %arg6[%c0_47, %c48_48] : memref<1x256xf32, #tpu.memory_space<vmem>>, vector<1x16xf32>
    %c1_49 = arith.constant 1 : index
    %c6_50 = arith.constant 6 : index
    %c3_51 = arith.constant 3 : index
    %137 = vector.load %arg7[%c1_49, %c6_50, %c3_51] : memref<2x22x22xf32, #tpu.memory_space<vmem>>, vector<1x1x16xf32>
    %138 = vector.shape_cast %137 : vector<1x1x16xf32> to vector<1x16xf32>
    %139 = vector.shape_cast %136 : vector<1x16xf32> to vector<1x1x16xf32>
    tpu.vector_store %arg7[%c1_49, %c6_50, %c3_51], %139 {strides = array<i32>} : memref<2x22x22xf32, #tpu.memory_space<vmem>>, vector<1x1x16xf32>,
    %c0_52 = arith.constant 0 : index
    %c64_53 = arith.constant 64 : index
    %140 = vector.load %arg5[%c0_52, %c64_53] : memref<1x256xf32, #tpu.memory_space<vmem>>, vector<1x16xf32>
    %c0_54 = arith.constant 0 : index
    %c7_55 = arith.constant 7 : index
    %c3_56 = arith.constant 3 : index
    %141 = vector.load %arg7[%c0_54, %c7_55, %c3_56] : memref<2x22x22xf32, #tpu.memory_space<vmem>>, vector<1x1x16xf32>
    %142 = vector.shape_cast %141 : vector<1x1x16xf32> to vector<1x16xf32>
    %143 = vector.shape_cast %140 : vector<1x16xf32> to vector<1x1x16xf32>
    tpu.vector_store %arg7[%c0_54, %c7_55, %c3_56], %143 {strides = array<i32>} : memref<2x22x22xf32, #tpu.memory_space<vmem>>, vector<1x1x16xf32>,
    %c0_57 = arith.constant 0 : index
    %c64_58 = arith.constant 64 : index
    %144 = vector.load %arg6[%c0_57, %c64_58] : memref<1x256xf32, #tpu.memory_space<vmem>>, vector<1x16xf32>
    %c1_59 = arith.constant 1 : index
    %c7_60 = arith.constant 7 : index
    %c3_61 = arith.constant 3 : index
    %145 = vector.load %arg7[%c1_59, %c7_60, %c3_61] : memref<2x22x22xf32, #tpu.memory_space<vmem>>, vector<1x1x16xf32>
    %146 = vector.shape_cast %145 : vector<1x1x16xf32> to vector<1x16xf32>
    %147 = vector.shape_cast %144 : vector<1x16xf32> to vector<1x1x16xf32>
    tpu.vector_store %arg7[%c1_59, %c7_60, %c3_61], %147 {strides = array<i32>} : memref<2x22x22xf32, #tpu.memory_space<vmem>>, vector<1x1x16xf32>,
    %c0_62 = arith.constant 0 : index
    %c80_63 = arith.constant 80 : index
    %148 = vector.load %arg5[%c0_62, %c80_63] : memref<1x256xf32, #tpu.memory_space<vmem>>, vector<1x16xf32>
    %c0_64 = arith.constant 0 : index
    %c8_65 = arith.constant 8 : index
    %c3_66 = arith.constant 3 : index
    %149 = vector.load %arg7[%c0_64, %c8_65, %c3_66] : memref<2x22x22xf32, #tpu.memory_space<vmem>>, vector<1x1x16xf32>
    %150 = vector.shape_cast %149 : vector<1x1x16xf32> to vector<1x16xf32>
    %151 = vector.shape_cast %148 : vector<1x16xf32> to vector<1x1x16xf32>
    tpu.vector_store %arg7[%c0_64, %c8_65, %c3_66], %151 {strides = array<i32>} : memref<2x22x22xf32, #tpu.memory_space<vmem>>, vector<1x1x16xf32>,
    %c0_67 = arith.constant 0 : index
    %c80_68 = arith.constant 80 : index
    %152 = vector.load %arg6[%c0_67, %c80_68] : memref<1x256xf32, #tpu.memory_space<vmem>>, vector<1x16xf32>
    %c1_69 = arith.constant 1 : index
    %c8_70 = arith.constant 8 : index
    %c3_71 = arith.constant 3 : index
    %153 = vector.load %arg7[%c1_69, %c8_70, %c3_71] : memref<2x22x22xf32, #tpu.memory_space<vmem>>, vector<1x1x16xf32>
    %154 = vector.shape_cast %153 : vector<1x1x16xf32> to vector<1x16xf32>
    %155 = vector.shape_cast %152 : vector<1x16xf32> to vector<1x1x16xf32>
    tpu.vector_store %arg7[%c1_69, %c8_70, %c3_71], %155 {strides = array<i32>} : memref<2x22x22xf32, #tpu.memory_space<vmem>>, vector<1x1x16xf32>,
    %c0_72 = arith.constant 0 : index
    %c96_73 = arith.constant 96 : index
    %156 = vector.load %arg5[%c0_72, %c96_73] : memref<1x256xf32, #tpu.memory_space<vmem>>, vector<1x16xf32>
    %c0_74 = arith.constant 0 : index
    %c9_75 = arith.constant 9 : index
    %c3_76 = arith.constant 3 : index
    %157 = vector.load %arg7[%c0_74, %c9_75, %c3_76] : memref<2x22x22xf32, #tpu.memory_space<vmem>>, vector<1x1x16xf32>
    %158 = vector.shape_cast %157 : vector<1x1x16xf32> to vector<1x16xf32>
    %159 = vector.shape_cast %156 : vector<1x16xf32> to vector<1x1x16xf32>
    tpu.vector_store %arg7[%c0_74, %c9_75, %c3_76], %159 {strides = array<i32>} : memref<2x22x22xf32, #tpu.memory_space<vmem>>, vector<1x1x16xf32>,
    %c0_77 = arith.constant 0 : index
    %c96_78 = arith.constant 96 : index
    %160 = vector.load %arg6[%c0_77, %c96_78] : memref<1x256xf32, #tpu.memory_space<vmem>>, vector<1x16xf32>
    %c1_79 = arith.constant 1 : index
    %c9_80 = arith.constant 9 : index
    %c3_81 = arith.constant 3 : index
    %161 = vector.load %arg7[%c1_79, %c9_80, %c3_81] : memref<2x22x22xf32, #tpu.memory_space<vmem>>, vector<1x1x16xf32>
    %162 = vector.shape_cast %161 : vector<1x1x16xf32> to vector<1x16xf32>
    %163 = vector.shape_cast %160 : vector<1x16xf32> to vector<1x1x16xf32>
    tpu.vector_store %arg7[%c1_79, %c9_80, %c3_81], %163 {strides = array<i32>} : memref<2x22x22xf32, #tpu.memory_space<vmem>>, vector<1x1x16xf32>,
    %c0_82 = arith.constant 0 : index
    %c112 = arith.constant 112 : index
    %164 = vector.load %arg5[%c0_82, %c112] : memref<1x256xf32, #tpu.memory_space<vmem>>, vector<1x16xf32>
    %c0_83 = arith.constant 0 : index
    %c10_84 = arith.constant 10 : index
    %c3_85 = arith.constant 3 : index
    %165 = vector.load %arg7[%c0_83, %c10_84, %c3_85] : memref<2x22x22xf32, #tpu.memory_space<vmem>>, vector<1x1x16xf32>
    %166 = vector.shape_cast %165 : vector<1x1x16xf32> to vector<1x16xf32>
    %167 = vector.shape_cast %164 : vector<1x16xf32> to vector<1x1x16xf32>
    tpu.vector_store %arg7[%c0_83, %c10_84, %c3_85], %167 {strides = array<i32>} : memref<2x22x22xf32, #tpu.memory_space<vmem>>, vector<1x1x16xf32>,
    %c0_86 = arith.constant 0 : index
    %c112_87 = arith.constant 112 : index
    %168 = vector.load %arg6[%c0_86, %c112_87] : memref<1x256xf32, #tpu.memory_space<vmem>>, vector<1x16xf32>
    %c1_88 = arith.constant 1 : index
    %c10_89 = arith.constant 10 : index
    %c3_90 = arith.constant 3 : index
    %169 = vector.load %arg7[%c1_88, %c10_89, %c3_90] : memref<2x22x22xf32, #tpu.memory_space<vmem>>, vector<1x1x16xf32>
    %170 = vector.shape_cast %169 : vector<1x1x16xf32> to vector<1x16xf32>
    %171 = vector.shape_cast %168 : vector<1x16xf32> to vector<1x1x16xf32>
    tpu.vector_store %arg7[%c1_88, %c10_89, %c3_90], %171 {strides = array<i32>} : memref<2x22x22xf32, #tpu.memory_space<vmem>>, vector<1x1x16xf32>,
    %c0_91 = arith.constant 0 : index
    %c128 = arith.constant 128 : index
    %172 = vector.load %arg5[%c0_91, %c128] : memref<1x256xf32, #tpu.memory_space<vmem>>, vector<1x16xf32>
    %c0_92 = arith.constant 0 : index
    %c11_93 = arith.constant 11 : index
    %c3_94 = arith.constant 3 : index
    %173 = vector.load %arg7[%c0_92, %c11_93, %c3_94] : memref<2x22x22xf32, #tpu.memory_space<vmem>>, vector<1x1x16xf32>
    %174 = vector.shape_cast %173 : vector<1x1x16xf32> to vector<1x16xf32>
    %175 = vector.shape_cast %172 : vector<1x16xf32> to vector<1x1x16xf32>
    tpu.vector_store %arg7[%c0_92, %c11_93, %c3_94], %175 {strides = array<i32>} : memref<2x22x22xf32, #tpu.memory_space<vmem>>, vector<1x1x16xf32>,
    %c0_95 = arith.constant 0 : index
    %c128_96 = arith.constant 128 : index
    %176 = vector.load %arg6[%c0_95, %c128_96] : memref<1x256xf32, #tpu.memory_space<vmem>>, vector<1x16xf32>
    %c1_97 = arith.constant 1 : index
    %c11_98 = arith.constant 11 : index
    %c3_99 = arith.constant 3 : index
    %177 = vector.load %arg7[%c1_97, %c11_98, %c3_99] : memref<2x22x22xf32, #tpu.memory_space<vmem>>, vector<1x1x16xf32>
    %178 = vector.shape_cast %177 : vector<1x1x16xf32> to vector<1x16xf32>
    %179 = vector.shape_cast %176 : vector<1x16xf32> to vector<1x1x16xf32>
    tpu.vector_store %arg7[%c1_97, %c11_98, %c3_99], %179 {strides = array<i32>} : memref<2x22x22xf32, #tpu.memory_space<vmem>>, vector<1x1x16xf32>,
    %c0_100 = arith.constant 0 : index
    %c144 = arith.constant 144 : index
    %180 = vector.load %arg5[%c0_100, %c144] : memref<1x256xf32, #tpu.memory_space<vmem>>, vector<1x16xf32>
    %c0_101 = arith.constant 0 : index
    %c12_102 = arith.constant 12 : index
    %c3_103 = arith.constant 3 : index
    %181 = vector.load %arg7[%c0_101, %c12_102, %c3_103] : memref<2x22x22xf32, #tpu.memory_space<vmem>>, vector<1x1x16xf32>
    %182 = vector.shape_cast %181 : vector<1x1x16xf32> to vector<1x16xf32>
    %183 = vector.shape_cast %180 : vector<1x16xf32> to vector<1x1x16xf32>
    tpu.vector_store %arg7[%c0_101, %c12_102, %c3_103], %183 {strides = array<i32>} : memref<2x22x22xf32, #tpu.memory_space<vmem>>, vector<1x1x16xf32>,
    %c0_104 = arith.constant 0 : index
    %c144_105 = arith.constant 144 : index
    %184 = vector.load %arg6[%c0_104, %c144_105] : memref<1x256xf32, #tpu.memory_space<vmem>>, vector<1x16xf32>
    %c1_106 = arith.constant 1 : index
    %c12_107 = arith.constant 12 : index
    %c3_108 = arith.constant 3 : index
    %185 = vector.load %arg7[%c1_106, %c12_107, %c3_108] : memref<2x22x22xf32, #tpu.memory_space<vmem>>, vector<1x1x16xf32>
    %186 = vector.shape_cast %185 : vector<1x1x16xf32> to vector<1x16xf32>
    %187 = vector.shape_cast %184 : vector<1x16xf32> to vector<1x1x16xf32>
    tpu.vector_store %arg7[%c1_106, %c12_107, %c3_108], %187 {strides = array<i32>} : memref<2x22x22xf32, #tpu.memory_space<vmem>>, vector<1x1x16xf32>,
    %c0_109 = arith.constant 0 : index
    %c160 = arith.constant 160 : index
    %188 = vector.load %arg5[%c0_109, %c160] : memref<1x256xf32, #tpu.memory_space<vmem>>, vector<1x16xf32>
    %c0_110 = arith.constant 0 : index
    %c13_111 = arith.constant 13 : index
    %c3_112 = arith.constant 3 : index
    %189 = vector.load %arg7[%c0_110, %c13_111, %c3_112] : memref<2x22x22xf32, #tpu.memory_space<vmem>>, vector<1x1x16xf32>
    %190 = vector.shape_cast %189 : vector<1x1x16xf32> to vector<1x16xf32>
    %191 = vector.shape_cast %188 : vector<1x16xf32> to vector<1x1x16xf32>
    tpu.vector_store %arg7[%c0_110, %c13_111, %c3_112], %191 {strides = array<i32>} : memref<2x22x22xf32, #tpu.memory_space<vmem>>, vector<1x1x16xf32>,
    %c0_113 = arith.constant 0 : index
    %c160_114 = arith.constant 160 : index
    %192 = vector.load %arg6[%c0_113, %c160_114] : memref<1x256xf32, #tpu.memory_space<vmem>>, vector<1x16xf32>
    %c1_115 = arith.constant 1 : index
    %c13_116 = arith.constant 13 : index
    %c3_117 = arith.constant 3 : index
    %193 = vector.load %arg7[%c1_115, %c13_116, %c3_117] : memref<2x22x22xf32, #tpu.memory_space<vmem>>, vector<1x1x16xf32>
    %194 = vector.shape_cast %193 : vector<1x1x16xf32> to vector<1x16xf32>
    %195 = vector.shape_cast %192 : vector<1x16xf32> to vector<1x1x16xf32>
    tpu.vector_store %arg7[%c1_115, %c13_116, %c3_117], %195 {strides = array<i32>} : memref<2x22x22xf32, #tpu.memory_space<vmem>>, vector<1x1x16xf32>,
    %c0_118 = arith.constant 0 : index
    %c176 = arith.constant 176 : index
    %196 = vector.load %arg5[%c0_118, %c176] : memref<1x256xf32, #tpu.memory_space<vmem>>, vector<1x16xf32>
    %c0_119 = arith.constant 0 : index
    %c14_120 = arith.constant 14 : index
    %c3_121 = arith.constant 3 : index
    %197 = vector.load %arg7[%c0_119, %c14_120, %c3_121] : memref<2x22x22xf32, #tpu.memory_space<vmem>>, vector<1x1x16xf32>
    %198 = vector.shape_cast %197 : vector<1x1x16xf32> to vector<1x16xf32>
    %199 = vector.shape_cast %196 : vector<1x16xf32> to vector<1x1x16xf32>
    tpu.vector_store %arg7[%c0_119, %c14_120, %c3_121], %199 {strides = array<i32>} : memref<2x22x22xf32, #tpu.memory_space<vmem>>, vector<1x1x16xf32>,
    %c0_122 = arith.constant 0 : index
    %c176_123 = arith.constant 176 : index
    %200 = vector.load %arg6[%c0_122, %c176_123] : memref<1x256xf32, #tpu.memory_space<vmem>>, vector<1x16xf32>
    %c1_124 = arith.constant 1 : index
    %c14_125 = arith.constant 14 : index
    %c3_126 = arith.constant 3 : index
    %201 = vector.load %arg7[%c1_124, %c14_125, %c3_126] : memref<2x22x22xf32, #tpu.memory_space<vmem>>, vector<1x1x16xf32>
    %202 = vector.shape_cast %201 : vector<1x1x16xf32> to vector<1x16xf32>
    %203 = vector.shape_cast %200 : vector<1x16xf32> to vector<1x1x16xf32>
    tpu.vector_store %arg7[%c1_124, %c14_125, %c3_126], %203 {strides = array<i32>} : memref<2x22x22xf32, #tpu.memory_space<vmem>>, vector<1x1x16xf32>,
    %c0_127 = arith.constant 0 : index
    %c192 = arith.constant 192 : index
    %204 = vector.load %arg5[%c0_127, %c192] : memref<1x256xf32, #tpu.memory_space<vmem>>, vector<1x16xf32>
    %c0_128 = arith.constant 0 : index
    %c15_129 = arith.constant 15 : index
    %c3_130 = arith.constant 3 : index
    %205 = vector.load %arg7[%c0_128, %c15_129, %c3_130] : memref<2x22x22xf32, #tpu.memory_space<vmem>>, vector<1x1x16xf32>
    %206 = vector.shape_cast %205 : vector<1x1x16xf32> to vector<1x16xf32>
    %207 = vector.shape_cast %204 : vector<1x16xf32> to vector<1x1x16xf32>
    tpu.vector_store %arg7[%c0_128, %c15_129, %c3_130], %207 {strides = array<i32>} : memref<2x22x22xf32, #tpu.memory_space<vmem>>, vector<1x1x16xf32>,
    %c0_131 = arith.constant 0 : index
    %c192_132 = arith.constant 192 : index
    %208 = vector.load %arg6[%c0_131, %c192_132] : memref<1x256xf32, #tpu.memory_space<vmem>>, vector<1x16xf32>
    %c1_133 = arith.constant 1 : index
    %c15_134 = arith.constant 15 : index
    %c3_135 = arith.constant 3 : index
    %209 = vector.load %arg7[%c1_133, %c15_134, %c3_135] : memref<2x22x22xf32, #tpu.memory_space<vmem>>, vector<1x1x16xf32>
    %210 = vector.shape_cast %209 : vector<1x1x16xf32> to vector<1x16xf32>
    %211 = vector.shape_cast %208 : vector<1x16xf32> to vector<1x1x16xf32>
    tpu.vector_store %arg7[%c1_133, %c15_134, %c3_135], %211 {strides = array<i32>} : memref<2x22x22xf32, #tpu.memory_space<vmem>>, vector<1x1x16xf32>,
    %c0_136 = arith.constant 0 : index
    %c208 = arith.constant 208 : index
    %212 = vector.load %arg5[%c0_136, %c208] : memref<1x256xf32, #tpu.memory_space<vmem>>, vector<1x16xf32>
    %c0_137 = arith.constant 0 : index
    %c16_138 = arith.constant 16 : index
    %c3_139 = arith.constant 3 : index
    %213 = vector.load %arg7[%c0_137, %c16_138, %c3_139] : memref<2x22x22xf32, #tpu.memory_space<vmem>>, vector<1x1x16xf32>
    %214 = vector.shape_cast %213 : vector<1x1x16xf32> to vector<1x16xf32>
    %215 = vector.shape_cast %212 : vector<1x16xf32> to vector<1x1x16xf32>
    tpu.vector_store %arg7[%c0_137, %c16_138, %c3_139], %215 {strides = array<i32>} : memref<2x22x22xf32, #tpu.memory_space<vmem>>, vector<1x1x16xf32>,
    %c0_140 = arith.constant 0 : index
    %c208_141 = arith.constant 208 : index
    %216 = vector.load %arg6[%c0_140, %c208_141] : memref<1x256xf32, #tpu.memory_space<vmem>>, vector<1x16xf32>
    %c1_142 = arith.constant 1 : index
    %c16_143 = arith.constant 16 : index
    %c3_144 = arith.constant 3 : index
    %217 = vector.load %arg7[%c1_142, %c16_143, %c3_144] : memref<2x22x22xf32, #tpu.memory_space<vmem>>, vector<1x1x16xf32>
    %218 = vector.shape_cast %217 : vector<1x1x16xf32> to vector<1x16xf32>
    %219 = vector.shape_cast %216 : vector<1x16xf32> to vector<1x1x16xf32>
    tpu.vector_store %arg7[%c1_142, %c16_143, %c3_144], %219 {strides = array<i32>} : memref<2x22x22xf32, #tpu.memory_space<vmem>>, vector<1x1x16xf32>,
    %c0_145 = arith.constant 0 : index
    %c224 = arith.constant 224 : index
    %220 = vector.load %arg5[%c0_145, %c224] : memref<1x256xf32, #tpu.memory_space<vmem>>, vector<1x16xf32>
    %c0_146 = arith.constant 0 : index
    %c17_147 = arith.constant 17 : index
    %c3_148 = arith.constant 3 : index
    %221 = vector.load %arg7[%c0_146, %c17_147, %c3_148] : memref<2x22x22xf32, #tpu.memory_space<vmem>>, vector<1x1x16xf32>
    %222 = vector.shape_cast %221 : vector<1x1x16xf32> to vector<1x16xf32>
    %223 = vector.shape_cast %220 : vector<1x16xf32> to vector<1x1x16xf32>
    tpu.vector_store %arg7[%c0_146, %c17_147, %c3_148], %223 {strides = array<i32>} : memref<2x22x22xf32, #tpu.memory_space<vmem>>, vector<1x1x16xf32>,
    %c0_149 = arith.constant 0 : index
    %c224_150 = arith.constant 224 : index
    %224 = vector.load %arg6[%c0_149, %c224_150] : memref<1x256xf32, #tpu.memory_space<vmem>>, vector<1x16xf32>
    %c1_151 = arith.constant 1 : index
    %c17_152 = arith.constant 17 : index
    %c3_153 = arith.constant 3 : index
    %225 = vector.load %arg7[%c1_151, %c17_152, %c3_153] : memref<2x22x22xf32, #tpu.memory_space<vmem>>, vector<1x1x16xf32>
    %226 = vector.shape_cast %225 : vector<1x1x16xf32> to vector<1x16xf32>
    %227 = vector.shape_cast %224 : vector<1x16xf32> to vector<1x1x16xf32>
    tpu.vector_store %arg7[%c1_151, %c17_152, %c3_153], %227 {strides = array<i32>} : memref<2x22x22xf32, #tpu.memory_space<vmem>>, vector<1x1x16xf32>,
    %c0_154 = arith.constant 0 : index
    %c240 = arith.constant 240 : index
    %228 = vector.load %arg5[%c0_154, %c240] : memref<1x256xf32, #tpu.memory_space<vmem>>, vector<1x16xf32>
    %c0_155 = arith.constant 0 : index
    %c18_156 = arith.constant 18 : index
    %c3_157 = arith.constant 3 : index
    %229 = vector.load %arg7[%c0_155, %c18_156, %c3_157] : memref<2x22x22xf32, #tpu.memory_space<vmem>>, vector<1x1x16xf32>
    %230 = vector.shape_cast %229 : vector<1x1x16xf32> to vector<1x16xf32>
    %231 = vector.shape_cast %228 : vector<1x16xf32> to vector<1x1x16xf32>
    tpu.vector_store %arg7[%c0_155, %c18_156, %c3_157], %231 {strides = array<i32>} : memref<2x22x22xf32, #tpu.memory_space<vmem>>, vector<1x1x16xf32>,
    %c0_158 = arith.constant 0 : index
    %c240_159 = arith.constant 240 : index
    %232 = vector.load %arg6[%c0_158, %c240_159] : memref<1x256xf32, #tpu.memory_space<vmem>>, vector<1x16xf32>
    %c1_160 = arith.constant 1 : index
    %c18_161 = arith.constant 18 : index
    %c3_162 = arith.constant 3 : index
    %233 = vector.load %arg7[%c1_160, %c18_161, %c3_162] : memref<2x22x22xf32, #tpu.memory_space<vmem>>, vector<1x1x16xf32>
    %234 = vector.shape_cast %233 : vector<1x1x16xf32> to vector<1x16xf32>
    %235 = vector.shape_cast %232 : vector<1x16xf32> to vector<1x1x16xf32>
    tpu.vector_store %arg7[%c1_160, %c18_161, %c3_162], %235 {strides = array<i32>} : memref<2x22x22xf32, #tpu.memory_space<vmem>>, vector<1x1x16xf32>,
    %c0_163 = arith.constant 0 : index
    %c0_164 = arith.constant 0 : index
    %c0_165 = arith.constant 0 : index
    %236 = vector.load %arg7[%c0_163, %c0_164, %c0_165] : memref<2x22x22xf32, #tpu.memory_space<vmem>>, vector<1x22x16xf32>
    %237 = vector.shape_cast %236 : vector<1x22x16xf32> to vector<22x16xf32>
    %c0_166 = arith.constant 0 : index
    %c0_167 = arith.constant 0 : index
    %c0_168 = arith.constant 0 : index
    %c0_169 = arith.constant 0 : index
    %238 = vector.load %arg8[%c0_166, %c0_167, %c0_168, %c0_169] : memref<2x7x22x16xf32, #tpu.memory_space<vmem>>, vector<1x1x22x16xf32>
    %239 = vector.shape_cast %238 : vector<1x1x22x16xf32> to vector<22x16xf32>
    %240 = vector.shape_cast %237 : vector<22x16xf32> to vector<1x1x22x16xf32>
    tpu.vector_store %arg8[%c0_166, %c0_167, %c0_168, %c0_169], %240 {strides = array<i32>} : memref<2x7x22x16xf32, #tpu.memory_space<vmem>>, vector<1x1x22x16xf32>,
    %c0_170 = arith.constant 0 : index
    %c0_171 = arith.constant 0 : index
    %c1_172 = arith.constant 1 : index
    %241 = vector.load %arg7[%c0_170, %c0_171, %c1_172] : memref<2x22x22xf32, #tpu.memory_space<vmem>>, vector<1x22x16xf32>
    %242 = vector.shape_cast %241 : vector<1x22x16xf32> to vector<22x16xf32>
    %c0_173 = arith.constant 0 : index
    %c1_174 = arith.constant 1 : index
    %c0_175 = arith.constant 0 : index
    %c0_176 = arith.constant 0 : index
    %243 = vector.load %arg8[%c0_173, %c1_174, %c0_175, %c0_176] : memref<2x7x22x16xf32, #tpu.memory_space<vmem>>, vector<1x1x22x16xf32>
    %244 = vector.shape_cast %243 : vector<1x1x22x16xf32> to vector<22x16xf32>
    %245 = vector.shape_cast %242 : vector<22x16xf32> to vector<1x1x22x16xf32>
    tpu.vector_store %arg8[%c0_173, %c1_174, %c0_175, %c0_176], %245 {strides = array<i32>} : memref<2x7x22x16xf32, #tpu.memory_space<vmem>>, vector<1x1x22x16xf32>,
    %c0_177 = arith.constant 0 : index
    %c0_178 = arith.constant 0 : index
    %c2_179 = arith.constant 2 : index
    %246 = vector.load %arg7[%c0_177, %c0_178, %c2_179] : memref<2x22x22xf32, #tpu.memory_space<vmem>>, vector<1x22x16xf32>
    %247 = vector.shape_cast %246 : vector<1x22x16xf32> to vector<22x16xf32>
    %c0_180 = arith.constant 0 : index
    %c2_181 = arith.constant 2 : index
    %c0_182 = arith.constant 0 : index
    %c0_183 = arith.constant 0 : index
    %248 = vector.load %arg8[%c0_180, %c2_181, %c0_182, %c0_183] : memref<2x7x22x16xf32, #tpu.memory_space<vmem>>, vector<1x1x22x16xf32>
    %249 = vector.shape_cast %248 : vector<1x1x22x16xf32> to vector<22x16xf32>
    %250 = vector.shape_cast %247 : vector<22x16xf32> to vector<1x1x22x16xf32>
    tpu.vector_store %arg8[%c0_180, %c2_181, %c0_182, %c0_183], %250 {strides = array<i32>} : memref<2x7x22x16xf32, #tpu.memory_space<vmem>>, vector<1x1x22x16xf32>,
    %c0_184 = arith.constant 0 : index
    %c0_185 = arith.constant 0 : index
    %c3_186 = arith.constant 3 : index
    %251 = vector.load %arg7[%c0_184, %c0_185, %c3_186] : memref<2x22x22xf32, #tpu.memory_space<vmem>>, vector<1x22x16xf32>
    %252 = vector.shape_cast %251 : vector<1x22x16xf32> to vector<22x16xf32>
    %c0_187 = arith.constant 0 : index
    %c3_188 = arith.constant 3 : index
    %c0_189 = arith.constant 0 : index
    %c0_190 = arith.constant 0 : index
    %253 = vector.load %arg8[%c0_187, %c3_188, %c0_189, %c0_190] : memref<2x7x22x16xf32, #tpu.memory_space<vmem>>, vector<1x1x22x16xf32>
    %254 = vector.shape_cast %253 : vector<1x1x22x16xf32> to vector<22x16xf32>
    %255 = vector.shape_cast %252 : vector<22x16xf32> to vector<1x1x22x16xf32>
    tpu.vector_store %arg8[%c0_187, %c3_188, %c0_189, %c0_190], %255 {strides = array<i32>} : memref<2x7x22x16xf32, #tpu.memory_space<vmem>>, vector<1x1x22x16xf32>,
    %c0_191 = arith.constant 0 : index
    %c0_192 = arith.constant 0 : index
    %c4_193 = arith.constant 4 : index
    %256 = vector.load %arg7[%c0_191, %c0_192, %c4_193] : memref<2x22x22xf32, #tpu.memory_space<vmem>>, vector<1x22x16xf32>
    %257 = vector.shape_cast %256 : vector<1x22x16xf32> to vector<22x16xf32>
    %c0_194 = arith.constant 0 : index
    %c4_195 = arith.constant 4 : index
    %c0_196 = arith.constant 0 : index
    %c0_197 = arith.constant 0 : index
    %258 = vector.load %arg8[%c0_194, %c4_195, %c0_196, %c0_197] : memref<2x7x22x16xf32, #tpu.memory_space<vmem>>, vector<1x1x22x16xf32>
    %259 = vector.shape_cast %258 : vector<1x1x22x16xf32> to vector<22x16xf32>
    %260 = vector.shape_cast %257 : vector<22x16xf32> to vector<1x1x22x16xf32>
    tpu.vector_store %arg8[%c0_194, %c4_195, %c0_196, %c0_197], %260 {strides = array<i32>} : memref<2x7x22x16xf32, #tpu.memory_space<vmem>>, vector<1x1x22x16xf32>,
    %c0_198 = arith.constant 0 : index
    %c0_199 = arith.constant 0 : index
    %c5_200 = arith.constant 5 : index
    %261 = vector.load %arg7[%c0_198, %c0_199, %c5_200] : memref<2x22x22xf32, #tpu.memory_space<vmem>>, vector<1x22x16xf32>
    %262 = vector.shape_cast %261 : vector<1x22x16xf32> to vector<22x16xf32>
    %c0_201 = arith.constant 0 : index
    %c5_202 = arith.constant 5 : index
    %c0_203 = arith.constant 0 : index
    %c0_204 = arith.constant 0 : index
    %263 = vector.load %arg8[%c0_201, %c5_202, %c0_203, %c0_204] : memref<2x7x22x16xf32, #tpu.memory_space<vmem>>, vector<1x1x22x16xf32>
    %264 = vector.shape_cast %263 : vector<1x1x22x16xf32> to vector<22x16xf32>
    %265 = vector.shape_cast %262 : vector<22x16xf32> to vector<1x1x22x16xf32>
    tpu.vector_store %arg8[%c0_201, %c5_202, %c0_203, %c0_204], %265 {strides = array<i32>} : memref<2x7x22x16xf32, #tpu.memory_space<vmem>>, vector<1x1x22x16xf32>,
    %c0_205 = arith.constant 0 : index
    %c0_206 = arith.constant 0 : index
    %c6_207 = arith.constant 6 : index
    %266 = vector.load %arg7[%c0_205, %c0_206, %c6_207] : memref<2x22x22xf32, #tpu.memory_space<vmem>>, vector<1x22x16xf32>
    %267 = vector.shape_cast %266 : vector<1x22x16xf32> to vector<22x16xf32>
    %c0_208 = arith.constant 0 : index
    %c6_209 = arith.constant 6 : index
    %c0_210 = arith.constant 0 : index
    %c0_211 = arith.constant 0 : index
    %268 = vector.load %arg8[%c0_208, %c6_209, %c0_210, %c0_211] : memref<2x7x22x16xf32, #tpu.memory_space<vmem>>, vector<1x1x22x16xf32>
    %269 = vector.shape_cast %268 : vector<1x1x22x16xf32> to vector<22x16xf32>
    %270 = vector.shape_cast %267 : vector<22x16xf32> to vector<1x1x22x16xf32>
    tpu.vector_store %arg8[%c0_208, %c6_209, %c0_210, %c0_211], %270 {strides = array<i32>} : memref<2x7x22x16xf32, #tpu.memory_space<vmem>>, vector<1x1x22x16xf32>,
    %c1_212 = arith.constant 1 : index
    %c0_213 = arith.constant 0 : index
    %c0_214 = arith.constant 0 : index
    %271 = vector.load %arg7[%c1_212, %c0_213, %c0_214] : memref<2x22x22xf32, #tpu.memory_space<vmem>>, vector<1x22x16xf32>
    %272 = vector.shape_cast %271 : vector<1x22x16xf32> to vector<22x16xf32>
    %c1_215 = arith.constant 1 : index
    %c0_216 = arith.constant 0 : index
    %c0_217 = arith.constant 0 : index
    %c0_218 = arith.constant 0 : index
    %273 = vector.load %arg8[%c1_215, %c0_216, %c0_217, %c0_218] : memref<2x7x22x16xf32, #tpu.memory_space<vmem>>, vector<1x1x22x16xf32>
    %274 = vector.shape_cast %273 : vector<1x1x22x16xf32> to vector<22x16xf32>
    %275 = vector.shape_cast %272 : vector<22x16xf32> to vector<1x1x22x16xf32>
    tpu.vector_store %arg8[%c1_215, %c0_216, %c0_217, %c0_218], %275 {strides = array<i32>} : memref<2x7x22x16xf32, #tpu.memory_space<vmem>>, vector<1x1x22x16xf32>,
    %c1_219 = arith.constant 1 : index
    %c0_220 = arith.constant 0 : index
    %c1_221 = arith.constant 1 : index
    %276 = vector.load %arg7[%c1_219, %c0_220, %c1_221] : memref<2x22x22xf32, #tpu.memory_space<vmem>>, vector<1x22x16xf32>
    %277 = vector.shape_cast %276 : vector<1x22x16xf32> to vector<22x16xf32>
    %c1_222 = arith.constant 1 : index
    %c1_223 = arith.constant 1 : index
    %c0_224 = arith.constant 0 : index
    %c0_225 = arith.constant 0 : index
    %278 = vector.load %arg8[%c1_222, %c1_223, %c0_224, %c0_225] : memref<2x7x22x16xf32, #tpu.memory_space<vmem>>, vector<1x1x22x16xf32>
    %279 = vector.shape_cast %278 : vector<1x1x22x16xf32> to vector<22x16xf32>
    %280 = vector.shape_cast %277 : vector<22x16xf32> to vector<1x1x22x16xf32>
    tpu.vector_store %arg8[%c1_222, %c1_223, %c0_224, %c0_225], %280 {strides = array<i32>} : memref<2x7x22x16xf32, #tpu.memory_space<vmem>>, vector<1x1x22x16xf32>,
    %c1_226 = arith.constant 1 : index
    %c0_227 = arith.constant 0 : index
    %c2_228 = arith.constant 2 : index
    %281 = vector.load %arg7[%c1_226, %c0_227, %c2_228] : memref<2x22x22xf32, #tpu.memory_space<vmem>>, vector<1x22x16xf32>
    %282 = vector.shape_cast %281 : vector<1x22x16xf32> to vector<22x16xf32>
    %c1_229 = arith.constant 1 : index
    %c2_230 = arith.constant 2 : index
    %c0_231 = arith.constant 0 : index
    %c0_232 = arith.constant 0 : index
    %283 = vector.load %arg8[%c1_229, %c2_230, %c0_231, %c0_232] : memref<2x7x22x16xf32, #tpu.memory_space<vmem>>, vector<1x1x22x16xf32>
    %284 = vector.shape_cast %283 : vector<1x1x22x16xf32> to vector<22x16xf32>
    %285 = vector.shape_cast %282 : vector<22x16xf32> to vector<1x1x22x16xf32>
    tpu.vector_store %arg8[%c1_229, %c2_230, %c0_231, %c0_232], %285 {strides = array<i32>} : memref<2x7x22x16xf32, #tpu.memory_space<vmem>>, vector<1x1x22x16xf32>,
    %c1_233 = arith.constant 1 : index
    %c0_234 = arith.constant 0 : index
    %c3_235 = arith.constant 3 : index
    %286 = vector.load %arg7[%c1_233, %c0_234, %c3_235] : memref<2x22x22xf32, #tpu.memory_space<vmem>>, vector<1x22x16xf32>
    %287 = vector.shape_cast %286 : vector<1x22x16xf32> to vector<22x16xf32>
    %c1_236 = arith.constant 1 : index
    %c3_237 = arith.constant 3 : index
    %c0_238 = arith.constant 0 : index
    %c0_239 = arith.constant 0 : index
    %288 = vector.load %arg8[%c1_236, %c3_237, %c0_238, %c0_239] : memref<2x7x22x16xf32, #tpu.memory_space<vmem>>, vector<1x1x22x16xf32>
    %289 = vector.shape_cast %288 : vector<1x1x22x16xf32> to vector<22x16xf32>
    %290 = vector.shape_cast %287 : vector<22x16xf32> to vector<1x1x22x16xf32>
    tpu.vector_store %arg8[%c1_236, %c3_237, %c0_238, %c0_239], %290 {strides = array<i32>} : memref<2x7x22x16xf32, #tpu.memory_space<vmem>>, vector<1x1x22x16xf32>,
    %c1_240 = arith.constant 1 : index
    %c0_241 = arith.constant 0 : index
    %c4_242 = arith.constant 4 : index
    %291 = vector.load %arg7[%c1_240, %c0_241, %c4_242] : memref<2x22x22xf32, #tpu.memory_space<vmem>>, vector<1x22x16xf32>
    %292 = vector.shape_cast %291 : vector<1x22x16xf32> to vector<22x16xf32>
    %c1_243 = arith.constant 1 : index
    %c4_244 = arith.constant 4 : index
    %c0_245 = arith.constant 0 : index
    %c0_246 = arith.constant 0 : index
    %293 = vector.load %arg8[%c1_243, %c4_244, %c0_245, %c0_246] : memref<2x7x22x16xf32, #tpu.memory_space<vmem>>, vector<1x1x22x16xf32>
    %294 = vector.shape_cast %293 : vector<1x1x22x16xf32> to vector<22x16xf32>
    %295 = vector.shape_cast %292 : vector<22x16xf32> to vector<1x1x22x16xf32>
    tpu.vector_store %arg8[%c1_243, %c4_244, %c0_245, %c0_246], %295 {strides = array<i32>} : memref<2x7x22x16xf32, #tpu.memory_space<vmem>>, vector<1x1x22x16xf32>,
    %c1_247 = arith.constant 1 : index
    %c0_248 = arith.constant 0 : index
    %c5_249 = arith.constant 5 : index
    %296 = vector.load %arg7[%c1_247, %c0_248, %c5_249] : memref<2x22x22xf32, #tpu.memory_space<vmem>>, vector<1x22x16xf32>
    %297 = vector.shape_cast %296 : vector<1x22x16xf32> to vector<22x16xf32>
    %c1_250 = arith.constant 1 : index
    %c5_251 = arith.constant 5 : index
    %c0_252 = arith.constant 0 : index
    %c0_253 = arith.constant 0 : index
    %298 = vector.load %arg8[%c1_250, %c5_251, %c0_252, %c0_253] : memref<2x7x22x16xf32, #tpu.memory_space<vmem>>, vector<1x1x22x16xf32>
    %299 = vector.shape_cast %298 : vector<1x1x22x16xf32> to vector<22x16xf32>
    %300 = vector.shape_cast %297 : vector<22x16xf32> to vector<1x1x22x16xf32>
    tpu.vector_store %arg8[%c1_250, %c5_251, %c0_252, %c0_253], %300 {strides = array<i32>} : memref<2x7x22x16xf32, #tpu.memory_space<vmem>>, vector<1x1x22x16xf32>,
    %c1_254 = arith.constant 1 : index
    %c0_255 = arith.constant 0 : index
    %c6_256 = arith.constant 6 : index
    %301 = vector.load %arg7[%c1_254, %c0_255, %c6_256] : memref<2x22x22xf32, #tpu.memory_space<vmem>>, vector<1x22x16xf32>
    %302 = vector.shape_cast %301 : vector<1x22x16xf32> to vector<22x16xf32>
    %c1_257 = arith.constant 1 : index
    %c6_258 = arith.constant 6 : index
    %c0_259 = arith.constant 0 : index
    %c0_260 = arith.constant 0 : index
    %303 = vector.load %arg8[%c1_257, %c6_258, %c0_259, %c0_260] : memref<2x7x22x16xf32, #tpu.memory_space<vmem>>, vector<1x1x22x16xf32>
    %304 = vector.shape_cast %303 : vector<1x1x22x16xf32> to vector<22x16xf32>
    %305 = vector.shape_cast %302 : vector<22x16xf32> to vector<1x1x22x16xf32>
    tpu.vector_store %arg8[%c1_257, %c6_258, %c0_259, %c0_260], %305 {strides = array<i32>} : memref<2x7x22x16xf32, #tpu.memory_space<vmem>>, vector<1x1x22x16xf32>,
    %c0_261 = arith.constant 0 : index
    %c0_262 = arith.constant 0 : index
    %c0_263 = arith.constant 0 : index
    %c0_264 = arith.constant 0 : index
    %306 = vector.load %arg8[%c0_261, %c0_262, %c0_263, %c0_264] : memref<2x7x22x16xf32, #tpu.memory_space<vmem>>, vector<1x1x16x16xf32>
    %307 = vector.shape_cast %306 : vector<1x1x16x16xf32> to vector<16x16xf32>
    %308 = vector.broadcast %10 : f32 to vector<16x16xf32>
    %309 = arith.mulf %308, %307 : vector<16x16xf32>
    %c0_265 = arith.constant 0 : index
    %c1_266 = arith.constant 1 : index
    %c0_267 = arith.constant 0 : index
    %c0_268 = arith.constant 0 : index
    %310 = vector.load %arg8[%c0_265, %c1_266, %c0_267, %c0_268] : memref<2x7x22x16xf32, #tpu.memory_space<vmem>>, vector<1x1x16x16xf32>
    %311 = vector.shape_cast %310 : vector<1x1x16x16xf32> to vector<16x16xf32>
    %312 = vector.broadcast %11 : f32 to vector<16x16xf32>
    %313 = arith.mulf %312, %311 : vector<16x16xf32>
    %c0_269 = arith.constant 0 : index
    %c2_270 = arith.constant 2 : index
    %c0_271 = arith.constant 0 : index
    %c0_272 = arith.constant 0 : index
    %314 = vector.load %arg8[%c0_269, %c2_270, %c0_271, %c0_272] : memref<2x7x22x16xf32, #tpu.memory_space<vmem>>, vector<1x1x16x16xf32>
    %315 = vector.shape_cast %314 : vector<1x1x16x16xf32> to vector<16x16xf32>
    %316 = vector.broadcast %12 : f32 to vector<16x16xf32>
    %317 = arith.mulf %316, %315 : vector<16x16xf32>
    %c0_273 = arith.constant 0 : index
    %c3_274 = arith.constant 3 : index
    %c0_275 = arith.constant 0 : index
    %c0_276 = arith.constant 0 : index
    %318 = vector.load %arg8[%c0_273, %c3_274, %c0_275, %c0_276] : memref<2x7x22x16xf32, #tpu.memory_space<vmem>>, vector<1x1x16x16xf32>
    %319 = vector.shape_cast %318 : vector<1x1x16x16xf32> to vector<16x16xf32>
    %320 = vector.broadcast %13 : f32 to vector<16x16xf32>
    %321 = arith.mulf %320, %319 : vector<16x16xf32>
    %c0_277 = arith.constant 0 : index
    %c4_278 = arith.constant 4 : index
    %c0_279 = arith.constant 0 : index
    %c0_280 = arith.constant 0 : index
    %322 = vector.load %arg8[%c0_277, %c4_278, %c0_279, %c0_280] : memref<2x7x22x16xf32, #tpu.memory_space<vmem>>, vector<1x1x16x16xf32>
    %323 = vector.shape_cast %322 : vector<1x1x16x16xf32> to vector<16x16xf32>
    %324 = vector.broadcast %14 : f32 to vector<16x16xf32>
    %325 = arith.mulf %324, %323 : vector<16x16xf32>
    %326 = arith.addf %309, %325 : vector<16x16xf32>
    %c0_281 = arith.constant 0 : index
    %c5_282 = arith.constant 5 : index
    %c0_283 = arith.constant 0 : index
    %c0_284 = arith.constant 0 : index
    %327 = vector.load %arg8[%c0_281, %c5_282, %c0_283, %c0_284] : memref<2x7x22x16xf32, #tpu.memory_space<vmem>>, vector<1x1x16x16xf32>
    %328 = vector.shape_cast %327 : vector<1x1x16x16xf32> to vector<16x16xf32>
    %329 = vector.broadcast %15 : f32 to vector<16x16xf32>
    %330 = arith.mulf %329, %328 : vector<16x16xf32>
    %331 = arith.addf %313, %330 : vector<16x16xf32>
    %c0_285 = arith.constant 0 : index
    %c6_286 = arith.constant 6 : index
    %c0_287 = arith.constant 0 : index
    %c0_288 = arith.constant 0 : index
    %332 = vector.load %arg8[%c0_285, %c6_286, %c0_287, %c0_288] : memref<2x7x22x16xf32, #tpu.memory_space<vmem>>, vector<1x1x16x16xf32>
    %333 = vector.shape_cast %332 : vector<1x1x16x16xf32> to vector<16x16xf32>
    %334 = vector.broadcast %16 : f32 to vector<16x16xf32>
    %335 = arith.mulf %334, %333 : vector<16x16xf32>
    %336 = arith.addf %317, %335 : vector<16x16xf32>
    %c0_289 = arith.constant 0 : index
    %c0_290 = arith.constant 0 : index
    %c1_291 = arith.constant 1 : index
    %c0_292 = arith.constant 0 : index
    %337 = vector.load %arg8[%c0_289, %c0_290, %c1_291, %c0_292] : memref<2x7x22x16xf32, #tpu.memory_space<vmem>>, vector<1x1x16x16xf32>
    %338 = vector.shape_cast %337 : vector<1x1x16x16xf32> to vector<16x16xf32>
    %339 = vector.broadcast %17 : f32 to vector<16x16xf32>
    %340 = arith.mulf %339, %338 : vector<16x16xf32>
    %341 = arith.addf %321, %340 : vector<16x16xf32>
    %c0_293 = arith.constant 0 : index
    %c1_294 = arith.constant 1 : index
    %c1_295 = arith.constant 1 : index
    %c0_296 = arith.constant 0 : index
    %342 = vector.load %arg8[%c0_293, %c1_294, %c1_295, %c0_296] : memref<2x7x22x16xf32, #tpu.memory_space<vmem>>, vector<1x1x16x16xf32>
    %343 = vector.shape_cast %342 : vector<1x1x16x16xf32> to vector<16x16xf32>
    %344 = vector.broadcast %18 : f32 to vector<16x16xf32>
    %345 = arith.mulf %344, %343 : vector<16x16xf32>
    %346 = arith.addf %326, %345 : vector<16x16xf32>
    %c0_297 = arith.constant 0 : index
    %c2_298 = arith.constant 2 : index
    %c1_299 = arith.constant 1 : index
    %c0_300 = arith.constant 0 : index
    %347 = vector.load %arg8[%c0_297, %c2_298, %c1_299, %c0_300] : memref<2x7x22x16xf32, #tpu.memory_space<vmem>>, vector<1x1x16x16xf32>
    %348 = vector.shape_cast %347 : vector<1x1x16x16xf32> to vector<16x16xf32>
    %349 = vector.broadcast %19 : f32 to vector<16x16xf32>
    %350 = arith.mulf %349, %348 : vector<16x16xf32>
    %351 = arith.addf %331, %350 : vector<16x16xf32>
    %c0_301 = arith.constant 0 : index
    %c3_302 = arith.constant 3 : index
    %c1_303 = arith.constant 1 : index
    %c0_304 = arith.constant 0 : index
    %352 = vector.load %arg8[%c0_301, %c3_302, %c1_303, %c0_304] : memref<2x7x22x16xf32, #tpu.memory_space<vmem>>, vector<1x1x16x16xf32>
    %353 = vector.shape_cast %352 : vector<1x1x16x16xf32> to vector<16x16xf32>
    %354 = vector.broadcast %20 : f32 to vector<16x16xf32>
    %355 = arith.mulf %354, %353 : vector<16x16xf32>
    %356 = arith.addf %336, %355 : vector<16x16xf32>
    %c0_305 = arith.constant 0 : index
    %c4_306 = arith.constant 4 : index
    %c1_307 = arith.constant 1 : index
    %c0_308 = arith.constant 0 : index
    %357 = vector.load %arg8[%c0_305, %c4_306, %c1_307, %c0_308] : memref<2x7x22x16xf32, #tpu.memory_space<vmem>>, vector<1x1x16x16xf32>
    %358 = vector.shape_cast %357 : vector<1x1x16x16xf32> to vector<16x16xf32>
    %359 = vector.broadcast %21 : f32 to vector<16x16xf32>
    %360 = arith.mulf %359, %358 : vector<16x16xf32>
    %361 = arith.addf %341, %360 : vector<16x16xf32>
    %c0_309 = arith.constant 0 : index
    %c5_310 = arith.constant 5 : index
    %c1_311 = arith.constant 1 : index
    %c0_312 = arith.constant 0 : index
    %362 = vector.load %arg8[%c0_309, %c5_310, %c1_311, %c0_312] : memref<2x7x22x16xf32, #tpu.memory_space<vmem>>, vector<1x1x16x16xf32>
    %363 = vector.shape_cast %362 : vector<1x1x16x16xf32> to vector<16x16xf32>
    %364 = vector.broadcast %22 : f32 to vector<16x16xf32>
    %365 = arith.mulf %364, %363 : vector<16x16xf32>
    %366 = arith.addf %346, %365 : vector<16x16xf32>
    %c0_313 = arith.constant 0 : index
    %c6_314 = arith.constant 6 : index
    %c1_315 = arith.constant 1 : index
    %c0_316 = arith.constant 0 : index
    %367 = vector.load %arg8[%c0_313, %c6_314, %c1_315, %c0_316] : memref<2x7x22x16xf32, #tpu.memory_space<vmem>>, vector<1x1x16x16xf32>
    %368 = vector.shape_cast %367 : vector<1x1x16x16xf32> to vector<16x16xf32>
    %369 = vector.broadcast %23 : f32 to vector<16x16xf32>
    %370 = arith.mulf %369, %368 : vector<16x16xf32>
    %371 = arith.addf %351, %370 : vector<16x16xf32>
    %c0_317 = arith.constant 0 : index
    %c0_318 = arith.constant 0 : index
    %c2_319 = arith.constant 2 : index
    %c0_320 = arith.constant 0 : index
    %372 = vector.load %arg8[%c0_317, %c0_318, %c2_319, %c0_320] : memref<2x7x22x16xf32, #tpu.memory_space<vmem>>, vector<1x1x16x16xf32>
    %373 = vector.shape_cast %372 : vector<1x1x16x16xf32> to vector<16x16xf32>
    %374 = vector.broadcast %24 : f32 to vector<16x16xf32>
    %375 = arith.mulf %374, %373 : vector<16x16xf32>
    %376 = arith.addf %356, %375 : vector<16x16xf32>
    %c0_321 = arith.constant 0 : index
    %c1_322 = arith.constant 1 : index
    %c2_323 = arith.constant 2 : index
    %c0_324 = arith.constant 0 : index
    %377 = vector.load %arg8[%c0_321, %c1_322, %c2_323, %c0_324] : memref<2x7x22x16xf32, #tpu.memory_space<vmem>>, vector<1x1x16x16xf32>
    %378 = vector.shape_cast %377 : vector<1x1x16x16xf32> to vector<16x16xf32>
    %379 = vector.broadcast %25 : f32 to vector<16x16xf32>
    %380 = arith.mulf %379, %378 : vector<16x16xf32>
    %381 = arith.addf %361, %380 : vector<16x16xf32>
    %c0_325 = arith.constant 0 : index
    %c2_326 = arith.constant 2 : index
    %c2_327 = arith.constant 2 : index
    %c0_328 = arith.constant 0 : index
    %382 = vector.load %arg8[%c0_325, %c2_326, %c2_327, %c0_328] : memref<2x7x22x16xf32, #tpu.memory_space<vmem>>, vector<1x1x16x16xf32>
    %383 = vector.shape_cast %382 : vector<1x1x16x16xf32> to vector<16x16xf32>
    %384 = vector.broadcast %26 : f32 to vector<16x16xf32>
    %385 = arith.mulf %384, %383 : vector<16x16xf32>
    %386 = arith.addf %366, %385 : vector<16x16xf32>
    %c0_329 = arith.constant 0 : index
    %c3_330 = arith.constant 3 : index
    %c2_331 = arith.constant 2 : index
    %c0_332 = arith.constant 0 : index
    %387 = vector.load %arg8[%c0_329, %c3_330, %c2_331, %c0_332] : memref<2x7x22x16xf32, #tpu.memory_space<vmem>>, vector<1x1x16x16xf32>
    %388 = vector.shape_cast %387 : vector<1x1x16x16xf32> to vector<16x16xf32>
    %389 = vector.broadcast %27 : f32 to vector<16x16xf32>
    %390 = arith.mulf %389, %388 : vector<16x16xf32>
    %391 = arith.addf %371, %390 : vector<16x16xf32>
    %c0_333 = arith.constant 0 : index
    %c4_334 = arith.constant 4 : index
    %c2_335 = arith.constant 2 : index
    %c0_336 = arith.constant 0 : index
    %392 = vector.load %arg8[%c0_333, %c4_334, %c2_335, %c0_336] : memref<2x7x22x16xf32, #tpu.memory_space<vmem>>, vector<1x1x16x16xf32>
    %393 = vector.shape_cast %392 : vector<1x1x16x16xf32> to vector<16x16xf32>
    %394 = vector.broadcast %28 : f32 to vector<16x16xf32>
    %395 = arith.mulf %394, %393 : vector<16x16xf32>
    %396 = arith.addf %376, %395 : vector<16x16xf32>
    %c0_337 = arith.constant 0 : index
    %c5_338 = arith.constant 5 : index
    %c2_339 = arith.constant 2 : index
    %c0_340 = arith.constant 0 : index
    %397 = vector.load %arg8[%c0_337, %c5_338, %c2_339, %c0_340] : memref<2x7x22x16xf32, #tpu.memory_space<vmem>>, vector<1x1x16x16xf32>
    %398 = vector.shape_cast %397 : vector<1x1x16x16xf32> to vector<16x16xf32>
    %399 = vector.broadcast %29 : f32 to vector<16x16xf32>
    %400 = arith.mulf %399, %398 : vector<16x16xf32>
    %401 = arith.addf %381, %400 : vector<16x16xf32>
    %c0_341 = arith.constant 0 : index
    %c6_342 = arith.constant 6 : index
    %c2_343 = arith.constant 2 : index
    %c0_344 = arith.constant 0 : index
    %402 = vector.load %arg8[%c0_341, %c6_342, %c2_343, %c0_344] : memref<2x7x22x16xf32, #tpu.memory_space<vmem>>, vector<1x1x16x16xf32>
    %403 = vector.shape_cast %402 : vector<1x1x16x16xf32> to vector<16x16xf32>
    %404 = vector.broadcast %30 : f32 to vector<16x16xf32>
    %405 = arith.mulf %404, %403 : vector<16x16xf32>
    %406 = arith.addf %386, %405 : vector<16x16xf32>
    %c0_345 = arith.constant 0 : index
    %c0_346 = arith.constant 0 : index
    %c3_347 = arith.constant 3 : index
    %c0_348 = arith.constant 0 : index
    %407 = vector.load %arg8[%c0_345, %c0_346, %c3_347, %c0_348] : memref<2x7x22x16xf32, #tpu.memory_space<vmem>>, vector<1x1x16x16xf32>
    %408 = vector.shape_cast %407 : vector<1x1x16x16xf32> to vector<16x16xf32>
    %409 = vector.broadcast %31 : f32 to vector<16x16xf32>
    %410 = arith.mulf %409, %408 : vector<16x16xf32>
    %411 = arith.addf %391, %410 : vector<16x16xf32>
    %c0_349 = arith.constant 0 : index
    %c1_350 = arith.constant 1 : index
    %c3_351 = arith.constant 3 : index
    %c0_352 = arith.constant 0 : index
    %412 = vector.load %arg8[%c0_349, %c1_350, %c3_351, %c0_352] : memref<2x7x22x16xf32, #tpu.memory_space<vmem>>, vector<1x1x16x16xf32>
    %413 = vector.shape_cast %412 : vector<1x1x16x16xf32> to vector<16x16xf32>
    %414 = vector.broadcast %32 : f32 to vector<16x16xf32>
    %415 = arith.mulf %414, %413 : vector<16x16xf32>
    %416 = arith.addf %396, %415 : vector<16x16xf32>
    %c0_353 = arith.constant 0 : index
    %c2_354 = arith.constant 2 : index
    %c3_355 = arith.constant 3 : index
    %c0_356 = arith.constant 0 : index
    %417 = vector.load %arg8[%c0_353, %c2_354, %c3_355, %c0_356] : memref<2x7x22x16xf32, #tpu.memory_space<vmem>>, vector<1x1x16x16xf32>
    %418 = vector.shape_cast %417 : vector<1x1x16x16xf32> to vector<16x16xf32>
    %419 = vector.broadcast %33 : f32 to vector<16x16xf32>
    %420 = arith.mulf %419, %418 : vector<16x16xf32>
    %421 = arith.addf %401, %420 : vector<16x16xf32>
    %c0_357 = arith.constant 0 : index
    %c3_358 = arith.constant 3 : index
    %c3_359 = arith.constant 3 : index
    %c0_360 = arith.constant 0 : index
    %422 = vector.load %arg8[%c0_357, %c3_358, %c3_359, %c0_360] : memref<2x7x22x16xf32, #tpu.memory_space<vmem>>, vector<1x1x16x16xf32>
    %423 = vector.shape_cast %422 : vector<1x1x16x16xf32> to vector<16x16xf32>
    %424 = vector.broadcast %34 : f32 to vector<16x16xf32>
    %425 = arith.mulf %424, %423 : vector<16x16xf32>
    %426 = arith.addf %406, %425 : vector<16x16xf32>
    %c0_361 = arith.constant 0 : index
    %c4_362 = arith.constant 4 : index
    %c3_363 = arith.constant 3 : index
    %c0_364 = arith.constant 0 : index
    %427 = vector.load %arg8[%c0_361, %c4_362, %c3_363, %c0_364] : memref<2x7x22x16xf32, #tpu.memory_space<vmem>>, vector<1x1x16x16xf32>
    %428 = vector.shape_cast %427 : vector<1x1x16x16xf32> to vector<16x16xf32>
    %429 = vector.broadcast %35 : f32 to vector<16x16xf32>
    %430 = arith.mulf %429, %428 : vector<16x16xf32>
    %431 = arith.addf %411, %430 : vector<16x16xf32>
    %c0_365 = arith.constant 0 : index
    %c5_366 = arith.constant 5 : index
    %c3_367 = arith.constant 3 : index
    %c0_368 = arith.constant 0 : index
    %432 = vector.load %arg8[%c0_365, %c5_366, %c3_367, %c0_368] : memref<2x7x22x16xf32, #tpu.memory_space<vmem>>, vector<1x1x16x16xf32>
    %433 = vector.shape_cast %432 : vector<1x1x16x16xf32> to vector<16x16xf32>
    %434 = vector.broadcast %36 : f32 to vector<16x16xf32>
    %435 = arith.mulf %434, %433 : vector<16x16xf32>
    %436 = arith.addf %416, %435 : vector<16x16xf32>
    %c0_369 = arith.constant 0 : index
    %c6_370 = arith.constant 6 : index
    %c3_371 = arith.constant 3 : index
    %c0_372 = arith.constant 0 : index
    %437 = vector.load %arg8[%c0_369, %c6_370, %c3_371, %c0_372] : memref<2x7x22x16xf32, #tpu.memory_space<vmem>>, vector<1x1x16x16xf32>
    %438 = vector.shape_cast %437 : vector<1x1x16x16xf32> to vector<16x16xf32>
    %439 = vector.broadcast %37 : f32 to vector<16x16xf32>
    %440 = arith.mulf %439, %438 : vector<16x16xf32>
    %441 = arith.addf %421, %440 : vector<16x16xf32>
    %c0_373 = arith.constant 0 : index
    %c0_374 = arith.constant 0 : index
    %c4_375 = arith.constant 4 : index
    %c0_376 = arith.constant 0 : index
    %442 = vector.load %arg8[%c0_373, %c0_374, %c4_375, %c0_376] : memref<2x7x22x16xf32, #tpu.memory_space<vmem>>, vector<1x1x16x16xf32>
    %443 = vector.shape_cast %442 : vector<1x1x16x16xf32> to vector<16x16xf32>
    %444 = vector.broadcast %38 : f32 to vector<16x16xf32>
    %445 = arith.mulf %444, %443 : vector<16x16xf32>
    %446 = arith.addf %426, %445 : vector<16x16xf32>
    %c0_377 = arith.constant 0 : index
    %c1_378 = arith.constant 1 : index
    %c4_379 = arith.constant 4 : index
    %c0_380 = arith.constant 0 : index
    %447 = vector.load %arg8[%c0_377, %c1_378, %c4_379, %c0_380] : memref<2x7x22x16xf32, #tpu.memory_space<vmem>>, vector<1x1x16x16xf32>
    %448 = vector.shape_cast %447 : vector<1x1x16x16xf32> to vector<16x16xf32>
    %449 = vector.broadcast %39 : f32 to vector<16x16xf32>
    %450 = arith.mulf %449, %448 : vector<16x16xf32>
    %451 = arith.addf %431, %450 : vector<16x16xf32>
    %c0_381 = arith.constant 0 : index
    %c2_382 = arith.constant 2 : index
    %c4_383 = arith.constant 4 : index
    %c0_384 = arith.constant 0 : index
    %452 = vector.load %arg8[%c0_381, %c2_382, %c4_383, %c0_384] : memref<2x7x22x16xf32, #tpu.memory_space<vmem>>, vector<1x1x16x16xf32>
    %453 = vector.shape_cast %452 : vector<1x1x16x16xf32> to vector<16x16xf32>
    %454 = vector.broadcast %40 : f32 to vector<16x16xf32>
    %455 = arith.mulf %454, %453 : vector<16x16xf32>
    %456 = arith.addf %436, %455 : vector<16x16xf32>
    %c0_385 = arith.constant 0 : index
    %c3_386 = arith.constant 3 : index
    %c4_387 = arith.constant 4 : index
    %c0_388 = arith.constant 0 : index
    %457 = vector.load %arg8[%c0_385, %c3_386, %c4_387, %c0_388] : memref<2x7x22x16xf32, #tpu.memory_space<vmem>>, vector<1x1x16x16xf32>
    %458 = vector.shape_cast %457 : vector<1x1x16x16xf32> to vector<16x16xf32>
    %459 = vector.broadcast %41 : f32 to vector<16x16xf32>
    %460 = arith.mulf %459, %458 : vector<16x16xf32>
    %461 = arith.addf %441, %460 : vector<16x16xf32>
    %c0_389 = arith.constant 0 : index
    %c4_390 = arith.constant 4 : index
    %c4_391 = arith.constant 4 : index
    %c0_392 = arith.constant 0 : index
    %462 = vector.load %arg8[%c0_389, %c4_390, %c4_391, %c0_392] : memref<2x7x22x16xf32, #tpu.memory_space<vmem>>, vector<1x1x16x16xf32>
    %463 = vector.shape_cast %462 : vector<1x1x16x16xf32> to vector<16x16xf32>
    %464 = vector.broadcast %42 : f32 to vector<16x16xf32>
    %465 = arith.mulf %464, %463 : vector<16x16xf32>
    %466 = arith.addf %446, %465 : vector<16x16xf32>
    %c0_393 = arith.constant 0 : index
    %c5_394 = arith.constant 5 : index
    %c4_395 = arith.constant 4 : index
    %c0_396 = arith.constant 0 : index
    %467 = vector.load %arg8[%c0_393, %c5_394, %c4_395, %c0_396] : memref<2x7x22x16xf32, #tpu.memory_space<vmem>>, vector<1x1x16x16xf32>
    %468 = vector.shape_cast %467 : vector<1x1x16x16xf32> to vector<16x16xf32>
    %469 = vector.broadcast %43 : f32 to vector<16x16xf32>
    %470 = arith.mulf %469, %468 : vector<16x16xf32>
    %471 = arith.addf %451, %470 : vector<16x16xf32>
    %c0_397 = arith.constant 0 : index
    %c6_398 = arith.constant 6 : index
    %c4_399 = arith.constant 4 : index
    %c0_400 = arith.constant 0 : index
    %472 = vector.load %arg8[%c0_397, %c6_398, %c4_399, %c0_400] : memref<2x7x22x16xf32, #tpu.memory_space<vmem>>, vector<1x1x16x16xf32>
    %473 = vector.shape_cast %472 : vector<1x1x16x16xf32> to vector<16x16xf32>
    %474 = vector.broadcast %44 : f32 to vector<16x16xf32>
    %475 = arith.mulf %474, %473 : vector<16x16xf32>
    %476 = arith.addf %456, %475 : vector<16x16xf32>
    %c0_401 = arith.constant 0 : index
    %c0_402 = arith.constant 0 : index
    %c5_403 = arith.constant 5 : index
    %c0_404 = arith.constant 0 : index
    %477 = vector.load %arg8[%c0_401, %c0_402, %c5_403, %c0_404] : memref<2x7x22x16xf32, #tpu.memory_space<vmem>>, vector<1x1x16x16xf32>
    %478 = vector.shape_cast %477 : vector<1x1x16x16xf32> to vector<16x16xf32>
    %479 = vector.broadcast %45 : f32 to vector<16x16xf32>
    %480 = arith.mulf %479, %478 : vector<16x16xf32>
    %481 = arith.addf %461, %480 : vector<16x16xf32>
    %c0_405 = arith.constant 0 : index
    %c1_406 = arith.constant 1 : index
    %c5_407 = arith.constant 5 : index
    %c0_408 = arith.constant 0 : index
    %482 = vector.load %arg8[%c0_405, %c1_406, %c5_407, %c0_408] : memref<2x7x22x16xf32, #tpu.memory_space<vmem>>, vector<1x1x16x16xf32>
    %483 = vector.shape_cast %482 : vector<1x1x16x16xf32> to vector<16x16xf32>
    %484 = vector.broadcast %46 : f32 to vector<16x16xf32>
    %485 = arith.mulf %484, %483 : vector<16x16xf32>
    %486 = arith.addf %466, %485 : vector<16x16xf32>
    %c0_409 = arith.constant 0 : index
    %c2_410 = arith.constant 2 : index
    %c5_411 = arith.constant 5 : index
    %c0_412 = arith.constant 0 : index
    %487 = vector.load %arg8[%c0_409, %c2_410, %c5_411, %c0_412] : memref<2x7x22x16xf32, #tpu.memory_space<vmem>>, vector<1x1x16x16xf32>
    %488 = vector.shape_cast %487 : vector<1x1x16x16xf32> to vector<16x16xf32>
    %489 = vector.broadcast %47 : f32 to vector<16x16xf32>
    %490 = arith.mulf %489, %488 : vector<16x16xf32>
    %491 = arith.addf %471, %490 : vector<16x16xf32>
    %c0_413 = arith.constant 0 : index
    %c3_414 = arith.constant 3 : index
    %c5_415 = arith.constant 5 : index
    %c0_416 = arith.constant 0 : index
    %492 = vector.load %arg8[%c0_413, %c3_414, %c5_415, %c0_416] : memref<2x7x22x16xf32, #tpu.memory_space<vmem>>, vector<1x1x16x16xf32>
    %493 = vector.shape_cast %492 : vector<1x1x16x16xf32> to vector<16x16xf32>
    %494 = vector.broadcast %48 : f32 to vector<16x16xf32>
    %495 = arith.mulf %494, %493 : vector<16x16xf32>
    %496 = arith.addf %476, %495 : vector<16x16xf32>
    %c0_417 = arith.constant 0 : index
    %c4_418 = arith.constant 4 : index
    %c5_419 = arith.constant 5 : index
    %c0_420 = arith.constant 0 : index
    %497 = vector.load %arg8[%c0_417, %c4_418, %c5_419, %c0_420] : memref<2x7x22x16xf32, #tpu.memory_space<vmem>>, vector<1x1x16x16xf32>
    %498 = vector.shape_cast %497 : vector<1x1x16x16xf32> to vector<16x16xf32>
    %499 = vector.broadcast %49 : f32 to vector<16x16xf32>
    %500 = arith.mulf %499, %498 : vector<16x16xf32>
    %501 = arith.addf %481, %500 : vector<16x16xf32>
    %c0_421 = arith.constant 0 : index
    %c5_422 = arith.constant 5 : index
    %c5_423 = arith.constant 5 : index
    %c0_424 = arith.constant 0 : index
    %502 = vector.load %arg8[%c0_421, %c5_422, %c5_423, %c0_424] : memref<2x7x22x16xf32, #tpu.memory_space<vmem>>, vector<1x1x16x16xf32>
    %503 = vector.shape_cast %502 : vector<1x1x16x16xf32> to vector<16x16xf32>
    %504 = vector.broadcast %50 : f32 to vector<16x16xf32>
    %505 = arith.mulf %504, %503 : vector<16x16xf32>
    %506 = arith.addf %486, %505 : vector<16x16xf32>
    %c0_425 = arith.constant 0 : index
    %c6_426 = arith.constant 6 : index
    %c5_427 = arith.constant 5 : index
    %c0_428 = arith.constant 0 : index
    %507 = vector.load %arg8[%c0_425, %c6_426, %c5_427, %c0_428] : memref<2x7x22x16xf32, #tpu.memory_space<vmem>>, vector<1x1x16x16xf32>
    %508 = vector.shape_cast %507 : vector<1x1x16x16xf32> to vector<16x16xf32>
    %509 = vector.broadcast %51 : f32 to vector<16x16xf32>
    %510 = arith.mulf %509, %508 : vector<16x16xf32>
    %511 = arith.addf %491, %510 : vector<16x16xf32>
    %c0_429 = arith.constant 0 : index
    %c0_430 = arith.constant 0 : index
    %c6_431 = arith.constant 6 : index
    %c0_432 = arith.constant 0 : index
    %512 = vector.load %arg8[%c0_429, %c0_430, %c6_431, %c0_432] : memref<2x7x22x16xf32, #tpu.memory_space<vmem>>, vector<1x1x16x16xf32>
    %513 = vector.shape_cast %512 : vector<1x1x16x16xf32> to vector<16x16xf32>
    %514 = vector.broadcast %52 : f32 to vector<16x16xf32>
    %515 = arith.mulf %514, %513 : vector<16x16xf32>
    %516 = arith.addf %496, %515 : vector<16x16xf32>
    %c0_433 = arith.constant 0 : index
    %c1_434 = arith.constant 1 : index
    %c6_435 = arith.constant 6 : index
    %c0_436 = arith.constant 0 : index
    %517 = vector.load %arg8[%c0_433, %c1_434, %c6_435, %c0_436] : memref<2x7x22x16xf32, #tpu.memory_space<vmem>>, vector<1x1x16x16xf32>
    %518 = vector.shape_cast %517 : vector<1x1x16x16xf32> to vector<16x16xf32>
    %519 = vector.broadcast %53 : f32 to vector<16x16xf32>
    %520 = arith.mulf %519, %518 : vector<16x16xf32>
    %521 = arith.addf %501, %520 : vector<16x16xf32>
    %c0_437 = arith.constant 0 : index
    %c2_438 = arith.constant 2 : index
    %c6_439 = arith.constant 6 : index
    %c0_440 = arith.constant 0 : index
    %522 = vector.load %arg8[%c0_437, %c2_438, %c6_439, %c0_440] : memref<2x7x22x16xf32, #tpu.memory_space<vmem>>, vector<1x1x16x16xf32>
    %523 = vector.shape_cast %522 : vector<1x1x16x16xf32> to vector<16x16xf32>
    %524 = vector.broadcast %54 : f32 to vector<16x16xf32>
    %525 = arith.mulf %524, %523 : vector<16x16xf32>
    %526 = arith.addf %506, %525 : vector<16x16xf32>
    %c0_441 = arith.constant 0 : index
    %c3_442 = arith.constant 3 : index
    %c6_443 = arith.constant 6 : index
    %c0_444 = arith.constant 0 : index
    %527 = vector.load %arg8[%c0_441, %c3_442, %c6_443, %c0_444] : memref<2x7x22x16xf32, #tpu.memory_space<vmem>>, vector<1x1x16x16xf32>
    %528 = vector.shape_cast %527 : vector<1x1x16x16xf32> to vector<16x16xf32>
    %529 = vector.broadcast %55 : f32 to vector<16x16xf32>
    %530 = arith.mulf %529, %528 : vector<16x16xf32>
    %531 = arith.addf %511, %530 : vector<16x16xf32>
    %c0_445 = arith.constant 0 : index
    %c4_446 = arith.constant 4 : index
    %c6_447 = arith.constant 6 : index
    %c0_448 = arith.constant 0 : index
    %532 = vector.load %arg8[%c0_445, %c4_446, %c6_447, %c0_448] : memref<2x7x22x16xf32, #tpu.memory_space<vmem>>, vector<1x1x16x16xf32>
    %533 = vector.shape_cast %532 : vector<1x1x16x16xf32> to vector<16x16xf32>
    %534 = vector.broadcast %56 : f32 to vector<16x16xf32>
    %535 = arith.mulf %534, %533 : vector<16x16xf32>
    %536 = arith.addf %516, %535 : vector<16x16xf32>
    %c0_449 = arith.constant 0 : index
    %c5_450 = arith.constant 5 : index
    %c6_451 = arith.constant 6 : index
    %c0_452 = arith.constant 0 : index
    %537 = vector.load %arg8[%c0_449, %c5_450, %c6_451, %c0_452] : memref<2x7x22x16xf32, #tpu.memory_space<vmem>>, vector<1x1x16x16xf32>
    %538 = vector.shape_cast %537 : vector<1x1x16x16xf32> to vector<16x16xf32>
    %539 = vector.broadcast %57 : f32 to vector<16x16xf32>
    %540 = arith.mulf %539, %538 : vector<16x16xf32>
    %541 = arith.addf %521, %540 : vector<16x16xf32>
    %c0_453 = arith.constant 0 : index
    %c6_454 = arith.constant 6 : index
    %c6_455 = arith.constant 6 : index
    %c0_456 = arith.constant 0 : index
    %542 = vector.load %arg8[%c0_453, %c6_454, %c6_455, %c0_456] : memref<2x7x22x16xf32, #tpu.memory_space<vmem>>, vector<1x1x16x16xf32>
    %543 = vector.shape_cast %542 : vector<1x1x16x16xf32> to vector<16x16xf32>
    %544 = vector.broadcast %58 : f32 to vector<16x16xf32>
    %545 = arith.mulf %544, %543 : vector<16x16xf32>
    %546 = arith.addf %526, %545 : vector<16x16xf32>
    %c1_457 = arith.constant 1 : index
    %c0_458 = arith.constant 0 : index
    %c0_459 = arith.constant 0 : index
    %c0_460 = arith.constant 0 : index
    %547 = vector.load %arg8[%c1_457, %c0_458, %c0_459, %c0_460] : memref<2x7x22x16xf32, #tpu.memory_space<vmem>>, vector<1x1x16x16xf32>
    %548 = vector.shape_cast %547 : vector<1x1x16x16xf32> to vector<16x16xf32>
    %549 = vector.broadcast %59 : f32 to vector<16x16xf32>
    %550 = arith.mulf %549, %548 : vector<16x16xf32>
    %551 = arith.addf %531, %550 : vector<16x16xf32>
    %c1_461 = arith.constant 1 : index
    %c1_462 = arith.constant 1 : index
    %c0_463 = arith.constant 0 : index
    %c0_464 = arith.constant 0 : index
    %552 = vector.load %arg8[%c1_461, %c1_462, %c0_463, %c0_464] : memref<2x7x22x16xf32, #tpu.memory_space<vmem>>, vector<1x1x16x16xf32>
    %553 = vector.shape_cast %552 : vector<1x1x16x16xf32> to vector<16x16xf32>
    %554 = vector.broadcast %60 : f32 to vector<16x16xf32>
    %555 = arith.mulf %554, %553 : vector<16x16xf32>
    %556 = arith.addf %536, %555 : vector<16x16xf32>
    %c1_465 = arith.constant 1 : index
    %c2_466 = arith.constant 2 : index
    %c0_467 = arith.constant 0 : index
    %c0_468 = arith.constant 0 : index
    %557 = vector.load %arg8[%c1_465, %c2_466, %c0_467, %c0_468] : memref<2x7x22x16xf32, #tpu.memory_space<vmem>>, vector<1x1x16x16xf32>
    %558 = vector.shape_cast %557 : vector<1x1x16x16xf32> to vector<16x16xf32>
    %559 = vector.broadcast %61 : f32 to vector<16x16xf32>
    %560 = arith.mulf %559, %558 : vector<16x16xf32>
    %561 = arith.addf %541, %560 : vector<16x16xf32>
    %c1_469 = arith.constant 1 : index
    %c3_470 = arith.constant 3 : index
    %c0_471 = arith.constant 0 : index
    %c0_472 = arith.constant 0 : index
    %562 = vector.load %arg8[%c1_469, %c3_470, %c0_471, %c0_472] : memref<2x7x22x16xf32, #tpu.memory_space<vmem>>, vector<1x1x16x16xf32>
    %563 = vector.shape_cast %562 : vector<1x1x16x16xf32> to vector<16x16xf32>
    %564 = vector.broadcast %62 : f32 to vector<16x16xf32>
    %565 = arith.mulf %564, %563 : vector<16x16xf32>
    %566 = arith.addf %546, %565 : vector<16x16xf32>
    %c1_473 = arith.constant 1 : index
    %c4_474 = arith.constant 4 : index
    %c0_475 = arith.constant 0 : index
    %c0_476 = arith.constant 0 : index
    %567 = vector.load %arg8[%c1_473, %c4_474, %c0_475, %c0_476] : memref<2x7x22x16xf32, #tpu.memory_space<vmem>>, vector<1x1x16x16xf32>
    %568 = vector.shape_cast %567 : vector<1x1x16x16xf32> to vector<16x16xf32>
    %569 = vector.broadcast %63 : f32 to vector<16x16xf32>
    %570 = arith.mulf %569, %568 : vector<16x16xf32>
    %571 = arith.addf %551, %570 : vector<16x16xf32>
    %c1_477 = arith.constant 1 : index
    %c5_478 = arith.constant 5 : index
    %c0_479 = arith.constant 0 : index
    %c0_480 = arith.constant 0 : index
    %572 = vector.load %arg8[%c1_477, %c5_478, %c0_479, %c0_480] : memref<2x7x22x16xf32, #tpu.memory_space<vmem>>, vector<1x1x16x16xf32>
    %573 = vector.shape_cast %572 : vector<1x1x16x16xf32> to vector<16x16xf32>
    %574 = vector.broadcast %64 : f32 to vector<16x16xf32>
    %575 = arith.mulf %574, %573 : vector<16x16xf32>
    %576 = arith.addf %556, %575 : vector<16x16xf32>
    %c1_481 = arith.constant 1 : index
    %c6_482 = arith.constant 6 : index
    %c0_483 = arith.constant 0 : index
    %c0_484 = arith.constant 0 : index
    %577 = vector.load %arg8[%c1_481, %c6_482, %c0_483, %c0_484] : memref<2x7x22x16xf32, #tpu.memory_space<vmem>>, vector<1x1x16x16xf32>
    %578 = vector.shape_cast %577 : vector<1x1x16x16xf32> to vector<16x16xf32>
    %579 = vector.broadcast %65 : f32 to vector<16x16xf32>
    %580 = arith.mulf %579, %578 : vector<16x16xf32>
    %581 = arith.addf %561, %580 : vector<16x16xf32>
    %c1_485 = arith.constant 1 : index
    %c0_486 = arith.constant 0 : index
    %c1_487 = arith.constant 1 : index
    %c0_488 = arith.constant 0 : index
    %582 = vector.load %arg8[%c1_485, %c0_486, %c1_487, %c0_488] : memref<2x7x22x16xf32, #tpu.memory_space<vmem>>, vector<1x1x16x16xf32>
    %583 = vector.shape_cast %582 : vector<1x1x16x16xf32> to vector<16x16xf32>
    %584 = vector.broadcast %66 : f32 to vector<16x16xf32>
    %585 = arith.mulf %584, %583 : vector<16x16xf32>
    %586 = arith.addf %566, %585 : vector<16x16xf32>
    %c1_489 = arith.constant 1 : index
    %c1_490 = arith.constant 1 : index
    %c1_491 = arith.constant 1 : index
    %c0_492 = arith.constant 0 : index
    %587 = vector.load %arg8[%c1_489, %c1_490, %c1_491, %c0_492] : memref<2x7x22x16xf32, #tpu.memory_space<vmem>>, vector<1x1x16x16xf32>
    %588 = vector.shape_cast %587 : vector<1x1x16x16xf32> to vector<16x16xf32>
    %589 = vector.broadcast %67 : f32 to vector<16x16xf32>
    %590 = arith.mulf %589, %588 : vector<16x16xf32>
    %591 = arith.addf %571, %590 : vector<16x16xf32>
    %c1_493 = arith.constant 1 : index
    %c2_494 = arith.constant 2 : index
    %c1_495 = arith.constant 1 : index
    %c0_496 = arith.constant 0 : index
    %592 = vector.load %arg8[%c1_493, %c2_494, %c1_495, %c0_496] : memref<2x7x22x16xf32, #tpu.memory_space<vmem>>, vector<1x1x16x16xf32>
    %593 = vector.shape_cast %592 : vector<1x1x16x16xf32> to vector<16x16xf32>
    %594 = vector.broadcast %68 : f32 to vector<16x16xf32>
    %595 = arith.mulf %594, %593 : vector<16x16xf32>
    %596 = arith.addf %576, %595 : vector<16x16xf32>
    %c1_497 = arith.constant 1 : index
    %c3_498 = arith.constant 3 : index
    %c1_499 = arith.constant 1 : index
    %c0_500 = arith.constant 0 : index
    %597 = vector.load %arg8[%c1_497, %c3_498, %c1_499, %c0_500] : memref<2x7x22x16xf32, #tpu.memory_space<vmem>>, vector<1x1x16x16xf32>
    %598 = vector.shape_cast %597 : vector<1x1x16x16xf32> to vector<16x16xf32>
    %599 = vector.broadcast %69 : f32 to vector<16x16xf32>
    %600 = arith.mulf %599, %598 : vector<16x16xf32>
    %601 = arith.addf %581, %600 : vector<16x16xf32>
    %c1_501 = arith.constant 1 : index
    %c4_502 = arith.constant 4 : index
    %c1_503 = arith.constant 1 : index
    %c0_504 = arith.constant 0 : index
    %602 = vector.load %arg8[%c1_501, %c4_502, %c1_503, %c0_504] : memref<2x7x22x16xf32, #tpu.memory_space<vmem>>, vector<1x1x16x16xf32>
    %603 = vector.shape_cast %602 : vector<1x1x16x16xf32> to vector<16x16xf32>
    %604 = vector.broadcast %70 : f32 to vector<16x16xf32>
    %605 = arith.mulf %604, %603 : vector<16x16xf32>
    %606 = arith.addf %586, %605 : vector<16x16xf32>
    %c1_505 = arith.constant 1 : index
    %c5_506 = arith.constant 5 : index
    %c1_507 = arith.constant 1 : index
    %c0_508 = arith.constant 0 : index
    %607 = vector.load %arg8[%c1_505, %c5_506, %c1_507, %c0_508] : memref<2x7x22x16xf32, #tpu.memory_space<vmem>>, vector<1x1x16x16xf32>
    %608 = vector.shape_cast %607 : vector<1x1x16x16xf32> to vector<16x16xf32>
    %609 = vector.broadcast %71 : f32 to vector<16x16xf32>
    %610 = arith.mulf %609, %608 : vector<16x16xf32>
    %611 = arith.addf %591, %610 : vector<16x16xf32>
    %c1_509 = arith.constant 1 : index
    %c6_510 = arith.constant 6 : index
    %c1_511 = arith.constant 1 : index
    %c0_512 = arith.constant 0 : index
    %612 = vector.load %arg8[%c1_509, %c6_510, %c1_511, %c0_512] : memref<2x7x22x16xf32, #tpu.memory_space<vmem>>, vector<1x1x16x16xf32>
    %613 = vector.shape_cast %612 : vector<1x1x16x16xf32> to vector<16x16xf32>
    %614 = vector.broadcast %72 : f32 to vector<16x16xf32>
    %615 = arith.mulf %614, %613 : vector<16x16xf32>
    %616 = arith.addf %596, %615 : vector<16x16xf32>
    %c1_513 = arith.constant 1 : index
    %c0_514 = arith.constant 0 : index
    %c2_515 = arith.constant 2 : index
    %c0_516 = arith.constant 0 : index
    %617 = vector.load %arg8[%c1_513, %c0_514, %c2_515, %c0_516] : memref<2x7x22x16xf32, #tpu.memory_space<vmem>>, vector<1x1x16x16xf32>
    %618 = vector.shape_cast %617 : vector<1x1x16x16xf32> to vector<16x16xf32>
    %619 = vector.broadcast %73 : f32 to vector<16x16xf32>
    %620 = arith.mulf %619, %618 : vector<16x16xf32>
    %621 = arith.addf %601, %620 : vector<16x16xf32>
    %c1_517 = arith.constant 1 : index
    %c1_518 = arith.constant 1 : index
    %c2_519 = arith.constant 2 : index
    %c0_520 = arith.constant 0 : index
    %622 = vector.load %arg8[%c1_517, %c1_518, %c2_519, %c0_520] : memref<2x7x22x16xf32, #tpu.memory_space<vmem>>, vector<1x1x16x16xf32>
    %623 = vector.shape_cast %622 : vector<1x1x16x16xf32> to vector<16x16xf32>
    %624 = vector.broadcast %74 : f32 to vector<16x16xf32>
    %625 = arith.mulf %624, %623 : vector<16x16xf32>
    %626 = arith.addf %606, %625 : vector<16x16xf32>
    %c1_521 = arith.constant 1 : index
    %c2_522 = arith.constant 2 : index
    %c2_523 = arith.constant 2 : index
    %c0_524 = arith.constant 0 : index
    %627 = vector.load %arg8[%c1_521, %c2_522, %c2_523, %c0_524] : memref<2x7x22x16xf32, #tpu.memory_space<vmem>>, vector<1x1x16x16xf32>
    %628 = vector.shape_cast %627 : vector<1x1x16x16xf32> to vector<16x16xf32>
    %629 = vector.broadcast %75 : f32 to vector<16x16xf32>
    %630 = arith.mulf %629, %628 : vector<16x16xf32>
    %631 = arith.addf %611, %630 : vector<16x16xf32>
    %c1_525 = arith.constant 1 : index
    %c3_526 = arith.constant 3 : index
    %c2_527 = arith.constant 2 : index
    %c0_528 = arith.constant 0 : index
    %632 = vector.load %arg8[%c1_525, %c3_526, %c2_527, %c0_528] : memref<2x7x22x16xf32, #tpu.memory_space<vmem>>, vector<1x1x16x16xf32>
    %633 = vector.shape_cast %632 : vector<1x1x16x16xf32> to vector<16x16xf32>
    %634 = vector.broadcast %76 : f32 to vector<16x16xf32>
    %635 = arith.mulf %634, %633 : vector<16x16xf32>
    %636 = arith.addf %616, %635 : vector<16x16xf32>
    %c1_529 = arith.constant 1 : index
    %c4_530 = arith.constant 4 : index
    %c2_531 = arith.constant 2 : index
    %c0_532 = arith.constant 0 : index
    %637 = vector.load %arg8[%c1_529, %c4_530, %c2_531, %c0_532] : memref<2x7x22x16xf32, #tpu.memory_space<vmem>>, vector<1x1x16x16xf32>
    %638 = vector.shape_cast %637 : vector<1x1x16x16xf32> to vector<16x16xf32>
    %639 = vector.broadcast %77 : f32 to vector<16x16xf32>
    %640 = arith.mulf %639, %638 : vector<16x16xf32>
    %641 = arith.addf %621, %640 : vector<16x16xf32>
    %c1_533 = arith.constant 1 : index
    %c5_534 = arith.constant 5 : index
    %c2_535 = arith.constant 2 : index
    %c0_536 = arith.constant 0 : index
    %642 = vector.load %arg8[%c1_533, %c5_534, %c2_535, %c0_536] : memref<2x7x22x16xf32, #tpu.memory_space<vmem>>, vector<1x1x16x16xf32>
    %643 = vector.shape_cast %642 : vector<1x1x16x16xf32> to vector<16x16xf32>
    %644 = vector.broadcast %78 : f32 to vector<16x16xf32>
    %645 = arith.mulf %644, %643 : vector<16x16xf32>
    %646 = arith.addf %626, %645 : vector<16x16xf32>
    %c1_537 = arith.constant 1 : index
    %c6_538 = arith.constant 6 : index
    %c2_539 = arith.constant 2 : index
    %c0_540 = arith.constant 0 : index
    %647 = vector.load %arg8[%c1_537, %c6_538, %c2_539, %c0_540] : memref<2x7x22x16xf32, #tpu.memory_space<vmem>>, vector<1x1x16x16xf32>
    %648 = vector.shape_cast %647 : vector<1x1x16x16xf32> to vector<16x16xf32>
    %649 = vector.broadcast %79 : f32 to vector<16x16xf32>
    %650 = arith.mulf %649, %648 : vector<16x16xf32>
    %651 = arith.addf %631, %650 : vector<16x16xf32>
    %c1_541 = arith.constant 1 : index
    %c0_542 = arith.constant 0 : index
    %c3_543 = arith.constant 3 : index
    %c0_544 = arith.constant 0 : index
    %652 = vector.load %arg8[%c1_541, %c0_542, %c3_543, %c0_544] : memref<2x7x22x16xf32, #tpu.memory_space<vmem>>, vector<1x1x16x16xf32>
    %653 = vector.shape_cast %652 : vector<1x1x16x16xf32> to vector<16x16xf32>
    %654 = vector.broadcast %80 : f32 to vector<16x16xf32>
    %655 = arith.mulf %654, %653 : vector<16x16xf32>
    %656 = arith.addf %636, %655 : vector<16x16xf32>
    %c1_545 = arith.constant 1 : index
    %c1_546 = arith.constant 1 : index
    %c3_547 = arith.constant 3 : index
    %c0_548 = arith.constant 0 : index
    %657 = vector.load %arg8[%c1_545, %c1_546, %c3_547, %c0_548] : memref<2x7x22x16xf32, #tpu.memory_space<vmem>>, vector<1x1x16x16xf32>
    %658 = vector.shape_cast %657 : vector<1x1x16x16xf32> to vector<16x16xf32>
    %659 = vector.broadcast %81 : f32 to vector<16x16xf32>
    %660 = arith.mulf %659, %658 : vector<16x16xf32>
    %661 = arith.addf %641, %660 : vector<16x16xf32>
    %c1_549 = arith.constant 1 : index
    %c2_550 = arith.constant 2 : index
    %c3_551 = arith.constant 3 : index
    %c0_552 = arith.constant 0 : index
    %662 = vector.load %arg8[%c1_549, %c2_550, %c3_551, %c0_552] : memref<2x7x22x16xf32, #tpu.memory_space<vmem>>, vector<1x1x16x16xf32>
    %663 = vector.shape_cast %662 : vector<1x1x16x16xf32> to vector<16x16xf32>
    %664 = vector.broadcast %82 : f32 to vector<16x16xf32>
    %665 = arith.mulf %664, %663 : vector<16x16xf32>
    %666 = arith.addf %646, %665 : vector<16x16xf32>
    %c1_553 = arith.constant 1 : index
    %c3_554 = arith.constant 3 : index
    %c3_555 = arith.constant 3 : index
    %c0_556 = arith.constant 0 : index
    %667 = vector.load %arg8[%c1_553, %c3_554, %c3_555, %c0_556] : memref<2x7x22x16xf32, #tpu.memory_space<vmem>>, vector<1x1x16x16xf32>
    %668 = vector.shape_cast %667 : vector<1x1x16x16xf32> to vector<16x16xf32>
    %669 = vector.broadcast %83 : f32 to vector<16x16xf32>
    %670 = arith.mulf %669, %668 : vector<16x16xf32>
    %671 = arith.addf %651, %670 : vector<16x16xf32>
    %c1_557 = arith.constant 1 : index
    %c4_558 = arith.constant 4 : index
    %c3_559 = arith.constant 3 : index
    %c0_560 = arith.constant 0 : index
    %672 = vector.load %arg8[%c1_557, %c4_558, %c3_559, %c0_560] : memref<2x7x22x16xf32, #tpu.memory_space<vmem>>, vector<1x1x16x16xf32>
    %673 = vector.shape_cast %672 : vector<1x1x16x16xf32> to vector<16x16xf32>
    %674 = vector.broadcast %84 : f32 to vector<16x16xf32>
    %675 = arith.mulf %674, %673 : vector<16x16xf32>
    %676 = arith.addf %656, %675 : vector<16x16xf32>
    %c1_561 = arith.constant 1 : index
    %c5_562 = arith.constant 5 : index
    %c3_563 = arith.constant 3 : index
    %c0_564 = arith.constant 0 : index
    %677 = vector.load %arg8[%c1_561, %c5_562, %c3_563, %c0_564] : memref<2x7x22x16xf32, #tpu.memory_space<vmem>>, vector<1x1x16x16xf32>
    %678 = vector.shape_cast %677 : vector<1x1x16x16xf32> to vector<16x16xf32>
    %679 = vector.broadcast %85 : f32 to vector<16x16xf32>
    %680 = arith.mulf %679, %678 : vector<16x16xf32>
    %681 = arith.addf %661, %680 : vector<16x16xf32>
    %c1_565 = arith.constant 1 : index
    %c6_566 = arith.constant 6 : index
    %c3_567 = arith.constant 3 : index
    %c0_568 = arith.constant 0 : index
    %682 = vector.load %arg8[%c1_565, %c6_566, %c3_567, %c0_568] : memref<2x7x22x16xf32, #tpu.memory_space<vmem>>, vector<1x1x16x16xf32>
    %683 = vector.shape_cast %682 : vector<1x1x16x16xf32> to vector<16x16xf32>
    %684 = vector.broadcast %86 : f32 to vector<16x16xf32>
    %685 = arith.mulf %684, %683 : vector<16x16xf32>
    %686 = arith.addf %666, %685 : vector<16x16xf32>
    %c1_569 = arith.constant 1 : index
    %c0_570 = arith.constant 0 : index
    %c4_571 = arith.constant 4 : index
    %c0_572 = arith.constant 0 : index
    %687 = vector.load %arg8[%c1_569, %c0_570, %c4_571, %c0_572] : memref<2x7x22x16xf32, #tpu.memory_space<vmem>>, vector<1x1x16x16xf32>
    %688 = vector.shape_cast %687 : vector<1x1x16x16xf32> to vector<16x16xf32>
    %689 = vector.broadcast %87 : f32 to vector<16x16xf32>
    %690 = arith.mulf %689, %688 : vector<16x16xf32>
    %691 = arith.addf %671, %690 : vector<16x16xf32>
    %c1_573 = arith.constant 1 : index
    %c1_574 = arith.constant 1 : index
    %c4_575 = arith.constant 4 : index
    %c0_576 = arith.constant 0 : index
    %692 = vector.load %arg8[%c1_573, %c1_574, %c4_575, %c0_576] : memref<2x7x22x16xf32, #tpu.memory_space<vmem>>, vector<1x1x16x16xf32>
    %693 = vector.shape_cast %692 : vector<1x1x16x16xf32> to vector<16x16xf32>
    %694 = vector.broadcast %88 : f32 to vector<16x16xf32>
    %695 = arith.mulf %694, %693 : vector<16x16xf32>
    %696 = arith.addf %676, %695 : vector<16x16xf32>
    %c1_577 = arith.constant 1 : index
    %c2_578 = arith.constant 2 : index
    %c4_579 = arith.constant 4 : index
    %c0_580 = arith.constant 0 : index
    %697 = vector.load %arg8[%c1_577, %c2_578, %c4_579, %c0_580] : memref<2x7x22x16xf32, #tpu.memory_space<vmem>>, vector<1x1x16x16xf32>
    %698 = vector.shape_cast %697 : vector<1x1x16x16xf32> to vector<16x16xf32>
    %699 = vector.broadcast %89 : f32 to vector<16x16xf32>
    %700 = arith.mulf %699, %698 : vector<16x16xf32>
    %701 = arith.addf %681, %700 : vector<16x16xf32>
    %c1_581 = arith.constant 1 : index
    %c3_582 = arith.constant 3 : index
    %c4_583 = arith.constant 4 : index
    %c0_584 = arith.constant 0 : index
    %702 = vector.load %arg8[%c1_581, %c3_582, %c4_583, %c0_584] : memref<2x7x22x16xf32, #tpu.memory_space<vmem>>, vector<1x1x16x16xf32>
    %703 = vector.shape_cast %702 : vector<1x1x16x16xf32> to vector<16x16xf32>
    %704 = vector.broadcast %90 : f32 to vector<16x16xf32>
    %705 = arith.mulf %704, %703 : vector<16x16xf32>
    %706 = arith.addf %686, %705 : vector<16x16xf32>
    %c1_585 = arith.constant 1 : index
    %c4_586 = arith.constant 4 : index
    %c4_587 = arith.constant 4 : index
    %c0_588 = arith.constant 0 : index
    %707 = vector.load %arg8[%c1_585, %c4_586, %c4_587, %c0_588] : memref<2x7x22x16xf32, #tpu.memory_space<vmem>>, vector<1x1x16x16xf32>
    %708 = vector.shape_cast %707 : vector<1x1x16x16xf32> to vector<16x16xf32>
    %709 = vector.broadcast %91 : f32 to vector<16x16xf32>
    %710 = arith.mulf %709, %708 : vector<16x16xf32>
    %711 = arith.addf %691, %710 : vector<16x16xf32>
    %c1_589 = arith.constant 1 : index
    %c5_590 = arith.constant 5 : index
    %c4_591 = arith.constant 4 : index
    %c0_592 = arith.constant 0 : index
    %712 = vector.load %arg8[%c1_589, %c5_590, %c4_591, %c0_592] : memref<2x7x22x16xf32, #tpu.memory_space<vmem>>, vector<1x1x16x16xf32>
    %713 = vector.shape_cast %712 : vector<1x1x16x16xf32> to vector<16x16xf32>
    %714 = vector.broadcast %92 : f32 to vector<16x16xf32>
    %715 = arith.mulf %714, %713 : vector<16x16xf32>
    %716 = arith.addf %696, %715 : vector<16x16xf32>
    %c1_593 = arith.constant 1 : index
    %c6_594 = arith.constant 6 : index
    %c4_595 = arith.constant 4 : index
    %c0_596 = arith.constant 0 : index
    %717 = vector.load %arg8[%c1_593, %c6_594, %c4_595, %c0_596] : memref<2x7x22x16xf32, #tpu.memory_space<vmem>>, vector<1x1x16x16xf32>
    %718 = vector.shape_cast %717 : vector<1x1x16x16xf32> to vector<16x16xf32>
    %719 = vector.broadcast %93 : f32 to vector<16x16xf32>
    %720 = arith.mulf %719, %718 : vector<16x16xf32>
    %721 = arith.addf %701, %720 : vector<16x16xf32>
    %c1_597 = arith.constant 1 : index
    %c0_598 = arith.constant 0 : index
    %c5_599 = arith.constant 5 : index
    %c0_600 = arith.constant 0 : index
    %722 = vector.load %arg8[%c1_597, %c0_598, %c5_599, %c0_600] : memref<2x7x22x16xf32, #tpu.memory_space<vmem>>, vector<1x1x16x16xf32>
    %723 = vector.shape_cast %722 : vector<1x1x16x16xf32> to vector<16x16xf32>
    %724 = vector.broadcast %94 : f32 to vector<16x16xf32>
    %725 = arith.mulf %724, %723 : vector<16x16xf32>
    %726 = arith.addf %706, %725 : vector<16x16xf32>
    %c1_601 = arith.constant 1 : index
    %c1_602 = arith.constant 1 : index
    %c5_603 = arith.constant 5 : index
    %c0_604 = arith.constant 0 : index
    %727 = vector.load %arg8[%c1_601, %c1_602, %c5_603, %c0_604] : memref<2x7x22x16xf32, #tpu.memory_space<vmem>>, vector<1x1x16x16xf32>
    %728 = vector.shape_cast %727 : vector<1x1x16x16xf32> to vector<16x16xf32>
    %729 = vector.broadcast %95 : f32 to vector<16x16xf32>
    %730 = arith.mulf %729, %728 : vector<16x16xf32>
    %731 = arith.addf %711, %730 : vector<16x16xf32>
    %c1_605 = arith.constant 1 : index
    %c2_606 = arith.constant 2 : index
    %c5_607 = arith.constant 5 : index
    %c0_608 = arith.constant 0 : index
    %732 = vector.load %arg8[%c1_605, %c2_606, %c5_607, %c0_608] : memref<2x7x22x16xf32, #tpu.memory_space<vmem>>, vector<1x1x16x16xf32>
    %733 = vector.shape_cast %732 : vector<1x1x16x16xf32> to vector<16x16xf32>
    %734 = vector.broadcast %96 : f32 to vector<16x16xf32>
    %735 = arith.mulf %734, %733 : vector<16x16xf32>
    %736 = arith.addf %716, %735 : vector<16x16xf32>
    %c1_609 = arith.constant 1 : index
    %c3_610 = arith.constant 3 : index
    %c5_611 = arith.constant 5 : index
    %c0_612 = arith.constant 0 : index
    %737 = vector.load %arg8[%c1_609, %c3_610, %c5_611, %c0_612] : memref<2x7x22x16xf32, #tpu.memory_space<vmem>>, vector<1x1x16x16xf32>
    %738 = vector.shape_cast %737 : vector<1x1x16x16xf32> to vector<16x16xf32>
    %739 = vector.broadcast %97 : f32 to vector<16x16xf32>
    %740 = arith.mulf %739, %738 : vector<16x16xf32>
    %741 = arith.addf %721, %740 : vector<16x16xf32>
    %c1_613 = arith.constant 1 : index
    %c4_614 = arith.constant 4 : index
    %c5_615 = arith.constant 5 : index
    %c0_616 = arith.constant 0 : index
    %742 = vector.load %arg8[%c1_613, %c4_614, %c5_615, %c0_616] : memref<2x7x22x16xf32, #tpu.memory_space<vmem>>, vector<1x1x16x16xf32>
    %743 = vector.shape_cast %742 : vector<1x1x16x16xf32> to vector<16x16xf32>
    %744 = vector.broadcast %98 : f32 to vector<16x16xf32>
    %745 = arith.mulf %744, %743 : vector<16x16xf32>
    %746 = arith.addf %726, %745 : vector<16x16xf32>
    %c1_617 = arith.constant 1 : index
    %c5_618 = arith.constant 5 : index
    %c5_619 = arith.constant 5 : index
    %c0_620 = arith.constant 0 : index
    %747 = vector.load %arg8[%c1_617, %c5_618, %c5_619, %c0_620] : memref<2x7x22x16xf32, #tpu.memory_space<vmem>>, vector<1x1x16x16xf32>
    %748 = vector.shape_cast %747 : vector<1x1x16x16xf32> to vector<16x16xf32>
    %749 = vector.broadcast %99 : f32 to vector<16x16xf32>
    %750 = arith.mulf %749, %748 : vector<16x16xf32>
    %751 = arith.addf %731, %750 : vector<16x16xf32>
    %c1_621 = arith.constant 1 : index
    %c6_622 = arith.constant 6 : index
    %c5_623 = arith.constant 5 : index
    %c0_624 = arith.constant 0 : index
    %752 = vector.load %arg8[%c1_621, %c6_622, %c5_623, %c0_624] : memref<2x7x22x16xf32, #tpu.memory_space<vmem>>, vector<1x1x16x16xf32>
    %753 = vector.shape_cast %752 : vector<1x1x16x16xf32> to vector<16x16xf32>
    %754 = vector.broadcast %100 : f32 to vector<16x16xf32>
    %755 = arith.mulf %754, %753 : vector<16x16xf32>
    %756 = arith.addf %736, %755 : vector<16x16xf32>
    %c1_625 = arith.constant 1 : index
    %c0_626 = arith.constant 0 : index
    %c6_627 = arith.constant 6 : index
    %c0_628 = arith.constant 0 : index
    %757 = vector.load %arg8[%c1_625, %c0_626, %c6_627, %c0_628] : memref<2x7x22x16xf32, #tpu.memory_space<vmem>>, vector<1x1x16x16xf32>
    %758 = vector.shape_cast %757 : vector<1x1x16x16xf32> to vector<16x16xf32>
    %759 = vector.broadcast %101 : f32 to vector<16x16xf32>
    %760 = arith.mulf %759, %758 : vector<16x16xf32>
    %761 = arith.addf %741, %760 : vector<16x16xf32>
    %c1_629 = arith.constant 1 : index
    %c1_630 = arith.constant 1 : index
    %c6_631 = arith.constant 6 : index
    %c0_632 = arith.constant 0 : index
    %762 = vector.load %arg8[%c1_629, %c1_630, %c6_631, %c0_632] : memref<2x7x22x16xf32, #tpu.memory_space<vmem>>, vector<1x1x16x16xf32>
    %763 = vector.shape_cast %762 : vector<1x1x16x16xf32> to vector<16x16xf32>
    %764 = vector.broadcast %102 : f32 to vector<16x16xf32>
    %765 = arith.mulf %764, %763 : vector<16x16xf32>
    %766 = arith.addf %746, %765 : vector<16x16xf32>
    %c1_633 = arith.constant 1 : index
    %c2_634 = arith.constant 2 : index
    %c6_635 = arith.constant 6 : index
    %c0_636 = arith.constant 0 : index
    %767 = vector.load %arg8[%c1_633, %c2_634, %c6_635, %c0_636] : memref<2x7x22x16xf32, #tpu.memory_space<vmem>>, vector<1x1x16x16xf32>
    %768 = vector.shape_cast %767 : vector<1x1x16x16xf32> to vector<16x16xf32>
    %769 = vector.broadcast %103 : f32 to vector<16x16xf32>
    %770 = arith.mulf %769, %768 : vector<16x16xf32>
    %771 = arith.addf %751, %770 : vector<16x16xf32>
    %c1_637 = arith.constant 1 : index
    %c3_638 = arith.constant 3 : index
    %c6_639 = arith.constant 6 : index
    %c0_640 = arith.constant 0 : index
    %772 = vector.load %arg8[%c1_637, %c3_638, %c6_639, %c0_640] : memref<2x7x22x16xf32, #tpu.memory_space<vmem>>, vector<1x1x16x16xf32>
    %773 = vector.shape_cast %772 : vector<1x1x16x16xf32> to vector<16x16xf32>
    %774 = vector.broadcast %104 : f32 to vector<16x16xf32>
    %775 = arith.mulf %774, %773 : vector<16x16xf32>
    %776 = arith.addf %756, %775 : vector<16x16xf32>
    %c1_641 = arith.constant 1 : index
    %c4_642 = arith.constant 4 : index
    %c6_643 = arith.constant 6 : index
    %c0_644 = arith.constant 0 : index
    %777 = vector.load %arg8[%c1_641, %c4_642, %c6_643, %c0_644] : memref<2x7x22x16xf32, #tpu.memory_space<vmem>>, vector<1x1x16x16xf32>
    %778 = vector.shape_cast %777 : vector<1x1x16x16xf32> to vector<16x16xf32>
    %779 = vector.broadcast %105 : f32 to vector<16x16xf32>
    %780 = arith.mulf %779, %778 : vector<16x16xf32>
    %781 = arith.addf %761, %780 : vector<16x16xf32>
    %c1_645 = arith.constant 1 : index
    %c5_646 = arith.constant 5 : index
    %c6_647 = arith.constant 6 : index
    %c0_648 = arith.constant 0 : index
    %782 = vector.load %arg8[%c1_645, %c5_646, %c6_647, %c0_648] : memref<2x7x22x16xf32, #tpu.memory_space<vmem>>, vector<1x1x16x16xf32>
    %783 = vector.shape_cast %782 : vector<1x1x16x16xf32> to vector<16x16xf32>
    %784 = vector.broadcast %106 : f32 to vector<16x16xf32>
    %785 = arith.mulf %784, %783 : vector<16x16xf32>
    %786 = arith.addf %766, %785 : vector<16x16xf32>
    %c1_649 = arith.constant 1 : index
    %c6_650 = arith.constant 6 : index
    %c6_651 = arith.constant 6 : index
    %c0_652 = arith.constant 0 : index
    %787 = vector.load %arg8[%c1_649, %c6_650, %c6_651, %c0_652] : memref<2x7x22x16xf32, #tpu.memory_space<vmem>>, vector<1x1x16x16xf32>
    %788 = vector.shape_cast %787 : vector<1x1x16x16xf32> to vector<16x16xf32>
    %789 = vector.broadcast %107 : f32 to vector<16x16xf32>
    %790 = arith.mulf %789, %788 : vector<16x16xf32>
    %791 = arith.addf %771, %790 : vector<16x16xf32>
    %792 = arith.addf %786, %791 : vector<16x16xf32>
    %793 = arith.addf %776, %781 : vector<16x16xf32>
    %794 = arith.addf %792, %793 : vector<16x16xf32>
    %795 = arith.negf %794 : vector<16x16xf32>
    %796 = math.exp %795 : vector<16x16xf32>
    %cst_653 = arith.constant 1.000000e+00 : f32
    %797 = vector.broadcast %cst_653 : f32 to vector<16x16xf32>
    %798 = arith.addf %797, %796 : vector<16x16xf32>
    %799 = arith.divf %797, %798 : vector<16x16xf32>
    %c0_654 = arith.constant 0 : index
    %c0_655 = arith.constant 0 : index
    %c0_656 = arith.constant 0 : index
    %800 = vector.load %arg4[%c0_654, %c0_655, %c0_656] : memref<1x16x16xf32, #tpu.memory_space<vmem>>, vector<1x16x16xf32>
    %801 = vector.shape_cast %800 : vector<1x16x16xf32> to vector<16x16xf32>
    %802 = vector.shape_cast %799 : vector<16x16xf32> to vector<1x16x16xf32>
    tpu.vector_store %arg4[%c0_654, %c0_655, %c0_656], %802 {strides = array<i32>} : memref<1x16x16xf32, #tpu.memory_space<vmem>>, vector<1x16x16xf32>,
    return
  }
  func.func @transform_0(%arg0: i32, %arg1: i32) -> i32 {
    %c0_i32 = arith.constant 0 : i32
    %c0_i32_0 = arith.constant 0 : i32
    return %c0_i32 : i32
  }
  func.func @transform_1(%arg0: i32, %arg1: i32) -> (i32, i32, i32) {
    %c0_i32 = arith.constant 0 : i32
    %c0_i32_0 = arith.constant 0 : i32
    return %arg0, %arg1, %c0_i32 : i32, i32, i32
  }
  func.func @transform_2(%arg0: i32, %arg1: i32) -> (i32, i32, i32) {
    %c0_i32 = arith.constant 0 : i32
    %c0_i32_0 = arith.constant 0 : i32
    %c0_i32_1 = arith.constant 0 : i32
    return %arg0, %c0_i32, %c0_i32_0 : i32, i32, i32
  }
}

</mosaic_0001>

<llo_original>
// kernel: tpu_custom_call.1
$region0: #{tpu_custom_call.1}
  #allocation0 [shape = 'u32[]', space=smem, size = 0x4, offset = 0x4, fixed_abs, tag = 'smem constant byte address 0x4 - core index']
  #allocation1 [shape = 'u32[144,128]{1,0:T(1,128)}', space=vmem, size = 0x12000, scoped, tag = 'internal scratch']
  #allocation2 [shape = 'f32[1,256]{1,0:T(1,128)}', space=vmem, size = 0x400, scoped, tag = 'scratch operand']
  #allocation3 [shape = 'f32[1,256]{1,0:T(1,128)}', space=vmem, size = 0x400, scoped, tag = 'scratch operand']
  #allocation4 [shape = 'f32[2,22,22]{2,1,0:T(8,128)}', space=vmem, size = 0x6000, scoped, tag = 'scratch operand']
  #allocation5 [shape = 'f32[2,7,22,16]{3,2,1,0:T(8,128)}', space=vmem, size = 0x2a000, scoped, tag = 'scratch operand']
  %s0 = inlined_call_operand.hbm [shape: f32[98], index: 0, kind: input, shape index: {}]
  %s1 = inlined_call_operand.hbm [shape: f32[2,4,256], index: 1, kind: input, shape index: {}]
  %s2 = inlined_call_operand.hbm [shape: f32[2,16,16], index: 2, kind: output, shape index: {}]
  %s3 = sld [smem:[#allocation0]]
  $region49: #{tpu_custom_call.1} parent=0
    _
  %s5 = ssub.s32 1, %s3
  %s6 = scalar_select 0, %s5, %s3
  $region1: #{tpu_custom_call.1} parent=0
    #allocation6 [shape = 'u8[512]{0}', space=smem, size = 0x200, scoped, tag = 'input window, operand 0, single buffered']
    #allocation7 [shape = 's32[2]{0}', space=sflag, size = 0x8, scoped, tag = 'scoped memory for tpu_custom_call.1']
    #allocation8 [shape = 's32[2]{0}', space=sflag, size = 0x8, scoped, tag = 'scoped memory for tpu_custom_call.1']
    #allocation9 [shape = 's32[2]{0}', space=sflag, size = 0x8, scoped, tag = 'scoped memory for tpu_custom_call.1']
    #allocation10 [shape = 'u8[8192]{0}', space=vmem, size = 0x2000, scoped, tag = 'input window, operand 1']
    #allocation11 [shape = 'u8[16384]{0}', space=vmem, size = 0x4000, scoped, tag = 'output window, operand 0']
    %7 = vsyncpa [#allocation9], 0
    %8 = vsyncpa [#allocation7], 0
    %s9 = scalar_lea.sflag [#allocation7], 1
    %10 = vsyncpa %s9, 0
    %11 = vsyncpa [#allocation8], 0
    %s12 = scalar_lea.sflag [#allocation8], 1
    %13 = vsyncpa %s12, 0
    loop: start=0, step=1, limit=4
    $region2: #{tpu_custom_call.1} parent=1 // loop_pre_header
      _
    $region3: #{tpu_custom_call.1} parent=1 // loop_header
      %s15 = sphi 0, %s19
      %p16 = scmp.ge.s32.totalorder %s15, 4
      %s22 = sphi 0, %s34
      %s23 = sphi 0, %s30
      %s24 = sphi 0, %s22
      %s25 = sphi 0, %s23
      %s26 = sphi 0, %s24
      %s27 = sphi 0, %s25
      %s35 = sphi 0, %s35
      %s37 = sphi 0, %s35
      %s38 = sphi 0, %s37
      %s52 = sphi 0, %s38
      %s60 = sphi 0, %s62
      %s63 = sphi 0, %s60
      %s64 = sphi 0, %s63
      %s80 = sphi 0, %s64
      %s86 = sphi 0, %s88
      %s89 = sphi 0, %s86
      %s90 = sphi 0, %s89
      %s106 = sphi 0, %s90
    $region4: #{tpu_custom_call.1} parent=1 // loop_header_branch
      %18 = sbr.rel (%p16) target = $region8
    $region5: #{tpu_custom_call.1} parent=1 // loop_body
      %s20 = ssub.s32 %s15, 1
      %s21 = ssub.s32 %s15, 2
      %s28 = sadd.s32 1, %s23
      %p29 = scmp.ge.s32.totalorder %s28, 1
      %s30 = scalar_select %p29, 0, %s28
      %s31 = sadd.s32 1, %s22
      %s32 = scalar_select %p29, %s31, %s22
      %p33 = scmp.ge.s32.totalorder %s32, 2
      %s34 = scalar_select %p33, 0, %s32
      %s36 = sadd.s32 %s35, 1
      %p39 = scmp.eq.s32.totalorder %s15, 1
      %p40 = scmp.ne.s32.totalorder %s35, %s37
      %p41 = scmp.eq.s32.totalorder %s15, 0
      %p42 = por %p40, %p41
      %p43 = scmp.ne.s32.totalorder %s35, %s37
      %p44 = scmp.eq.s32.totalorder %s20, 1
      %p45 = por %p43, %p44
      %p46 = scmp.ne.s32.totalorder %s37, %s38
      %p47 = scmp.eq.s32.totalorder %s20, 0
      %p48 = por %p46, %p47
      %p49 = scmp.ne.s32.totalorder %s37, %s38
      %p50 = scmp.eq.s32.totalorder %s21, 1
      %p51 = por %p49, %p50
      %p53 = scmp.ne.s32.totalorder %s38, %s52
      %p54 = scmp.eq.s32.totalorder %s21, 0
      %p55 = por %p53, %p54
      %s56 = ssub.s32 %s22, %s34
      %s57 = ssub.s32 %s23, %s30
      %s58 = sor.u32 %s56, %s57
      %p59 = scmp.eq.s32.totalorder %s58, 0
      %s61 = sadd.s32 %s60, 1
      %s62 = scalar_select %p59, %s60, %s61
      %p65 = pneg %p59
      %p66 = scmp.eq.s32.totalorder %s15, 1
      %p67 = por %p65, %p66
      %p68 = scmp.ne.s32.totalorder %s60, %s63
      %p69 = scmp.eq.s32.totalorder %s15, 0
      %p70 = por %p68, %p69
      %p71 = scmp.ne.s32.totalorder %s60, %s63
      %p72 = scmp.eq.s32.totalorder %s20, 1
      %p73 = por %p71, %p72
      %p74 = scmp.ne.s32.totalorder %s63, %s64
      %p75 = scmp.eq.s32.totalorder %s20, 0
      %p76 = por %p74, %p75
      %p77 = scmp.ne.s32.totalorder %s63, %s64
      %p78 = scmp.eq.s32.totalorder %s21, 1
      %p79 = por %p77, %p78
      %p81 = scmp.ne.s32.totalorder %s64, %s80
      %p82 = scmp.eq.s32.totalorder %s21, 0
      %p83 = por %p81, %p82
      %s84 = ssub.s32 %s22, %s34
      %p85 = scmp.eq.s32.totalorder %s84, 0
      %s87 = sadd.s32 %s86, 1
      %s88 = scalar_select %p85, %s86, %s87
      %p91 = pneg %p85
      %p92 = scmp.eq.s32.totalorder %s15, 1
      %p93 = por %p91, %p92
      %p94 = scmp.ne.s32.totalorder %s86, %s89
      %p95 = scmp.eq.s32.totalorder %s15, 0
      %p96 = por %p94, %p95
      %p97 = scmp.ne.s32.totalorder %s86, %s89
      %p98 = scmp.eq.s32.totalorder %s20, 1
      %p99 = por %p97, %p98
      %p100 = scmp.ne.s32.totalorder %s89, %s90
      %p101 = scmp.eq.s32.totalorder %s20, 0
      %p102 = por %p100, %p101
      %p103 = scmp.ne.s32.totalorder %s89, %s90
      %p104 = scmp.eq.s32.totalorder %s21, 1
      %p105 = por %p103, %p104
      %p107 = scmp.ne.s32.totalorder %s90, %s106
      %p108 = scmp.eq.s32.totalorder %s21, 0
      %p109 = por %p107, %p108
      %p110 = scmp.le.s32.totalorder 1, %s15
      %p111 = scmp.lt.s32.totalorder %s15, 3
      %p112 = pnand %p110, %p111
      %p113 = pneg %p112
      // Predicated region
      $region9: #{tpu_custom_call.1} parent=5 // pred_check
        _
      $region10: #{tpu_custom_call.1} parent=5 // pred_check_branch
        %115 = sbr.rel (%p112) target = $region12
      $region11: #{tpu_custom_call.1} parent=5 // pred_region
        %s116 = ssub.s32 %s15, 1
        // Predicated region
        $region13: #{tpu_custom_call.1} parent=11 // pred_check
          %p117 = pneg %p48
        $region14: #{tpu_custom_call.1} parent=11 // pred_check_branch
          %119 = sbr.rel (%p117) target = $region16
        $region15: #{tpu_custom_call.1} parent=11 // pred_region
          %s121 = ssub.s32 16, 16
          %122 = vsyncadd [#allocation9], %s121
          %125 = dma.hbm_to_smem %s0, 16, [#allocation6], [#allocation9]
        $region16: #{tpu_custom_call.1} parent=11 // pred_fallthru
          _
      $region12: #{tpu_custom_call.1} parent=5 // pred_fallthru
        _
      %p126 = scmp.lt.s32.totalorder %s15, 2
      // Predicated region
      $region17: #{tpu_custom_call.1} parent=5 // pred_check
        %p127 = pneg %p126
      $region18: #{tpu_custom_call.1} parent=5 // pred_check_branch
        %129 = sbr.rel (%p127) target = $region20
      $region19: #{tpu_custom_call.1} parent=5 // pred_region
        // Predicated region
        $region21: #{tpu_custom_call.1} parent=19 // pred_check
          %p130 = pneg %p70
        $region22: #{tpu_custom_call.1} parent=19 // pred_check_branch
          %132 = sbr.rel (%p130) target = $region24
        $region23: #{tpu_custom_call.1} parent=19 // pred_region
          %s133 = sand.u32 %s60, 1
          %s134 = scalar_lea.sflag [#allocation7], %s133
          %s135 = sand.u32 %s60, 1
          %s136 = smul.addr %s135, 8
          %s137 = scalar_lea.vmem [#allocation10], %s136
          %s139 = ssub.s32 128, 128
          %140 = vsyncadd %s134, %s139
          %s141 = smul.addr %s23, 2
          %s142 = smul.addr %s22, 2
          %s143 = sadd.s32 %s141, %s142
          %s144 = smul.addr %s143, 64
          %s145 = scalar_lea.hbm %s1, %s144
          %s147 = sshll.u32 %s137, 4
          %s148 = int_to_ptr.vmem [resolvable:$true] %s147
          %150 = dma.hbm_to_vmem [thread:$0]  %s145, 128, %s148, %s134
        $region24: #{tpu_custom_call.1} parent=19 // pred_fallthru
          _
      $region20: #{tpu_custom_call.1} parent=5 // pred_fallthru
        _
      %p151 = scmp.le.s32.totalorder 1, %s15
      %p152 = scmp.lt.s32.totalorder %s15, 3
      %p153 = pnand %p151, %p152
      %p154 = pneg %p153
      // Predicated region
      $region25: #{tpu_custom_call.1} parent=5 // pred_check
        _
      $region26: #{tpu_custom_call.1} parent=5 // pred_check_branch
        %156 = sbr.rel (%p153) target = $region28
      $region27: #{tpu_custom_call.1} parent=5 // pred_region
        %s157 = ssub.s32 %s15, 1
        // Predicated region
        $region29: #{tpu_custom_call.1} parent=27 // pred_check
          %p158 = pneg %p48
        $region30: #{tpu_custom_call.1} parent=27 // pred_check_branch
          %160 = sbr.rel (%p158) target = $region32
        $region31: #{tpu_custom_call.1} parent=27 // pred_region
          %161 = dma.done [#allocation9], 16
        $region32: #{tpu_custom_call.1} parent=27 // pred_fallthru
          _
        %s162 = sand.u32 %s63, 1
        %s163 = scalar_lea.sflag [#allocation7], %s162
        %s164 = sand.u32 %s63, 1
        %s165 = smul.addr %s164, 8
        %s166 = scalar_lea.vmem [#allocation10], %s165
        // Predicated region
        $region33: #{tpu_custom_call.1} parent=27 // pred_check
          %p167 = pneg %p76
        $region34: #{tpu_custom_call.1} parent=27 // pred_check_branch
          %169 = sbr.rel (%p167) target = $region36
        $region35: #{tpu_custom_call.1} parent=27 // pred_region
          %170 = dma.done %s163, 128
        $region36: #{tpu_custom_call.1} parent=27 // pred_fallthru
          _
        %171 = sfence
        %p172 = pneg %p48
        %p173 = pneg %p45
        %s174 = sand.u32 %s63, 1
        %s175 = scalar_lea.sflag [#allocation7], %s174
        %s176 = sand.u32 %s63, 1
        %s177 = smul.addr %s176, 8
        %s178 = scalar_lea.vmem [#allocation10], %s177
        %p179 = pneg %p76
        %p180 = pneg %p73
        %p181 = pneg %p102
        %p182 = pneg %p99
        %s183 = sand.u32 %s89, 1
        %s184 = scalar_lea.sflag [#allocation8], %s183
        %s185 = sand.u32 %s89, 1
        %s186 = smul.addr %s185, 16
        %s187 = scalar_lea.vmem [#allocation11], %s186
        %v188 = vld [vmem:[%s166] sm:$0xff]
        %v190 = vcombine.high %v188, %v188
        %vm192 = vcmask 1043456
        %v193 = vsel %vm192, %v188, 0.0
        %v194 = vrot.slane %v193, 4
        %v195 = vadd.f32 %v193, %v194
        %v196 = vrot.slane %v195, 2
        %v197 = vadd.f32 %v195, %v196
        %v198 = vrot.slane %v197, 1
        %v199 = vadd.f32 %v197, %v198
        %v200 = vsel %vm192, %v190, 0.0
        %v201 = vrot.slane %v200, 4
        %v202 = vadd.f32 %v200, %v201
        %v203 = vrot.slane %v202, 2
        %v204 = vadd.f32 %v202, %v203
        %v205 = vrot.slane %v204, 1
        %v206 = vadd.f32 %v204, %v205
        %v207 = vsel %vm192, %v188, -inf
        %v208 = vrot.slane %v207, 4
        %v209 = vmax.f32 %v207, %v208
        %v210 = vrot.slane %v209, 2
        %v211 = vmax.f32 %v209, %v210
        %v212 = vrot.slane %v211, 1
        %v213 = vmax.f32 %v211, %v212
        %v214 = vsel %vm192, %v190, -inf
        %v215 = vrot.slane %v214, 4
        %v216 = vmax.f32 %v214, %v215
        %v217 = vrot.slane %v216, 2
        %v218 = vmax.f32 %v216, %v217
        %v219 = vrot.slane %v218, 1
        %v220 = vmax.f32 %v218, %v219
        %v223 = vcombine.low %v199, %v206
        %v225 = vunpack.c.l.s4 1966171168
        %v226 = vunpack.c.0.s8 %v225
        %v227 = vlaneseq
        %v228 = vshrl.u32 %v227, 7
        %v229 = vsub.s32 %v226, %v228
        %v230 = vrot.slane %v223, %v229
        %v232 = vunpack.c.l.s4 1966171168
        %v233 = vunpack.c.0.s8 %v232
        %v234 = vlaneseq
        %v235 = vshrl.u32 %v234, 7
        %v236 = vsub.s32 %v233, %v235
        %v237 = vrot.slane %v230, %v236
        %v239 = vlaneseq
        %vm240 = vcmp.ge.s32.totalorder %v239, 0
        %vm241 = vcmp.lt.s32.totalorder %v239, 256
        %vm242 = vmand %vm240, %vm241
        %243 = vst.msk [vmem:[#allocation2] sm:$0x3] %vm242, %v237
        %v246 = vcombine.low %v213, %v220
        %v248 = vunpack.c.l.s4 1966171168
        %v249 = vunpack.c.0.s8 %v248
        %v250 = vlaneseq
        %v251 = vshrl.u32 %v250, 7
        %v252 = vsub.s32 %v249, %v251
        %v253 = vrot.slane %v246, %v252
        %v255 = vunpack.c.l.s4 1966171168
        %v256 = vunpack.c.0.s8 %v255
        %v257 = vlaneseq
        %v258 = vshrl.u32 %v257, 7
        %v259 = vsub.s32 %v256, %v258
        %v260 = vrot.slane %v253, %v259
        %262 = vst.msk [vmem:[#allocation3] sm:$0x3] %vm242, %v260
        %vm263 = vcmask 179200
        %264 = vst.msk [vmem:[#allocation4] sm:$0xff] %vm263, 0.0
        %265 = vst.msk [vmem:[#allocation4 + $0x8] sm:$0xff] %vm263, 0.0
        %vm266 = vcmask 177152
        %267 = vst.msk [vmem:[#allocation4 + $0x10] sm:$0x3f] %vm266, 0.0
        %268 = vst.msk [vmem:[#allocation4 + $0x18] sm:$0xff] %vm263, 0.0
        %269 = vst.msk [vmem:[#allocation4 + $0x20] sm:$0xff] %vm263, 0.0
        %270 = vst.msk [vmem:[#allocation4 + $0x28] sm:$0x3f] %vm266, 0.0
        %s271 = sld [smem:[#allocation6]]
        %s272 = sld [smem:[#allocation6 + $0x1]]
        %s273 = sld [smem:[#allocation6 + $0x2]]
        %s274 = sld [smem:[#allocation6 + $0x3]]
        %s275 = sld [smem:[#allocation6 + $0x4]]
        %s276 = sld [smem:[#allocation6 + $0x5]]
        %s277 = sld [smem:[#allocation6 + $0x6]]
        %s278 = sld [smem:[#allocation6 + $0x7]]
        %s279 = sld [smem:[#allocation6 + $0x8]]
        %s280 = sld [smem:[#allocation6 + $0x9]]
        %s281 = sld [smem:[#allocation6 + $0xa]]
        %s282 = sld [smem:[#allocation6 + $0xb]]
        %s283 = sld [smem:[#allocation6 + $0xc]]
        %s284 = sld [smem:[#allocation6 + $0xd]]
        %s285 = sld [smem:[#allocation6 + $0xe]]
        %s286 = sld [smem:[#allocation6 + $0xf]]
        %s287 = sld [smem:[#allocation6 + $0x10]]
        %s288 = sld [smem:[#allocation6 + $0x11]]
        %s289 = sld [smem:[#allocation6 + $0x12]]
        %s290 = sld [smem:[#allocation6 + $0x13]]
        %s291 = sld [smem:[#allocation6 + $0x14]]
        %s292 = sld [smem:[#allocation6 + $0x15]]
        %s293 = sld [smem:[#allocation6 + $0x16]]
        %s294 = sld [smem:[#allocation6 + $0x17]]
        %s295 = sld [smem:[#allocation6 + $0x18]]
        %s296 = sld [smem:[#allocation6 + $0x19]]
        %s297 = sld [smem:[#allocation6 + $0x1a]]
        %s298 = sld [smem:[#allocation6 + $0x1b]]
        %s299 = sld [smem:[#allocation6 + $0x1c]]
        %s300 = sld [smem:[#allocation6 + $0x1d]]
        %s301 = sld [smem:[#allocation6 + $0x1e]]
        %s302 = sld [smem:[#allocation6 + $0x1f]]
        %s303 = sld [smem:[#allocation6 + $0x20]]
        %s304 = sld [smem:[#allocation6 + $0x21]]
        %s305 = sld [smem:[#allocation6 + $0x22]]
        %s306 = sld [smem:[#allocation6 + $0x23]]
        %s307 = sld [smem:[#allocation6 + $0x24]]
        %s308 = sld [smem:[#allocation6 + $0x25]]
        %s309 = sld [smem:[#allocation6 + $0x26]]
        %s310 = sld [smem:[#allocation6 + $0x27]]
        %s311 = sld [smem:[#allocation6 + $0x28]]
        %s312 = sld [smem:[#allocation6 + $0x29]]
        %s313 = sld [smem:[#allocation6 + $0x2a]]
        %s314 = sld [smem:[#allocation6 + $0x2b]]
        %s315 = sld [smem:[#allocation6 + $0x2c]]
        %s316 = sld [smem:[#allocation6 + $0x2d]]
        %s317 = sld [smem:[#allocation6 + $0x2e]]
        %s318 = sld [smem:[#allocation6 + $0x2f]]
        %s319 = sld [smem:[#allocation6 + $0x30]]
        %s320 = sld [smem:[#allocation6 + $0x31]]
        %s321 = sld [smem:[#allocation6 + $0x32]]
        %s322 = sld [smem:[#allocation6 + $0x33]]
        %s323 = sld [smem:[#allocation6 + $0x34]]
        %s324 = sld [smem:[#allocation6 + $0x35]]
        %s325 = sld [smem:[#allocation6 + $0x36]]
        %s326 = sld [smem:[#allocation6 + $0x37]]
        %s327 = sld [smem:[#allocation6 + $0x38]]
        %s328 = sld [smem:[#allocation6 + $0x39]]
        %s329 = sld [smem:[#allocation6 + $0x3a]]
        %s330 = sld [smem:[#allocation6 + $0x3b]]
        %s331 = sld [smem:[#allocation6 + $0x3c]]
        %s332 = sld [smem:[#allocation6 + $0x3d]]
        %s333 = sld [smem:[#allocation6 + $0x3e]]
        %s334 = sld [smem:[#allocation6 + $0x3f]]
        %s335 = sld [smem:[#allocation6 + $0x40]]
        %s336 = sld [smem:[#allocation6 + $0x41]]
        %s337 = sld [smem:[#allocation6 + $0x42]]
        %s338 = sld [smem:[#allocation6 + $0x43]]
        %s339 = sld [smem:[#allocation6 + $0x44]]
        %s340 = sld [smem:[#allocation6 + $0x45]]
        %s341 = sld [smem:[#allocation6 + $0x46]]
        %s342 = sld [smem:[#allocation6 + $0x47]]
        %s343 = sld [smem:[#allocation6 + $0x48]]
        %s344 = sld [smem:[#allocation6 + $0x49]]
        %s345 = sld [smem:[#allocation6 + $0x4a]]
        %s346 = sld [smem:[#allocation6 + $0x4b]]
        %s347 = sld [smem:[#allocation6 + $0x4c]]
        %s348 = sld [smem:[#allocation6 + $0x4d]]
        %s349 = sld [smem:[#allocation6 + $0x4e]]
        %s350 = sld [smem:[#allocation6 + $0x4f]]
        %s351 = sld [smem:[#allocation6 + $0x50]]
        %s352 = sld [smem:[#allocation6 + $0x51]]
        %s353 = sld [smem:[#allocation6 + $0x52]]
        %s354 = sld [smem:[#allocation6 + $0x53]]
        %s355 = sld [smem:[#allocation6 + $0x54]]
        %s356 = sld [smem:[#allocation6 + $0x55]]
        %s357 = sld [smem:[#allocation6 + $0x56]]
        %s358 = sld [smem:[#allocation6 + $0x57]]
        %s359 = sld [smem:[#allocation6 + $0x58]]
        %s360 = sld [smem:[#allocation6 + $0x59]]
        %s361 = sld [smem:[#allocation6 + $0x5a]]
        %s362 = sld [smem:[#allocation6 + $0x5b]]
        %s363 = sld [smem:[#allocation6 + $0x5c]]
        %s364 = sld [smem:[#allocation6 + $0x5d]]
        %s365 = sld [smem:[#allocation6 + $0x5e]]
        %s366 = sld [smem:[#allocation6 + $0x5f]]
        %s367 = sld [smem:[#allocation6 + $0x60]]
        %s368 = sld [smem:[#allocation6 + $0x61]]
        %v369 = vld [vmem:[#allocation2] sm:$0x1]
        %v371 = vlaneseq
        %v372 = vshrl.u32 %v371, 7
        %v373 = vsub.s32 0, %v372
        %v374 = vrot.slane %v369, %v373
        %375 = vrot.lane.b32.xlu0 %v374, 3
        %v376 = vpop.permute.xlu0 %375
        %vm378 = vcmask 147480
        %379 = vst.msk [vmem:[#allocation4 + $0x3] sm:$0x1] %vm378, %v376
        %v380 = vld [vmem:[#allocation3] sm:$0x1]
        %v382 = vlaneseq
        %v383 = vshrl.u32 %v382, 7
        %v384 = vsub.s32 0, %v383
        %v385 = vrot.slane %v380, %v384
        %386 = vrot.lane.b32.xlu0 %v385, 3
        %v387 = vpop.permute.xlu0 %386
        %s389 = scalar_lea.vmem [#allocation4], 24
        %390 = vst.msk [vmem:[%s389 + $0x3] sm:$0x1] %vm378, %v387
        %v391 = vld [vmem:[#allocation2] sm:$0x1]
        %v393 = vlaneseq
        %v394 = vshrl.u32 %v393, 7
        %v395 = vsub.s32 0, %v394
        %v396 = vrot.slane %v391, %v395
        %397 = vrot.lane.b32.xlu0 %v396, 115
        %v398 = vpop.permute.xlu0 %397
        %400 = vst.msk [vmem:[#allocation4 + $0x4] sm:$0x1] %vm378, %v398
        %v401 = vld [vmem:[#allocation3] sm:$0x1]
        %v403 = vlaneseq
        %v404 = vshrl.u32 %v403, 7
        %v405 = vsub.s32 0, %v404
        %v406 = vrot.slane %v401, %v405
        %407 = vrot.lane.b32.xlu0 %v406, 115
        %v408 = vpop.permute.xlu0 %407
        %410 = vst.msk [vmem:[%s389 + $0x4] sm:$0x1] %vm378, %v408
        %v411 = vld [vmem:[#allocation2] sm:$0x1]
        %v413 = vlaneseq
        %v414 = vshrl.u32 %v413, 7
        %v415 = vsub.s32 0, %v414
        %v416 = vrot.slane %v411, %v415
        %417 = vrot.lane.b32.xlu0 %v416, 99
        %v418 = vpop.permute.xlu0 %417
        %420 = vst.msk [vmem:[#allocation4 + $0x5] sm:$0x1] %vm378, %v418
        %v421 = vld [vmem:[#allocation3] sm:$0x1]
        %v423 = vlaneseq
        %v424 = vshrl.u32 %v423, 7
        %v425 = vsub.s32 0, %v424
        %v426 = vrot.slane %v421, %v425
        %427 = vrot.lane.b32.xlu0 %v426, 99
        %v428 = vpop.permute.xlu0 %427
        %430 = vst.msk [vmem:[%s389 + $0x5] sm:$0x1] %vm378, %v428
        %v431 = vld [vmem:[#allocation2] sm:$0x1]
        %v433 = vlaneseq
        %v434 = vshrl.u32 %v433, 7
        %v435 = vsub.s32 0, %v434
        %v436 = vrot.slane %v431, %v435
        %437 = vrot.lane.b32.xlu0 %v436, 83
        %v438 = vpop.permute.xlu0 %437
        %440 = vst.msk [vmem:[#allocation4 + $0x6] sm:$0x1] %vm378, %v438
        %v441 = vld [vmem:[#allocation3] sm:$0x1]
        %v443 = vlaneseq
        %v444 = vshrl.u32 %v443, 7
        %v445 = vsub.s32 0, %v444
        %v446 = vrot.slane %v441, %v445
        %447 = vrot.lane.b32.xlu0 %v446, 83
        %v448 = vpop.permute.xlu0 %447
        %450 = vst.msk [vmem:[%s389 + $0x6] sm:$0x1] %vm378, %v448
        %v451 = vld [vmem:[#allocation2] sm:$0x1]
        %v453 = vlaneseq
        %v454 = vshrl.u32 %v453, 7
        %v455 = vsub.s32 0, %v454
        %v456 = vrot.slane %v451, %v455
        %457 = vrot.lane.b32.xlu0 %v456, 67
        %v458 = vpop.permute.xlu0 %457
        %460 = vst.msk [vmem:[#allocation4 + $0x7] sm:$0x1] %vm378, %v458
        %v461 = vld [vmem:[#allocation3] sm:$0x1]
        %v463 = vlaneseq
        %v464 = vshrl.u32 %v463, 7
        %v465 = vsub.s32 0, %v464
        %v466 = vrot.slane %v461, %v465
        %467 = vrot.lane.b32.xlu0 %v466, 67
        %v468 = vpop.permute.xlu0 %467
        %470 = vst.msk [vmem:[%s389 + $0x7] sm:$0x1] %vm378, %v468
        %v471 = vld [vmem:[#allocation2] sm:$0x1]
        %v473 = vlaneseq
        %v474 = vshrl.u32 %v473, 7
        %v475 = vsub.s32 0, %v474
        %v476 = vrot.slane %v471, %v475
        %477 = vrot.lane.b32.xlu0 %v476, 51
        %v478 = vpop.permute.xlu0 %477
        %480 = vst.msk [vmem:[#allocation4 + $0x8] sm:$0x1] %vm378, %v478
        %v481 = vld [vmem:[#allocation3] sm:$0x1]
        %v483 = vlaneseq
        %v484 = vshrl.u32 %v483, 7
        %v485 = vsub.s32 0, %v484
        %v486 = vrot.slane %v481, %v485
        %487 = vrot.lane.b32.xlu0 %v486, 51
        %v488 = vpop.permute.xlu0 %487
        %490 = vst.msk [vmem:[%s389 + $0x8] sm:$0x1] %vm378, %v488
        %v491 = vld [vmem:[#allocation2] sm:$0x1]
        %v493 = vlaneseq
        %v494 = vshrl.u32 %v493, 7
        %v495 = vsub.s32 0, %v494
        %v496 = vrot.slane %v491, %v495
        %497 = vrot.lane.b32.xlu0 %v496, 35
        %v498 = vpop.permute.xlu0 %497
        %500 = vst.msk [vmem:[#allocation4 + $0x9] sm:$0x1] %vm378, %v498
        %v501 = vld [vmem:[#allocation3] sm:$0x1]
        %v503 = vlaneseq
        %v504 = vshrl.u32 %v503, 7
        %v505 = vsub.s32 0, %v504
        %v506 = vrot.slane %v501, %v505
        %507 = vrot.lane.b32.xlu0 %v506, 35
        %v508 = vpop.permute.xlu0 %507
        %510 = vst.msk [vmem:[%s389 + $0x9] sm:$0x1] %vm378, %v508
        %v511 = vld [vmem:[#allocation2] sm:$0x1]
        %v513 = vlaneseq
        %v514 = vshrl.u32 %v513, 7
        %v515 = vsub.s32 0, %v514
        %v516 = vrot.slane %v511, %v515
        %517 = vrot.lane.b32.xlu0 %v516, 19
        %v518 = vpop.permute.xlu0 %517
        %520 = vst.msk [vmem:[#allocation4 + $0xa] sm:$0x1] %vm378, %v518
        %v521 = vld [vmem:[#allocation3] sm:$0x1]
        %v523 = vlaneseq
        %v524 = vshrl.u32 %v523, 7
        %v525 = vsub.s32 0, %v524
        %v526 = vrot.slane %v521, %v525
        %527 = vrot.lane.b32.xlu0 %v526, 19
        %v528 = vpop.permute.xlu0 %527
        %530 = vst.msk [vmem:[%s389 + $0xa] sm:$0x1] %vm378, %v528
        %v531 = vld [vmem:[#allocation2 + $0x1] sm:$0x1]
        %v533 = vlaneseq
        %v534 = vshrl.u32 %v533, 7
        %v535 = vsub.s32 0, %v534
        %v536 = vrot.slane %v531, %v535
        %537 = vrot.lane.b32.xlu0 %v536, 3
        %v538 = vpop.permute.xlu0 %537
        %540 = vst.msk [vmem:[#allocation4 + $0xb] sm:$0x1] %vm378, %v538
        %v541 = vld [vmem:[#allocation3 + $0x1] sm:$0x1]
        %v543 = vlaneseq
        %v544 = vshrl.u32 %v543, 7
        %v545 = vsub.s32 0, %v544
        %v546 = vrot.slane %v541, %v545
        %547 = vrot.lane.b32.xlu0 %v546, 3
        %v548 = vpop.permute.xlu0 %547
        %550 = vst.msk [vmem:[%s389 + $0xb] sm:$0x1] %vm378, %v548
        %v551 = vld [vmem:[#allocation2 + $0x1] sm:$0x1]
        %v553 = vlaneseq
        %v554 = vshrl.u32 %v553, 7
        %v555 = vsub.s32 0, %v554
        %v556 = vrot.slane %v551, %v555
        %557 = vrot.lane.b32.xlu0 %v556, 115
        %v558 = vpop.permute.xlu0 %557
        %560 = vst.msk [vmem:[#allocation4 + $0xc] sm:$0x1] %vm378, %v558
        %v561 = vld [vmem:[#allocation3 + $0x1] sm:$0x1]
        %v563 = vlaneseq
        %v564 = vshrl.u32 %v563, 7
        %v565 = vsub.s32 0, %v564
        %v566 = vrot.slane %v561, %v565
        %567 = vrot.lane.b32.xlu0 %v566, 115
        %v568 = vpop.permute.xlu0 %567
        %570 = vst.msk [vmem:[%s389 + $0xc] sm:$0x1] %vm378, %v568
        %v571 = vld [vmem:[#allocation2 + $0x1] sm:$0x1]
        %v573 = vlaneseq
        %v574 = vshrl.u32 %v573, 7
        %v575 = vsub.s32 0, %v574
        %v576 = vrot.slane %v571, %v575
        %577 = vrot.lane.b32.xlu0 %v576, 99
        %v578 = vpop.permute.xlu0 %577
        %580 = vst.msk [vmem:[#allocation4 + $0xd] sm:$0x1] %vm378, %v578
        %v581 = vld [vmem:[#allocation3 + $0x1] sm:$0x1]
        %v583 = vlaneseq
        %v584 = vshrl.u32 %v583, 7
        %v585 = vsub.s32 0, %v584
        %v586 = vrot.slane %v581, %v585
        %587 = vrot.lane.b32.xlu0 %v586, 99
        %v588 = vpop.permute.xlu0 %587
        %590 = vst.msk [vmem:[%s389 + $0xd] sm:$0x1] %vm378, %v588
        %v591 = vld [vmem:[#allocation2 + $0x1] sm:$0x1]
        %v593 = vlaneseq
        %v594 = vshrl.u32 %v593, 7
        %v595 = vsub.s32 0, %v594
        %v596 = vrot.slane %v591, %v595
        %597 = vrot.lane.b32.xlu0 %v596, 83
        %v598 = vpop.permute.xlu0 %597
        %600 = vst.msk [vmem:[#allocation4 + $0xe] sm:$0x1] %vm378, %v598
        %v601 = vld [vmem:[#allocation3 + $0x1] sm:$0x1]
        %v603 = vlaneseq
        %v604 = vshrl.u32 %v603, 7
        %v605 = vsub.s32 0, %v604
        %v606 = vrot.slane %v601, %v605
        %607 = vrot.lane.b32.xlu0 %v606, 83
        %v608 = vpop.permute.xlu0 %607
        %610 = vst.msk [vmem:[%s389 + $0xe] sm:$0x1] %vm378, %v608
        %v611 = vld [vmem:[#allocation2 + $0x1] sm:$0x1]
        %v613 = vlaneseq
        %v614 = vshrl.u32 %v613, 7
        %v615 = vsub.s32 0, %v614
        %v616 = vrot.slane %v611, %v615
        %617 = vrot.lane.b32.xlu0 %v616, 67
        %v618 = vpop.permute.xlu0 %617
        %620 = vst.msk [vmem:[#allocation4 + $0xf] sm:$0x1] %vm378, %v618
        %v621 = vld [vmem:[#allocation3 + $0x1] sm:$0x1]
        %v623 = vlaneseq
        %v624 = vshrl.u32 %v623, 7
        %v625 = vsub.s32 0, %v624
        %v626 = vrot.slane %v621, %v625
        %627 = vrot.lane.b32.xlu0 %v626, 67
        %v628 = vpop.permute.xlu0 %627
        %630 = vst.msk [vmem:[%s389 + $0xf] sm:$0x1] %vm378, %v628
        %v631 = vld [vmem:[#allocation2 + $0x1] sm:$0x1]
        %v633 = vlaneseq
        %v634 = vshrl.u32 %v633, 7
        %v635 = vsub.s32 0, %v634
        %v636 = vrot.slane %v631, %v635
        %637 = vrot.lane.b32.xlu0 %v636, 51
        %v638 = vpop.permute.xlu0 %637
        %640 = vst.msk [vmem:[#allocation4 + $0x10] sm:$0x1] %vm378, %v638
        %v641 = vld [vmem:[#allocation3 + $0x1] sm:$0x1]
        %v643 = vlaneseq
        %v644 = vshrl.u32 %v643, 7
        %v645 = vsub.s32 0, %v644
        %v646 = vrot.slane %v641, %v645
        %647 = vrot.lane.b32.xlu0 %v646, 51
        %v648 = vpop.permute.xlu0 %647
        %650 = vst.msk [vmem:[%s389 + $0x10] sm:$0x1] %vm378, %v648
        %v651 = vld [vmem:[#allocation2 + $0x1] sm:$0x1]
        %v653 = vlaneseq
        %v654 = vshrl.u32 %v653, 7
        %v655 = vsub.s32 0, %v654
        %v656 = vrot.slane %v651, %v655
        %657 = vrot.lane.b32.xlu0 %v656, 35
        %v658 = vpop.permute.xlu0 %657
        %660 = vst.msk [vmem:[#allocation4 + $0x11] sm:$0x1] %vm378, %v658
        %v661 = vld [vmem:[#allocation3 + $0x1] sm:$0x1]
        %v663 = vlaneseq
        %v664 = vshrl.u32 %v663, 7
        %v665 = vsub.s32 0, %v664
        %v666 = vrot.slane %v661, %v665
        %667 = vrot.lane.b32.xlu0 %v666, 35
        %v668 = vpop.permute.xlu0 %667
        %670 = vst.msk [vmem:[%s389 + $0x11] sm:$0x1] %vm378, %v668
        %v671 = vld [vmem:[#allocation2 + $0x1] sm:$0x1]
        %v673 = vlaneseq
        %v674 = vshrl.u32 %v673, 7
        %v675 = vsub.s32 0, %v674
        %v676 = vrot.slane %v671, %v675
        %677 = vrot.lane.b32.xlu0 %v676, 19
        %v678 = vpop.permute.xlu0 %677
        %680 = vst.msk [vmem:[#allocation4 + $0x12] sm:$0x1] %vm378, %v678
        %v681 = vld [vmem:[#allocation3 + $0x1] sm:$0x1]
        %v683 = vlaneseq
        %v684 = vshrl.u32 %v683, 7
        %v685 = vsub.s32 0, %v684
        %v686 = vrot.slane %v681, %v685
        %687 = vrot.lane.b32.xlu0 %v686, 19
        %v688 = vpop.permute.xlu0 %687
        %690 = vst.msk [vmem:[%s389 + $0x12] sm:$0x1] %vm378, %v688
        %v691 = vld [vmem:[#allocation4] sm:$0xff]
        %v692 = vld [vmem:[#allocation4 + $0x8] sm:$0xff]
        %v693 = vld [vmem:[#allocation4 + $0x10] sm:$0x3f]
        %vm694 = vcmask 130048
        %695 = vst.msk [vmem:[#allocation5] sm:$0xff] %vm694, %v691
        %696 = vst.msk [vmem:[#allocation5 + $0x8] sm:$0xff] %vm694, %v692
        %vm697 = vcmask 128000
        %698 = vst.msk [vmem:[#allocation5 + $0x10] sm:$0x3f] %vm697, %v693
        %v699 = vld [vmem:[#allocation4] sm:$0xff]
        %v700 = vld [vmem:[#allocation4 + $0x8] sm:$0xff]
        %v701 = vld [vmem:[#allocation4 + $0x10] sm:$0x3f]
        %705 = vrot.lane.b32.xlu0 %v699, 127
        %v706 = vpop.permute.xlu0 %705
        %707 = vrot.lane.b32.xlu0 %v700, 127
        %v708 = vpop.permute.xlu0 %707
        %709 = vrot.lane.b32.xlu0 %v701, 127
        %v710 = vpop.permute.xlu0 %709
        %s714 = scalar_lea.vmem [#allocation5], 24
        %715 = vst.msk [vmem:[%s714] sm:$0xff] %vm694, %v706
        %716 = vst.msk [vmem:[%s714 + $0x8] sm:$0xff] %vm694, %v708
        %717 = vst.msk [vmem:[%s714 + $0x10] sm:$0x3f] %vm697, %v710
        %v718 = vld [vmem:[#allocation4] sm:$0xff]
        %v719 = vld [vmem:[#allocation4 + $0x8] sm:$0xff]
        %v720 = vld [vmem:[#allocation4 + $0x10] sm:$0x3f]
        %724 = vrot.lane.b32.xlu0 %v718, 126
        %v725 = vpop.permute.xlu0 %724
        %726 = vrot.lane.b32.xlu0 %v719, 126
        %v727 = vpop.permute.xlu0 %726
        %728 = vrot.lane.b32.xlu0 %v720, 126
        %v729 = vpop.permute.xlu0 %728
        %s733 = scalar_lea.vmem [#allocation5], 48
        %734 = vst.msk [vmem:[%s733] sm:$0xff] %vm694, %v725
        %735 = vst.msk [vmem:[%s733 + $0x8] sm:$0xff] %vm694, %v727
        %736 = vst.msk [vmem:[%s733 + $0x10] sm:$0x3f] %vm697, %v729
        %v737 = vld [vmem:[#allocation4] sm:$0xff]
        %v738 = vld [vmem:[#allocation4 + $0x8] sm:$0xff]
        %v739 = vld [vmem:[#allocation4 + $0x10] sm:$0x3f]
        %743 = vrot.lane.b32.xlu0 %v737, 125
        %v744 = vpop.permute.xlu0 %743
        %745 = vrot.lane.b32.xlu0 %v738, 125
        %v746 = vpop.permute.xlu0 %745
        %747 = vrot.lane.b32.xlu0 %v739, 125
        %v748 = vpop.permute.xlu0 %747
        %s752 = scalar_lea.vmem [#allocation5], 72
        %753 = vst.msk [vmem:[%s752] sm:$0xff] %vm694, %v744
        %754 = vst.msk [vmem:[%s752 + $0x8] sm:$0xff] %vm694, %v746
        %755 = vst.msk [vmem:[%s752 + $0x10] sm:$0x3f] %vm697, %v748
        %v756 = vld [vmem:[#allocation4] sm:$0xff]
        %v757 = vld [vmem:[#allocation4 + $0x8] sm:$0xff]
        %v758 = vld [vmem:[#allocation4 + $0x10] sm:$0x3f]
        %762 = vrot.lane.b32.xlu0 %v756, 124
        %v763 = vpop.permute.xlu0 %762
        %764 = vrot.lane.b32.xlu0 %v757, 124
        %v765 = vpop.permute.xlu0 %764
        %766 = vrot.lane.b32.xlu0 %v758, 124
        %v767 = vpop.permute.xlu0 %766
        %s771 = scalar_lea.vmem [#allocation5], 96
        %772 = vst.msk [vmem:[%s771] sm:$0xff] %vm694, %v763
        %773 = vst.msk [vmem:[%s771 + $0x8] sm:$0xff] %vm694, %v765
        %774 = vst.msk [vmem:[%s771 + $0x10] sm:$0x3f] %vm697, %v767
        %v775 = vld [vmem:[#allocation4] sm:$0xff]
        %v776 = vld [vmem:[#allocation4 + $0x8] sm:$0xff]
        %v777 = vld [vmem:[#allocation4 + $0x10] sm:$0x3f]
        %781 = vrot.lane.b32.xlu0 %v775, 123
        %v782 = vpop.permute.xlu0 %781
        %783 = vrot.lane.b32.xlu0 %v776, 123
        %v784 = vpop.permute.xlu0 %783
        %785 = vrot.lane.b32.xlu0 %v777, 123
        %v786 = vpop.permute.xlu0 %785
        %s790 = scalar_lea.vmem [#allocation5], 120
        %791 = vst.msk [vmem:[%s790] sm:$0xff] %vm694, %v782
        %792 = vst.msk [vmem:[%s790 + $0x8] sm:$0xff] %vm694, %v784
        %793 = vst.msk [vmem:[%s790 + $0x10] sm:$0x3f] %vm697, %v786
        %v794 = vld [vmem:[#allocation4] sm:$0xff]
        %v795 = vld [vmem:[#allocation4 + $0x8] sm:$0xff]
        %v796 = vld [vmem:[#allocation4 + $0x10] sm:$0x3f]
        %800 = vrot.lane.b32.xlu0 %v794, 122
        %v801 = vpop.permute.xlu0 %800
        %802 = vrot.lane.b32.xlu0 %v795, 122
        %v803 = vpop.permute.xlu0 %802
        %804 = vrot.lane.b32.xlu0 %v796, 122
        %v805 = vpop.permute.xlu0 %804
        %s809 = scalar_lea.vmem [#allocation5], 144
        %810 = vst.msk [vmem:[%s809] sm:$0xff] %vm694, %v801
        %811 = vst.msk [vmem:[%s809 + $0x8] sm:$0xff] %vm694, %v803
        %812 = vst.msk [vmem:[%s809 + $0x10] sm:$0x3f] %vm697, %v805
        %v813 = vld [vmem:[%s389] sm:$0xff]
        %v814 = vld [vmem:[%s389 + $0x8] sm:$0xff]
        %v815 = vld [vmem:[%s389 + $0x10] sm:$0x3f]
        %s816 = scalar_lea.vmem [#allocation5], 168
        %817 = vst.msk [vmem:[%s816] sm:$0xff] %vm694, %v813
        %818 = vst.msk [vmem:[%s816 + $0x8] sm:$0xff] %vm694, %v814
        %819 = vst.msk [vmem:[%s816 + $0x10] sm:$0x3f] %vm697, %v815
        %v820 = vld [vmem:[%s389] sm:$0xff]
        %v821 = vld [vmem:[%s389 + $0x8] sm:$0xff]
        %v822 = vld [vmem:[%s389 + $0x10] sm:$0x3f]
        %826 = vrot.lane.b32.xlu0 %v820, 127
        %v827 = vpop.permute.xlu0 %826
        %828 = vrot.lane.b32.xlu0 %v821, 127
        %v829 = vpop.permute.xlu0 %828
        %830 = vrot.lane.b32.xlu0 %v822, 127
        %v831 = vpop.permute.xlu0 %830
        %s835 = scalar_lea.vmem [#allocation5], 192
        %836 = vst.msk [vmem:[%s835] sm:$0xff] %vm694, %v827
        %837 = vst.msk [vmem:[%s835 + $0x8] sm:$0xff] %vm694, %v829
        %838 = vst.msk [vmem:[%s835 + $0x10] sm:$0x3f] %vm697, %v831
        %v839 = vld [vmem:[%s389] sm:$0xff]
        %v840 = vld [vmem:[%s389 + $0x8] sm:$0xff]
        %v841 = vld [vmem:[%s389 + $0x10] sm:$0x3f]
        %845 = vrot.lane.b32.xlu0 %v839, 126
        %v846 = vpop.permute.xlu0 %845
        %847 = vrot.lane.b32.xlu0 %v840, 126
        %v848 = vpop.permute.xlu0 %847
        %849 = vrot.lane.b32.xlu0 %v841, 126
        %v850 = vpop.permute.xlu0 %849
        %s854 = scalar_lea.vmem [#allocation5], 216
        %855 = vst.msk [vmem:[%s854] sm:$0xff] %vm694, %v846
        %856 = vst.msk [vmem:[%s854 + $0x8] sm:$0xff] %vm694, %v848
        %857 = vst.msk [vmem:[%s854 + $0x10] sm:$0x3f] %vm697, %v850
        %v858 = vld [vmem:[%s389] sm:$0xff]
        %v859 = vld [vmem:[%s389 + $0x8] sm:$0xff]
        %v860 = vld [vmem:[%s389 + $0x10] sm:$0x3f]
        %864 = vrot.lane.b32.xlu0 %v858, 125
        %v865 = vpop.permute.xlu0 %864
        %866 = vrot.lane.b32.xlu0 %v859, 125
        %v867 = vpop.permute.xlu0 %866
        %868 = vrot.lane.b32.xlu0 %v860, 125
        %v869 = vpop.permute.xlu0 %868
        %s873 = scalar_lea.vmem [#allocation5], 240
        %874 = vst.msk [vmem:[%s873] sm:$0xff] %vm694, %v865
        %875 = vst.msk [vmem:[%s873 + $0x8] sm:$0xff] %vm694, %v867
        %876 = vst.msk [vmem:[%s873 + $0x10] sm:$0x3f] %vm697, %v869
        %v877 = vld [vmem:[%s389] sm:$0xff]
        %v878 = vld [vmem:[%s389 + $0x8] sm:$0xff]
        %v879 = vld [vmem:[%s389 + $0x10] sm:$0x3f]
        %883 = vrot.lane.b32.xlu0 %v877, 124
        %v884 = vpop.permute.xlu0 %883
        %885 = vrot.lane.b32.xlu0 %v878, 124
        %v886 = vpop.permute.xlu0 %885
        %887 = vrot.lane.b32.xlu0 %v879, 124
        %v888 = vpop.permute.xlu0 %887
        %s892 = scalar_lea.vmem [#allocation5], 264
        %893 = vst.msk [vmem:[%s892] sm:$0xff] %vm694, %v884
        %894 = vst.msk [vmem:[%s892 + $0x8] sm:$0xff] %vm694, %v886
        %895 = vst.msk [vmem:[%s892 + $0x10] sm:$0x3f] %vm697, %v888
        %v896 = vld [vmem:[%s389] sm:$0xff]
        %v897 = vld [vmem:[%s389 + $0x8] sm:$0xff]
        %v898 = vld [vmem:[%s389 + $0x10] sm:$0x3f]
        %902 = vrot.lane.b32.xlu0 %v896, 123
        %v903 = vpop.permute.xlu0 %902
        %904 = vrot.lane.b32.xlu0 %v897, 123
        %v905 = vpop.permute.xlu0 %904
        %906 = vrot.lane.b32.xlu0 %v898, 123
        %v907 = vpop.permute.xlu0 %906
        %s911 = scalar_lea.vmem [#allocation5], 288
        %912 = vst.msk [vmem:[%s911] sm:$0xff] %vm694, %v903
        %913 = vst.msk [vmem:[%s911 + $0x8] sm:$0xff] %vm694, %v905
        %914 = vst.msk [vmem:[%s911 + $0x10] sm:$0x3f] %vm697, %v907
        %v915 = vld [vmem:[%s389] sm:$0xff]
        %v916 = vld [vmem:[%s389 + $0x8] sm:$0xff]
        %v917 = vld [vmem:[%s389 + $0x10] sm:$0x3f]
        %921 = vrot.lane.b32.xlu0 %v915, 122
        %v922 = vpop.permute.xlu0 %921
        %923 = vrot.lane.b32.xlu0 %v916, 122
        %v924 = vpop.permute.xlu0 %923
        %925 = vrot.lane.b32.xlu0 %v917, 122
        %v926 = vpop.permute.xlu0 %925
        %s930 = scalar_lea.vmem [#allocation5], 312
        %931 = vst.msk [vmem:[%s930] sm:$0xff] %vm694, %v922
        %932 = vst.msk [vmem:[%s930 + $0x8] sm:$0xff] %vm694, %v924
        %933 = vst.msk [vmem:[%s930 + $0x10] sm:$0x3f] %vm697, %v926
        %v934 = vld [vmem:[#allocation5] sm:$0xff]
        %v935 = vld [vmem:[#allocation5 + $0x8] sm:$0xff]
        %v936 = vstv %s271
        %v937 = vmul.f32 %v936, %v934
        %v938 = vmul.f32 %v936, %v935
        %v939 = vld [vmem:[%s714] sm:$0xff]
        %v940 = vld [vmem:[%s714 + $0x8] sm:$0xff]
        %v941 = vstv %s272
        %v942 = vmul.f32 %v941, %v939
        %v943 = vmul.f32 %v941, %v940
        %v944 = vld [vmem:[%s733] sm:$0xff]
        %v945 = vld [vmem:[%s733 + $0x8] sm:$0xff]
        %v946 = vstv %s273
        %v947 = vmul.f32 %v946, %v944
        %v948 = vmul.f32 %v946, %v945
        %v949 = vld [vmem:[%s752] sm:$0xff]
        %v950 = vld [vmem:[%s752 + $0x8] sm:$0xff]
        %v951 = vstv %s274
        %v952 = vmul.f32 %v951, %v949
        %v953 = vmul.f32 %v951, %v950
        %v954 = vld [vmem:[%s771] sm:$0xff]
        %v955 = vld [vmem:[%s771 + $0x8] sm:$0xff]
        %v956 = vstv %s275
        %v957 = vmul.f32 %v956, %v954
        %v958 = vmul.f32 %v956, %v955
        %v959 = vadd.f32 %v937, %v957
        %v960 = vadd.f32 %v938, %v958
        %v961 = vld [vmem:[%s790] sm:$0xff]
        %v962 = vld [vmem:[%s790 + $0x8] sm:$0xff]
        %v963 = vstv %s276
        %v964 = vmul.f32 %v963, %v961
        %v965 = vmul.f32 %v963, %v962
        %v966 = vadd.f32 %v942, %v964
        %v967 = vadd.f32 %v943, %v965
        %v968 = vld [vmem:[%s809] sm:$0xff]
        %v969 = vld [vmem:[%s809 + $0x8] sm:$0xff]
        %v970 = vstv %s277
        %v971 = vmul.f32 %v970, %v968
        %v972 = vmul.f32 %v970, %v969
        %v973 = vadd.f32 %v947, %v971
        %v974 = vadd.f32 %v948, %v972
        %v975 = vld [vmem:[#allocation5 + $0x1] sm:$0xff]
        %v976 = vld [vmem:[#allocation5 + $0x9] sm:$0xff]
        %v977 = vstv %s278
        %v978 = vmul.f32 %v977, %v975
        %v979 = vmul.f32 %v977, %v976
        %v980 = vadd.f32 %v952, %v978
        %v981 = vadd.f32 %v953, %v979
        %v982 = vld [vmem:[%s714 + $0x1] sm:$0xff]
        %v983 = vld [vmem:[%s714 + $0x9] sm:$0xff]
        %v984 = vstv %s279
        %v985 = vmul.f32 %v984, %v982
        %v986 = vmul.f32 %v984, %v983
        %v987 = vadd.f32 %v959, %v985
        %v988 = vadd.f32 %v960, %v986
        %v989 = vld [vmem:[%s733 + $0x1] sm:$0xff]
        %v990 = vld [vmem:[%s733 + $0x9] sm:$0xff]
        %v991 = vstv %s280
        %v992 = vmul.f32 %v991, %v989
        %v993 = vmul.f32 %v991, %v990
        %v994 = vadd.f32 %v966, %v992
        %v995 = vadd.f32 %v967, %v993
        %v996 = vld [vmem:[%s752 + $0x1] sm:$0xff]
        %v997 = vld [vmem:[%s752 + $0x9] sm:$0xff]
        %v998 = vstv %s281
        %v999 = vmul.f32 %v998, %v996
        %v1000 = vmul.f32 %v998, %v997
        %v1001 = vadd.f32 %v973, %v999
        %v1002 = vadd.f32 %v974, %v1000
        %v1003 = vld [vmem:[%s771 + $0x1] sm:$0xff]
        %v1004 = vld [vmem:[%s771 + $0x9] sm:$0xff]
        %v1005 = vstv %s282
        %v1006 = vmul.f32 %v1005, %v1003
        %v1007 = vmul.f32 %v1005, %v1004
        %v1008 = vadd.f32 %v980, %v1006
        %v1009 = vadd.f32 %v981, %v1007
        %v1010 = vld [vmem:[%s790 + $0x1] sm:$0xff]
        %v1011 = vld [vmem:[%s790 + $0x9] sm:$0xff]
        %v1012 = vstv %s283
        %v1013 = vmul.f32 %v1012, %v1010
        %v1014 = vmul.f32 %v1012, %v1011
        %v1015 = vadd.f32 %v987, %v1013
        %v1016 = vadd.f32 %v988, %v1014
        %v1017 = vld [vmem:[%s809 + $0x1] sm:$0xff]
        %v1018 = vld [vmem:[%s809 + $0x9] sm:$0xff]
        %v1019 = vstv %s284
        %v1020 = vmul.f32 %v1019, %v1017
        %v1021 = vmul.f32 %v1019, %v1018
        %v1022 = vadd.f32 %v994, %v1020
        %v1023 = vadd.f32 %v995, %v1021
        %v1024 = vld [vmem:[#allocation5 + $0x2] sm:$0xff]
        %v1025 = vld [vmem:[#allocation5 + $0xa] sm:$0xff]
        %v1026 = vstv %s285
        %v1027 = vmul.f32 %v1026, %v1024
        %v1028 = vmul.f32 %v1026, %v1025
        %v1029 = vadd.f32 %v1001, %v1027
        %v1030 = vadd.f32 %v1002, %v1028
        %v1031 = vld [vmem:[%s714 + $0x2] sm:$0xff]
        %v1032 = vld [vmem:[%s714 + $0xa] sm:$0xff]
        %v1033 = vstv %s286
        %v1034 = vmul.f32 %v1033, %v1031
        %v1035 = vmul.f32 %v1033, %v1032
        %v1036 = vadd.f32 %v1008, %v1034
        %v1037 = vadd.f32 %v1009, %v1035
        %v1038 = vld [vmem:[%s733 + $0x2] sm:$0xff]
        %v1039 = vld [vmem:[%s733 + $0xa] sm:$0xff]
        %v1040 = vstv %s287
        %v1041 = vmul.f32 %v1040, %v1038
        %v1042 = vmul.f32 %v1040, %v1039
        %v1043 = vadd.f32 %v1015, %v1041
        %v1044 = vadd.f32 %v1016, %v1042
        %v1045 = vld [vmem:[%s752 + $0x2] sm:$0xff]
        %v1046 = vld [vmem:[%s752 + $0xa] sm:$0xff]
        %v1047 = vstv %s288
        %v1048 = vmul.f32 %v1047, %v1045
        %v1049 = vmul.f32 %v1047, %v1046
        %v1050 = vadd.f32 %v1022, %v1048
        %v1051 = vadd.f32 %v1023, %v1049
        %v1052 = vld [vmem:[%s771 + $0x2] sm:$0xff]
        %v1053 = vld [vmem:[%s771 + $0xa] sm:$0xff]
        %v1054 = vstv %s289
        %v1055 = vmul.f32 %v1054, %v1052
        %v1056 = vmul.f32 %v1054, %v1053
        %v1057 = vadd.f32 %v1029, %v1055
        %v1058 = vadd.f32 %v1030, %v1056
        %v1059 = vld [vmem:[%s790 + $0x2] sm:$0xff]
        %v1060 = vld [vmem:[%s790 + $0xa] sm:$0xff]
        %v1061 = vstv %s290
        %v1062 = vmul.f32 %v1061, %v1059
        %v1063 = vmul.f32 %v1061, %v1060
        %v1064 = vadd.f32 %v1036, %v1062
        %v1065 = vadd.f32 %v1037, %v1063
        %v1066 = vld [vmem:[%s809 + $0x2] sm:$0xff]
        %v1067 = vld [vmem:[%s809 + $0xa] sm:$0xff]
        %v1068 = vstv %s291
        %v1069 = vmul.f32 %v1068, %v1066
        %v1070 = vmul.f32 %v1068, %v1067
        %v1071 = vadd.f32 %v1043, %v1069
        %v1072 = vadd.f32 %v1044, %v1070
        %v1073 = vld [vmem:[#allocation5 + $0x3] sm:$0xff]
        %v1074 = vld [vmem:[#allocation5 + $0xb] sm:$0xff]
        %v1075 = vstv %s292
        %v1076 = vmul.f32 %v1075, %v1073
        %v1077 = vmul.f32 %v1075, %v1074
        %v1078 = vadd.f32 %v1050, %v1076
        %v1079 = vadd.f32 %v1051, %v1077
        %v1080 = vld [vmem:[%s714 + $0x3] sm:$0xff]
        %v1081 = vld [vmem:[%s714 + $0xb] sm:$0xff]
        %v1082 = vstv %s293
        %v1083 = vmul.f32 %v1082, %v1080
        %v1084 = vmul.f32 %v1082, %v1081
        %v1085 = vadd.f32 %v1057, %v1083
        %v1086 = vadd.f32 %v1058, %v1084
        %v1087 = vld [vmem:[%s733 + $0x3] sm:$0xff]
        %v1088 = vld [vmem:[%s733 + $0xb] sm:$0xff]
        %v1089 = vstv %s294
        %v1090 = vmul.f32 %v1089, %v1087
        %v1091 = vmul.f32 %v1089, %v1088
        %v1092 = vadd.f32 %v1064, %v1090
        %v1093 = vadd.f32 %v1065, %v1091
        %v1094 = vld [vmem:[%s752 + $0x3] sm:$0xff]
        %v1095 = vld [vmem:[%s752 + $0xb] sm:$0xff]
        %v1096 = vstv %s295
        %v1097 = vmul.f32 %v1096, %v1094
        %v1098 = vmul.f32 %v1096, %v1095
        %v1099 = vadd.f32 %v1071, %v1097
        %v1100 = vadd.f32 %v1072, %v1098
        %v1101 = vld [vmem:[%s771 + $0x3] sm:$0xff]
        %v1102 = vld [vmem:[%s771 + $0xb] sm:$0xff]
        %v1103 = vstv %s296
        %v1104 = vmul.f32 %v1103, %v1101
        %v1105 = vmul.f32 %v1103, %v1102
        %v1106 = vadd.f32 %v1078, %v1104
        %v1107 = vadd.f32 %v1079, %v1105
        %v1108 = vld [vmem:[%s790 + $0x3] sm:$0xff]
        %v1109 = vld [vmem:[%s790 + $0xb] sm:$0xff]
        %v1110 = vstv %s297
        %v1111 = vmul.f32 %v1110, %v1108
        %v1112 = vmul.f32 %v1110, %v1109
        %v1113 = vadd.f32 %v1085, %v1111
        %v1114 = vadd.f32 %v1086, %v1112
        %v1115 = vld [vmem:[%s809 + $0x3] sm:$0xff]
        %v1116 = vld [vmem:[%s809 + $0xb] sm:$0xff]
        %v1117 = vstv %s298
        %v1118 = vmul.f32 %v1117, %v1115
        %v1119 = vmul.f32 %v1117, %v1116
        %v1120 = vadd.f32 %v1092, %v1118
        %v1121 = vadd.f32 %v1093, %v1119
        %v1122 = vld [vmem:[#allocation5 + $0x4] sm:$0xff]
        %v1123 = vld [vmem:[#allocation5 + $0xc] sm:$0xff]
        %v1124 = vstv %s299
        %v1125 = vmul.f32 %v1124, %v1122
        %v1126 = vmul.f32 %v1124, %v1123
        %v1127 = vadd.f32 %v1099, %v1125
        %v1128 = vadd.f32 %v1100, %v1126
        %v1129 = vld [vmem:[%s714 + $0x4] sm:$0xff]
        %v1130 = vld [vmem:[%s714 + $0xc] sm:$0xff]
        %v1131 = vstv %s300
        %v1132 = vmul.f32 %v1131, %v1129
        %v1133 = vmul.f32 %v1131, %v1130
        %v1134 = vadd.f32 %v1106, %v1132
        %v1135 = vadd.f32 %v1107, %v1133
        %v1136 = vld [vmem:[%s733 + $0x4] sm:$0xff]
        %v1137 = vld [vmem:[%s733 + $0xc] sm:$0xff]
        %v1138 = vstv %s301
        %v1139 = vmul.f32 %v1138, %v1136
        %v1140 = vmul.f32 %v1138, %v1137
        %v1141 = vadd.f32 %v1113, %v1139
        %v1142 = vadd.f32 %v1114, %v1140
        %v1143 = vld [vmem:[%s752 + $0x4] sm:$0xff]
        %v1144 = vld [vmem:[%s752 + $0xc] sm:$0xff]
        %v1145 = vstv %s302
        %v1146 = vmul.f32 %v1145, %v1143
        %v1147 = vmul.f32 %v1145, %v1144
        %v1148 = vadd.f32 %v1120, %v1146
        %v1149 = vadd.f32 %v1121, %v1147
        %v1150 = vld [vmem:[%s771 + $0x4] sm:$0xff]
        %v1151 = vld [vmem:[%s771 + $0xc] sm:$0xff]
        %v1152 = vstv %s303
        %v1153 = vmul.f32 %v1152, %v1150
        %v1154 = vmul.f32 %v1152, %v1151
        %v1155 = vadd.f32 %v1127, %v1153
        %v1156 = vadd.f32 %v1128, %v1154
        %v1157 = vld [vmem:[%s790 + $0x4] sm:$0xff]
        %v1158 = vld [vmem:[%s790 + $0xc] sm:$0xff]
        %v1159 = vstv %s304
        %v1160 = vmul.f32 %v1159, %v1157
        %v1161 = vmul.f32 %v1159, %v1158
        %v1162 = vadd.f32 %v1134, %v1160
        %v1163 = vadd.f32 %v1135, %v1161
        %v1164 = vld [vmem:[%s809 + $0x4] sm:$0xff]
        %v1165 = vld [vmem:[%s809 + $0xc] sm:$0xff]
        %v1166 = vstv %s305
        %v1167 = vmul.f32 %v1166, %v1164
        %v1168 = vmul.f32 %v1166, %v1165
        %v1169 = vadd.f32 %v1141, %v1167
        %v1170 = vadd.f32 %v1142, %v1168
        %v1171 = vld [vmem:[#allocation5 + $0x5] sm:$0xff]
        %v1172 = vld [vmem:[#allocation5 + $0xd] sm:$0xff]
        %v1173 = vstv %s306
        %v1174 = vmul.f32 %v1173, %v1171
        %v1175 = vmul.f32 %v1173, %v1172
        %v1176 = vadd.f32 %v1148, %v1174
        %v1177 = vadd.f32 %v1149, %v1175
        %v1178 = vld [vmem:[%s714 + $0x5] sm:$0xff]
        %v1179 = vld [vmem:[%s714 + $0xd] sm:$0xff]
        %v1180 = vstv %s307
        %v1181 = vmul.f32 %v1180, %v1178
        %v1182 = vmul.f32 %v1180, %v1179
        %v1183 = vadd.f32 %v1155, %v1181
        %v1184 = vadd.f32 %v1156, %v1182
        %v1185 = vld [vmem:[%s733 + $0x5] sm:$0xff]
        %v1186 = vld [vmem:[%s733 + $0xd] sm:$0xff]
        %v1187 = vstv %s308
        %v1188 = vmul.f32 %v1187, %v1185
        %v1189 = vmul.f32 %v1187, %v1186
        %v1190 = vadd.f32 %v1162, %v1188
        %v1191 = vadd.f32 %v1163, %v1189
        %v1192 = vld [vmem:[%s752 + $0x5] sm:$0xff]
        %v1193 = vld [vmem:[%s752 + $0xd] sm:$0xff]
        %v1194 = vstv %s309
        %v1195 = vmul.f32 %v1194, %v1192
        %v1196 = vmul.f32 %v1194, %v1193
        %v1197 = vadd.f32 %v1169, %v1195
        %v1198 = vadd.f32 %v1170, %v1196
        %v1199 = vld [vmem:[%s771 + $0x5] sm:$0xff]
        %v1200 = vld [vmem:[%s771 + $0xd] sm:$0xff]
        %v1201 = vstv %s310
        %v1202 = vmul.f32 %v1201, %v1199
        %v1203 = vmul.f32 %v1201, %v1200
        %v1204 = vadd.f32 %v1176, %v1202
        %v1205 = vadd.f32 %v1177, %v1203
        %v1206 = vld [vmem:[%s790 + $0x5] sm:$0xff]
        %v1207 = vld [vmem:[%s790 + $0xd] sm:$0xff]
        %v1208 = vstv %s311
        %v1209 = vmul.f32 %v1208, %v1206
        %v1210 = vmul.f32 %v1208, %v1207
        %v1211 = vadd.f32 %v1183, %v1209
        %v1212 = vadd.f32 %v1184, %v1210
        %v1213 = vld [vmem:[%s809 + $0x5] sm:$0xff]
        %v1214 = vld [vmem:[%s809 + $0xd] sm:$0xff]
        %v1215 = vstv %s312
        %v1216 = vmul.f32 %v1215, %v1213
        %v1217 = vmul.f32 %v1215, %v1214
        %v1218 = vadd.f32 %v1190, %v1216
        %v1219 = vadd.f32 %v1191, %v1217
        %v1220 = vld [vmem:[#allocation5 + $0x6] sm:$0xff]
        %v1221 = vld [vmem:[#allocation5 + $0xe] sm:$0xff]
        %v1222 = vstv %s313
        %v1223 = vmul.f32 %v1222, %v1220
        %v1224 = vmul.f32 %v1222, %v1221
        %v1225 = vadd.f32 %v1197, %v1223
        %v1226 = vadd.f32 %v1198, %v1224
        %v1227 = vld [vmem:[%s714 + $0x6] sm:$0xff]
        %v1228 = vld [vmem:[%s714 + $0xe] sm:$0xff]
        %v1229 = vstv %s314
        %v1230 = vmul.f32 %v1229, %v1227
        %v1231 = vmul.f32 %v1229, %v1228
        %v1232 = vadd.f32 %v1204, %v1230
        %v1233 = vadd.f32 %v1205, %v1231
        %v1234 = vld [vmem:[%s733 + $0x6] sm:$0xff]
        %v1235 = vld [vmem:[%s733 + $0xe] sm:$0xff]
        %v1236 = vstv %s315
        %v1237 = vmul.f32 %v1236, %v1234
        %v1238 = vmul.f32 %v1236, %v1235
        %v1239 = vadd.f32 %v1211, %v1237
        %v1240 = vadd.f32 %v1212, %v1238
        %v1241 = vld [vmem:[%s752 + $0x6] sm:$0xff]
        %v1242 = vld [vmem:[%s752 + $0xe] sm:$0xff]
        %v1243 = vstv %s316
        %v1244 = vmul.f32 %v1243, %v1241
        %v1245 = vmul.f32 %v1243, %v1242
        %v1246 = vadd.f32 %v1218, %v1244
        %v1247 = vadd.f32 %v1219, %v1245
        %v1248 = vld [vmem:[%s771 + $0x6] sm:$0xff]
        %v1249 = vld [vmem:[%s771 + $0xe] sm:$0xff]
        %v1250 = vstv %s317
        %v1251 = vmul.f32 %v1250, %v1248
        %v1252 = vmul.f32 %v1250, %v1249
        %v1253 = vadd.f32 %v1225, %v1251
        %v1254 = vadd.f32 %v1226, %v1252
        %v1255 = vld [vmem:[%s790 + $0x6] sm:$0xff]
        %v1256 = vld [vmem:[%s790 + $0xe] sm:$0xff]
        %v1257 = vstv %s318
        %v1258 = vmul.f32 %v1257, %v1255
        %v1259 = vmul.f32 %v1257, %v1256
        %v1260 = vadd.f32 %v1232, %v1258
        %v1261 = vadd.f32 %v1233, %v1259
        %v1262 = vld [vmem:[%s809 + $0x6] sm:$0xff]
        %v1263 = vld [vmem:[%s809 + $0xe] sm:$0xff]
        %v1264 = vstv %s319
        %v1265 = vmul.f32 %v1264, %v1262
        %v1266 = vmul.f32 %v1264, %v1263
        %v1267 = vadd.f32 %v1239, %v1265
        %v1268 = vadd.f32 %v1240, %v1266
        %v1269 = vld [vmem:[%s816] sm:$0xff]
        %v1270 = vld [vmem:[%s816 + $0x8] sm:$0xff]
        %v1271 = vstv %s320
        %v1272 = vmul.f32 %v1271, %v1269
        %v1273 = vmul.f32 %v1271, %v1270
        %v1274 = vadd.f32 %v1246, %v1272
        %v1275 = vadd.f32 %v1247, %v1273
        %v1276 = vld [vmem:[%s835] sm:$0xff]
        %v1277 = vld [vmem:[%s835 + $0x8] sm:$0xff]
        %v1278 = vstv %s321
        %v1279 = vmul.f32 %v1278, %v1276
        %v1280 = vmul.f32 %v1278, %v1277
        %v1281 = vadd.f32 %v1253, %v1279
        %v1282 = vadd.f32 %v1254, %v1280
        %v1283 = vld [vmem:[%s854] sm:$0xff]
        %v1284 = vld [vmem:[%s854 + $0x8] sm:$0xff]
        %v1285 = vstv %s322
        %v1286 = vmul.f32 %v1285, %v1283
        %v1287 = vmul.f32 %v1285, %v1284
        %v1288 = vadd.f32 %v1260, %v1286
        %v1289 = vadd.f32 %v1261, %v1287
        %v1290 = vld [vmem:[%s873] sm:$0xff]
        %v1291 = vld [vmem:[%s873 + $0x8] sm:$0xff]
        %v1292 = vstv %s323
        %v1293 = vmul.f32 %v1292, %v1290
        %v1294 = vmul.f32 %v1292, %v1291
        %v1295 = vadd.f32 %v1267, %v1293
        %v1296 = vadd.f32 %v1268, %v1294
        %v1297 = vld [vmem:[%s892] sm:$0xff]
        %v1298 = vld [vmem:[%s892 + $0x8] sm:$0xff]
        %v1299 = vstv %s324
        %v1300 = vmul.f32 %v1299, %v1297
        %v1301 = vmul.f32 %v1299, %v1298
        %v1302 = vadd.f32 %v1274, %v1300
        %v1303 = vadd.f32 %v1275, %v1301
        %v1304 = vld [vmem:[%s911] sm:$0xff]
        %v1305 = vld [vmem:[%s911 + $0x8] sm:$0xff]
        %v1306 = vstv %s325
        %v1307 = vmul.f32 %v1306, %v1304
        %v1308 = vmul.f32 %v1306, %v1305
        %v1309 = vadd.f32 %v1281, %v1307
        %v1310 = vadd.f32 %v1282, %v1308
        %v1311 = vld [vmem:[%s930] sm:$0xff]
        %v1312 = vld [vmem:[%s930 + $0x8] sm:$0xff]
        %v1313 = vstv %s326
        %v1314 = vmul.f32 %v1313, %v1311
        %v1315 = vmul.f32 %v1313, %v1312
        %v1316 = vadd.f32 %v1288, %v1314
        %v1317 = vadd.f32 %v1289, %v1315
        %v1318 = vld [vmem:[%s816 + $0x1] sm:$0xff]
        %v1319 = vld [vmem:[%s816 + $0x9] sm:$0xff]
        %v1320 = vstv %s327
        %v1321 = vmul.f32 %v1320, %v1318
        %v1322 = vmul.f32 %v1320, %v1319
        %v1323 = vadd.f32 %v1295, %v1321
        %v1324 = vadd.f32 %v1296, %v1322
        %v1325 = vld [vmem:[%s835 + $0x1] sm:$0xff]
        %v1326 = vld [vmem:[%s835 + $0x9] sm:$0xff]
        %v1327 = vstv %s328
        %v1328 = vmul.f32 %v1327, %v1325
        %v1329 = vmul.f32 %v1327, %v1326
        %v1330 = vadd.f32 %v1302, %v1328
        %v1331 = vadd.f32 %v1303, %v1329
        %v1332 = vld [vmem:[%s854 + $0x1] sm:$0xff]
        %v1333 = vld [vmem:[%s854 + $0x9] sm:$0xff]
        %v1334 = vstv %s329
        %v1335 = vmul.f32 %v1334, %v1332
        %v1336 = vmul.f32 %v1334, %v1333
        %v1337 = vadd.f32 %v1309, %v1335
        %v1338 = vadd.f32 %v1310, %v1336
        %v1339 = vld [vmem:[%s873 + $0x1] sm:$0xff]
        %v1340 = vld [vmem:[%s873 + $0x9] sm:$0xff]
        %v1341 = vstv %s330
        %v1342 = vmul.f32 %v1341, %v1339
        %v1343 = vmul.f32 %v1341, %v1340
        %v1344 = vadd.f32 %v1316, %v1342
        %v1345 = vadd.f32 %v1317, %v1343
        %v1346 = vld [vmem:[%s892 + $0x1] sm:$0xff]
        %v1347 = vld [vmem:[%s892 + $0x9] sm:$0xff]
        %v1348 = vstv %s331
        %v1349 = vmul.f32 %v1348, %v1346
        %v1350 = vmul.f32 %v1348, %v1347
        %v1351 = vadd.f32 %v1323, %v1349
        %v1352 = vadd.f32 %v1324, %v1350
        %v1353 = vld [vmem:[%s911 + $0x1] sm:$0xff]
        %v1354 = vld [vmem:[%s911 + $0x9] sm:$0xff]
        %v1355 = vstv %s332
        %v1356 = vmul.f32 %v1355, %v1353
        %v1357 = vmul.f32 %v1355, %v1354
        %v1358 = vadd.f32 %v1330, %v1356
        %v1359 = vadd.f32 %v1331, %v1357
        %v1360 = vld [vmem:[%s930 + $0x1] sm:$0xff]
        %v1361 = vld [vmem:[%s930 + $0x9] sm:$0xff]
        %v1362 = vstv %s333
        %v1363 = vmul.f32 %v1362, %v1360
        %v1364 = vmul.f32 %v1362, %v1361
        %v1365 = vadd.f32 %v1337, %v1363
        %v1366 = vadd.f32 %v1338, %v1364
        %v1367 = vld [vmem:[%s816 + $0x2] sm:$0xff]
        %v1368 = vld [vmem:[%s816 + $0xa] sm:$0xff]
        %v1369 = vstv %s334
        %v1370 = vmul.f32 %v1369, %v1367
        %v1371 = vmul.f32 %v1369, %v1368
        %v1372 = vadd.f32 %v1344, %v1370
        %v1373 = vadd.f32 %v1345, %v1371
        %v1374 = vld [vmem:[%s835 + $0x2] sm:$0xff]
        %v1375 = vld [vmem:[%s835 + $0xa] sm:$0xff]
        %v1376 = vstv %s335
        %v1377 = vmul.f32 %v1376, %v1374
        %v1378 = vmul.f32 %v1376, %v1375
        %v1379 = vadd.f32 %v1351, %v1377
        %v1380 = vadd.f32 %v1352, %v1378
        %v1381 = vld [vmem:[%s854 + $0x2] sm:$0xff]
        %v1382 = vld [vmem:[%s854 + $0xa] sm:$0xff]
        %v1383 = vstv %s336
        %v1384 = vmul.f32 %v1383, %v1381
        %v1385 = vmul.f32 %v1383, %v1382
        %v1386 = vadd.f32 %v1358, %v1384
        %v1387 = vadd.f32 %v1359, %v1385
        %v1388 = vld [vmem:[%s873 + $0x2] sm:$0xff]
        %v1389 = vld [vmem:[%s873 + $0xa] sm:$0xff]
        %v1390 = vstv %s337
        %v1391 = vmul.f32 %v1390, %v1388
        %v1392 = vmul.f32 %v1390, %v1389
        %v1393 = vadd.f32 %v1365, %v1391
        %v1394 = vadd.f32 %v1366, %v1392
        %v1395 = vld [vmem:[%s892 + $0x2] sm:$0xff]
        %v1396 = vld [vmem:[%s892 + $0xa] sm:$0xff]
        %v1397 = vstv %s338
        %v1398 = vmul.f32 %v1397, %v1395
        %v1399 = vmul.f32 %v1397, %v1396
        %v1400 = vadd.f32 %v1372, %v1398
        %v1401 = vadd.f32 %v1373, %v1399
        %v1402 = vld [vmem:[%s911 + $0x2] sm:$0xff]
        %v1403 = vld [vmem:[%s911 + $0xa] sm:$0xff]
        %v1404 = vstv %s339
        %v1405 = vmul.f32 %v1404, %v1402
        %v1406 = vmul.f32 %v1404, %v1403
        %v1407 = vadd.f32 %v1379, %v1405
        %v1408 = vadd.f32 %v1380, %v1406
        %v1409 = vld [vmem:[%s930 + $0x2] sm:$0xff]
        %v1410 = vld [vmem:[%s930 + $0xa] sm:$0xff]
        %v1411 = vstv %s340
        %v1412 = vmul.f32 %v1411, %v1409
        %v1413 = vmul.f32 %v1411, %v1410
        %v1414 = vadd.f32 %v1386, %v1412
        %v1415 = vadd.f32 %v1387, %v1413
        %v1416 = vld [vmem:[%s816 + $0x3] sm:$0xff]
        %v1417 = vld [vmem:[%s816 + $0xb] sm:$0xff]
        %v1418 = vstv %s341
        %v1419 = vmul.f32 %v1418, %v1416
        %v1420 = vmul.f32 %v1418, %v1417
        %v1421 = vadd.f32 %v1393, %v1419
        %v1422 = vadd.f32 %v1394, %v1420
        %v1423 = vld [vmem:[%s835 + $0x3] sm:$0xff]
        %v1424 = vld [vmem:[%s835 + $0xb] sm:$0xff]
        %v1425 = vstv %s342
        %v1426 = vmul.f32 %v1425, %v1423
        %v1427 = vmul.f32 %v1425, %v1424
        %v1428 = vadd.f32 %v1400, %v1426
        %v1429 = vadd.f32 %v1401, %v1427
        %v1430 = vld [vmem:[%s854 + $0x3] sm:$0xff]
        %v1431 = vld [vmem:[%s854 + $0xb] sm:$0xff]
        %v1432 = vstv %s343
        %v1433 = vmul.f32 %v1432, %v1430
        %v1434 = vmul.f32 %v1432, %v1431
        %v1435 = vadd.f32 %v1407, %v1433
        %v1436 = vadd.f32 %v1408, %v1434
        %v1437 = vld [vmem:[%s873 + $0x3] sm:$0xff]
        %v1438 = vld [vmem:[%s873 + $0xb] sm:$0xff]
        %v1439 = vstv %s344
        %v1440 = vmul.f32 %v1439, %v1437
        %v1441 = vmul.f32 %v1439, %v1438
        %v1442 = vadd.f32 %v1414, %v1440
        %v1443 = vadd.f32 %v1415, %v1441
        %v1444 = vld [vmem:[%s892 + $0x3] sm:$0xff]
        %v1445 = vld [vmem:[%s892 + $0xb] sm:$0xff]
        %v1446 = vstv %s345
        %v1447 = vmul.f32 %v1446, %v1444
        %v1448 = vmul.f32 %v1446, %v1445
        %v1449 = vadd.f32 %v1421, %v1447
        %v1450 = vadd.f32 %v1422, %v1448
        %v1451 = vld [vmem:[%s911 + $0x3] sm:$0xff]
        %v1452 = vld [vmem:[%s911 + $0xb] sm:$0xff]
        %v1453 = vstv %s346
        %v1454 = vmul.f32 %v1453, %v1451
        %v1455 = vmul.f32 %v1453, %v1452
        %v1456 = vadd.f32 %v1428, %v1454
        %v1457 = vadd.f32 %v1429, %v1455
        %v1458 = vld [vmem:[%s930 + $0x3] sm:$0xff]
        %v1459 = vld [vmem:[%s930 + $0xb] sm:$0xff]
        %v1460 = vstv %s347
        %v1461 = vmul.f32 %v1460, %v1458
        %v1462 = vmul.f32 %v1460, %v1459
        %v1463 = vadd.f32 %v1435, %v1461
        %v1464 = vadd.f32 %v1436, %v1462
        %v1465 = vld [vmem:[%s816 + $0x4] sm:$0xff]
        %v1466 = vld [vmem:[%s816 + $0xc] sm:$0xff]
        %v1467 = vstv %s348
        %v1468 = vmul.f32 %v1467, %v1465
        %v1469 = vmul.f32 %v1467, %v1466
        %v1470 = vadd.f32 %v1442, %v1468
        %v1471 = vadd.f32 %v1443, %v1469
        %v1472 = vld [vmem:[%s835 + $0x4] sm:$0xff]
        %v1473 = vld [vmem:[%s835 + $0xc] sm:$0xff]
        %v1474 = vstv %s349
        %v1475 = vmul.f32 %v1474, %v1472
        %v1476 = vmul.f32 %v1474, %v1473
        %v1477 = vadd.f32 %v1449, %v1475
        %v1478 = vadd.f32 %v1450, %v1476
        %v1479 = vld [vmem:[%s854 + $0x4] sm:$0xff]
        %v1480 = vld [vmem:[%s854 + $0xc] sm:$0xff]
        %v1481 = vstv %s350
        %v1482 = vmul.f32 %v1481, %v1479
        %v1483 = vmul.f32 %v1481, %v1480
        %v1484 = vadd.f32 %v1456, %v1482
        %v1485 = vadd.f32 %v1457, %v1483
        %v1486 = vld [vmem:[%s873 + $0x4] sm:$0xff]
        %v1487 = vld [vmem:[%s873 + $0xc] sm:$0xff]
        %v1488 = vstv %s351
        %v1489 = vmul.f32 %v1488, %v1486
        %v1490 = vmul.f32 %v1488, %v1487
        %v1491 = vadd.f32 %v1463, %v1489
        %v1492 = vadd.f32 %v1464, %v1490
        %v1493 = vld [vmem:[%s892 + $0x4] sm:$0xff]
        %v1494 = vld [vmem:[%s892 + $0xc] sm:$0xff]
        %v1495 = vstv %s352
        %v1496 = vmul.f32 %v1495, %v1493
        %v1497 = vmul.f32 %v1495, %v1494
        %v1498 = vadd.f32 %v1470, %v1496
        %v1499 = vadd.f32 %v1471, %v1497
        %v1500 = vld [vmem:[%s911 + $0x4] sm:$0xff]
        %v1501 = vld [vmem:[%s911 + $0xc] sm:$0xff]
        %v1502 = vstv %s353
        %v1503 = vmul.f32 %v1502, %v1500
        %v1504 = vmul.f32 %v1502, %v1501
        %v1505 = vadd.f32 %v1477, %v1503
        %v1506 = vadd.f32 %v1478, %v1504
        %v1507 = vld [vmem:[%s930 + $0x4] sm:$0xff]
        %v1508 = vld [vmem:[%s930 + $0xc] sm:$0xff]
        %v1509 = vstv %s354
        %v1510 = vmul.f32 %v1509, %v1507
        %v1511 = vmul.f32 %v1509, %v1508
        %v1512 = vadd.f32 %v1484, %v1510
        %v1513 = vadd.f32 %v1485, %v1511
        %v1514 = vld [vmem:[%s816 + $0x5] sm:$0xff]
        %v1515 = vld [vmem:[%s816 + $0xd] sm:$0xff]
        %v1516 = vstv %s355
        %v1517 = vmul.f32 %v1516, %v1514
        %v1518 = vmul.f32 %v1516, %v1515
        %v1519 = vadd.f32 %v1491, %v1517
        %v1520 = vadd.f32 %v1492, %v1518
        %v1521 = vld [vmem:[%s835 + $0x5] sm:$0xff]
        %v1522 = vld [vmem:[%s835 + $0xd] sm:$0xff]
        %v1523 = vstv %s356
        %v1524 = vmul.f32 %v1523, %v1521
        %v1525 = vmul.f32 %v1523, %v1522
        %v1526 = vadd.f32 %v1498, %v1524
        %v1527 = vadd.f32 %v1499, %v1525
        %v1528 = vld [vmem:[%s854 + $0x5] sm:$0xff]
        %v1529 = vld [vmem:[%s854 + $0xd] sm:$0xff]
        %v1530 = vstv %s357
        %v1531 = vmul.f32 %v1530, %v1528
        %v1532 = vmul.f32 %v1530, %v1529
        %v1533 = vadd.f32 %v1505, %v1531
        %v1534 = vadd.f32 %v1506, %v1532
        %v1535 = vld [vmem:[%s873 + $0x5] sm:$0xff]
        %v1536 = vld [vmem:[%s873 + $0xd] sm:$0xff]
        %v1537 = vstv %s358
        %v1538 = vmul.f32 %v1537, %v1535
        %v1539 = vmul.f32 %v1537, %v1536
        %v1540 = vadd.f32 %v1512, %v1538
        %v1541 = vadd.f32 %v1513, %v1539
        %v1542 = vld [vmem:[%s892 + $0x5] sm:$0xff]
        %v1543 = vld [vmem:[%s892 + $0xd] sm:$0xff]
        %v1544 = vstv %s359
        %v1545 = vmul.f32 %v1544, %v1542
        %v1546 = vmul.f32 %v1544, %v1543
        %v1547 = vadd.f32 %v1519, %v1545
        %v1548 = vadd.f32 %v1520, %v1546
        %v1549 = vld [vmem:[%s911 + $0x5] sm:$0xff]
        %v1550 = vld [vmem:[%s911 + $0xd] sm:$0xff]
        %v1551 = vstv %s360
        %v1552 = vmul.f32 %v1551, %v1549
        %v1553 = vmul.f32 %v1551, %v1550
        %v1554 = vadd.f32 %v1526, %v1552
        %v1555 = vadd.f32 %v1527, %v1553
        %v1556 = vld [vmem:[%s930 + $0x5] sm:$0xff]
        %v1557 = vld [vmem:[%s930 + $0xd] sm:$0xff]
        %v1558 = vstv %s361
        %v1559 = vmul.f32 %v1558, %v1556
        %v1560 = vmul.f32 %v1558, %v1557
        %v1561 = vadd.f32 %v1533, %v1559
        %v1562 = vadd.f32 %v1534, %v1560
        %v1563 = vld [vmem:[%s816 + $0x6] sm:$0xff]
        %v1564 = vld [vmem:[%s816 + $0xe] sm:$0xff]
        %v1565 = vstv %s362
        %v1566 = vmul.f32 %v1565, %v1563
        %v1567 = vmul.f32 %v1565, %v1564
        %v1568 = vadd.f32 %v1540, %v1566
        %v1569 = vadd.f32 %v1541, %v1567
        %v1570 = vld [vmem:[%s835 + $0x6] sm:$0xff]
        %v1571 = vld [vmem:[%s835 + $0xe] sm:$0xff]
        %v1572 = vstv %s363
        %v1573 = vmul.f32 %v1572, %v1570
        %v1574 = vmul.f32 %v1572, %v1571
        %v1575 = vadd.f32 %v1547, %v1573
        %v1576 = vadd.f32 %v1548, %v1574
        %v1577 = vld [vmem:[%s854 + $0x6] sm:$0xff]
        %v1578 = vld [vmem:[%s854 + $0xe] sm:$0xff]
        %v1579 = vstv %s364
        %v1580 = vmul.f32 %v1579, %v1577
        %v1581 = vmul.f32 %v1579, %v1578
        %v1582 = vadd.f32 %v1554, %v1580
        %v1583 = vadd.f32 %v1555, %v1581
        %v1584 = vld [vmem:[%s873 + $0x6] sm:$0xff]
        %v1585 = vld [vmem:[%s873 + $0xe] sm:$0xff]
        %v1586 = vstv %s365
        %v1587 = vmul.f32 %v1586, %v1584
        %v1588 = vmul.f32 %v1586, %v1585
        %v1589 = vadd.f32 %v1561, %v1587
        %v1590 = vadd.f32 %v1562, %v1588
        %v1591 = vld [vmem:[%s892 + $0x6] sm:$0xff]
        %v1592 = vld [vmem:[%s892 + $0xe] sm:$0xff]
        %v1593 = vstv %s366
        %v1594 = vmul.f32 %v1593, %v1591
        %v1595 = vmul.f32 %v1593, %v1592
        %v1596 = vadd.f32 %v1568, %v1594
        %v1597 = vadd.f32 %v1569, %v1595
        %v1598 = vld [vmem:[%s911 + $0x6] sm:$0xff]
        %v1599 = vld [vmem:[%s911 + $0xe] sm:$0xff]
        %v1600 = vstv %s367
        %v1601 = vmul.f32 %v1600, %v1598
        %v1602 = vmul.f32 %v1600, %v1599
        %v1603 = vadd.f32 %v1575, %v1601
        %v1604 = vadd.f32 %v1576, %v1602
        %v1605 = vld [vmem:[%s930 + $0x6] sm:$0xff]
        %v1606 = vld [vmem:[%s930 + $0xe] sm:$0xff]
        %v1607 = vstv %s368
        %v1608 = vmul.f32 %v1607, %v1605
        %v1609 = vmul.f32 %v1607, %v1606
        %v1610 = vadd.f32 %v1582, %v1608
        %v1611 = vadd.f32 %v1583, %v1609
        %v1612 = vadd.f32 %v1603, %v1610
        %v1613 = vadd.f32 %v1604, %v1611
        %v1614 = vadd.f32 %v1589, %v1596
        %v1615 = vadd.f32 %v1590, %v1597
        %v1616 = vadd.f32 %v1612, %v1614
        %v1617 = vadd.f32 %v1613, %v1615
        %v1618 = vxor.u32 %v1616, 2147483648
        %v1619 = vxor.u32 %v1617, 2147483648
        %v1620 = vmul.f32 %v1618, 1.442695
        %v1621 = vpow.pop %v1620
        %v1622 = vmul.f32 %v1619, 1.442695
        %v1623 = vpow.pop %v1622
        %v1624 = vadd.f32 %v1621, 1.0
        %v1625 = vadd.f32 %v1623, 1.0
        %v1626 = vrcp.pop %v1624
        %v1627 = vmul.f32 1.0, %v1626
        %v1628 = vrcp.pop %v1625
        %v1629 = vmul.f32 1.0, %v1628
        %1630 = vst.msk [vmem:[%s187] sm:$0xff] %vm694, %v1627
        %1631 = vst.msk [vmem:[%s187 + $0x8] sm:$0xff] %vm694, %v1629
        %s1632 = sand.u32 %s89, 1
        %s1633 = scalar_lea.sflag [#allocation8], %s1632
        %s1634 = sand.u32 %s89, 1
        %s1635 = smul.addr %s1634, 16
        %s1636 = scalar_lea.vmem [#allocation11], %s1635
        // Predicated region
        $region37: #{tpu_custom_call.1} parent=27 // pred_check
          %p1637 = pneg %p99
        $region38: #{tpu_custom_call.1} parent=27 // pred_check_branch
          %1639 = sbr.rel (%p1637) target = $region40
        $region39: #{tpu_custom_call.1} parent=27 // pred_region
          %s1641 = ssub.s32 256, 256
          %1642 = vsyncadd %s1633, %s1641
          %s1643 = smul.addr %s24, 2
          %s1644 = smul.addr %s1643, 128
          %s1645 = scalar_lea.hbm %s2, %s1644
          %s1646 = sshll.u32 %s1636, 4
          %s1647 = int_to_ptr.vmem [resolvable:$true] %s1646
          %1652 = dma.vmem_to_hbm [thread:$0]  %s1647, 256, %s1645, %s1633, 128, 128, 8
        $region40: #{tpu_custom_call.1} parent=27 // pred_fallthru
          _
      $region28: #{tpu_custom_call.1} parent=5 // pred_fallthru
        _
      %p1653 = scmp.le.s32.totalorder 2, %s15
      // Predicated region
      $region41: #{tpu_custom_call.1} parent=5 // pred_check
        %p1654 = pneg %p1653
      $region42: #{tpu_custom_call.1} parent=5 // pred_check_branch
        %1656 = sbr.rel (%p1654) target = $region44
      $region43: #{tpu_custom_call.1} parent=5 // pred_region
        %s1657 = ssub.s32 %s15, 2
        // Predicated region
        $region45: #{tpu_custom_call.1} parent=43 // pred_check
          %p1658 = pneg %p105
        $region46: #{tpu_custom_call.1} parent=43 // pred_check_branch
          %1660 = sbr.rel (%p1658) target = $region48
        $region47: #{tpu_custom_call.1} parent=43 // pred_region
          %s1661 = sand.u32 %s90, 1
          %s1662 = scalar_lea.sflag [#allocation8], %s1661
          %s1663 = sand.u32 %s90, 1
          %s1664 = smul.addr %s1663, 16
          %s1665 = scalar_lea.vmem [#allocation11], %s1664
          %1666 = dma.done %s1662, 256
        $region48: #{tpu_custom_call.1} parent=43 // pred_fallthru
          _
      $region44: #{tpu_custom_call.1} parent=5 // pred_fallthru
        _
    $region6: #{tpu_custom_call.1} parent=1 // loop_footer
      %s19 = sadd.s32 1, %s15
    $region7: #{tpu_custom_call.1} parent=1 // loop_footer_branch
      %14 = sbr.rel target = $region3
    $region8: #{tpu_custom_call.1} parent=1 // loop_exit
      _
    %1667 = vsyncpa [#allocation7], 1
    %s1668 = scalar_lea.sflag [#allocation7], 1
    %1669 = vsyncpa %s1668, 1
    %1670 = vsyncpa [#allocation8], 1
    %s1671 = scalar_lea.sflag [#allocation8], 1
    %1672 = vsyncpa %s1671, 1
    %1673 = vsyncpa [#allocation9], 1
    %s1674 = scalar_lea.sflag [#allocation9], 1
    %1675 = vsyncpa %s1674, 1

</llo_original>
